<compile_context>
chip_gen: v7x
topology: tpu7x:2x2x1
jax: 0.10.0
libtpu: 0.0.40
codegen_flags: <defaults>
</compile_context>

<pallas_src>
import functools

import jax
import jax.numpy as jnp
from jax import lax
from jax.experimental import pallas as pl
from jax.experimental.pallas import tpu as pltpu


_VMEM_LIMIT = 48 * 1024 * 1024    # explicit scoped-VMEM cap (safe on v5e/v6e/v7x)
_VMEM_BUDGET = 36 * 1024 * 1024   # BB-dependent budget, leaves headroom for weights


def _pick_bb(B, per_bb_bytes, cap=256):
    """Largest batch block that divides B, is a multiple of 8 (sublane rule),
    and fits the VMEM budget.  (On v5e a cap of 128 matches the 4x128 MXU.)"""
    if B % 8 != 0:
        return B                      # full-dim block (allowed by the (8,128) rule)
    best = 8
    c = 8
    while c <= min(B, cap):
        if B % c == 0 and c * per_bb_bytes <= _VMEM_BUDGET:
            best = c
        c += 8
    return best


def _pick_tv(V, cap=2048):
    """Vocab tile for the output projection: multiple of 128 dividing V."""
    if V % 128 != 0:
        return V
    best = 128
    tv = 128
    while tv <= min(V, cap):
        if V % tv == 0:
            best = tv
        tv += 128
    return best


# ----------------------------------------------------------------------------
# Fused encoder GRU + descriptor head + predictor MLP + decoder GRU.
# One invocation per batch block; time loops run inside the kernel.
# ----------------------------------------------------------------------------
def _fused_kernel(xe_ref, ye_ref,
                  ewih_ref, ewhh_ref, ebias_ref, ebhn_ref,
                  dwih_ref, dwhh_ref, dbias_ref, dbhn_ref,
                  wdesc_ref, bdesc_ref, w1_ref, b1_ref, w2_ref, b2_ref,
                  desc_ref, dech_ref, dhf_ref, prop_ref,
                  egi_scr, dgi_scr):
    Tx, BB, E = xe_ref.shape
    Ty = ye_ref.shape[0]
    H = ewhh_ref.shape[0]
    f32 = jnp.float32
    cdt = ewhh_ref.dtype                      # MXU operand dtype (bf16 or f32)
    unroll = min(max(Tx, Ty), 8)              # bounded unroll (avoid vreg spills)

    # Hoisted input projections for ALL timesteps of both GRUs: two big,
    # lane-dense MXU calls off the serial path.  The r/z hidden biases were
    # folded into ebias/dbias in the wrapper -> ONE full-width store each.
    egi = (jnp.dot(xe_ref[...].astype(cdt).reshape(Tx * BB, E), ewih_ref[...],
                   preferred_element_type=f32) + ebias_ref[...])
    egi_scr[...] = egi.reshape(Tx, BB, 3 * H)
    dgi = (jnp.dot(ye_ref[...].astype(cdt).reshape(Ty * BB, E), dwih_ref[...],
                   preferred_element_type=f32) + dbias_ref[...])
    dgi_scr[...] = dgi.reshape(Ty, BB, 3 * H)

    def make_step(gi_scr, whh_ref, bhn_ref, store_ref):
        def step(t, h):
            gh = jnp.dot(h.astype(cdt), whh_ref[...], preferred_element_type=f32)
            g = gi_scr[t]                                       # (BB, 3H) f32
            r = jax.nn.sigmoid(g[:, :H] + gh[:, :H])
            z = jax.nn.sigmoid(g[:, H:2 * H] + gh[:, H:2 * H])
            n = jnp.tanh(g[:, 2 * H:] + r * (gh[:, 2 * H:] + bhn_ref[...]))
            h_new = (1.0 - z) * n + z * h
            if store_ref is not None:
                store_ref[t] = h_new
            return h_new
        return step

    # Encoder recurrence (per-step outputs NOT stored: nothing consumes them).
    h_enc = lax.fori_loop(0, Tx, make_step(egi_scr, ewhh_ref, ebhn_ref, None),
                          jnp.zeros((BB, H), f32), unroll=unroll)

    # Encoder epilogue: descriptor head + fused predictor MLP (desc stays VMEM).
    desc = jnp.tanh(jnp.dot(h_enc.astype(cdt), wdesc_ref[...],
                            preferred_element_type=f32) + bdesc_ref[...])
    desc_ref[...] = desc
    ph = jnp.maximum(jnp.dot(desc.astype(cdt), w1_ref[...],
                             preferred_element_type=f32) + b1_ref[...], 0.0)
    prop_ref[...] = (jnp.dot(ph, w2_ref[...], preferred_element_type=f32)
                     + b2_ref[...])

    # Decoder recurrence, initialized with the encoder final state (no HBM trip).
    h_dec = lax.fori_loop(0, Ty, make_step(dgi_scr, dwhh_ref, dbhn_ref, dech_ref),
                          h_enc, unroll=unroll)
    dhf_ref[...] = h_dec


# ----------------------------------------------------------------------------
# Vocab-tiled decoder output projection: one lane-dense (Ty*BB, H) @ (H, TV)
# matmul per (batch block, vocab tile).  Both grid axes are "parallel".
# ----------------------------------------------------------------------------
def _proj_kernel(h_ref, w_ref, b_ref, out_ref):
    Ty, BB, H = h_ref.shape
    TV = w_ref.shape[1]
    h2d = h_ref[...].astype(w_ref.dtype).reshape(Ty * BB, H)
    logits = (jnp.dot(h2d, w_ref[...], preferred_element_type=jnp.float32)
              + b_ref[...])
    out_ref[...] = logits.reshape(Ty, BB, TV)


# ----------------------------------------------------------------------------
# Wrapper
# ----------------------------------------------------------------------------
def _fold_rz_bias(bih, bhh, H):
    # b_ih + [b_hr, b_hz, 0]: hidden bias for the r/z gates folds into the
    # hoisted gi; b_hn must stay inside r*(...) (PyTorch GRU semantics).
    return bih + jnp.concatenate(
        [bhh[:, :2 * H], jnp.zeros((1, H), bhh.dtype)], axis=1)


@functools.partial(jax.jit, static_argnames=("prop", "compute_dtype"))
def seq2seq_with_predictor_forward(x, y, params, prop=True,
                                   compute_dtype=jnp.bfloat16):
    p = params
    H = p["enc_whh"].shape[0]
    P = p["pred_w1"].shape[1]
    V = p["dec_wout"].shape[1]
    cdt = jnp.dtype(compute_dtype)

    # Embedding gather stays in XLA (only the tiny (B,T) id matrix is transposed).
    x_t = p["enc_emb"][x.T]                            # (Tx, B, E) f32
    y_t = p["dec_emb"][y.T]                            # (Ty, B, E) f32
    Tx, B, E = x_t.shape
    Ty = y_t.shape[0]

    # Weights cast ONCE to the MXU operand dtype; biases stay fp32 (post-acc add).
    ewih = p["enc_wih"].astype(cdt); ewhh = p["enc_whh"].astype(cdt)
    dwih = p["dec_wih"].astype(cdt); dwhh = p["dec_whh"].astype(cdt)
    wdesc = p["desc_w"].astype(cdt)
    w1 = p["pred_w1"].astype(cdt)
    wout = p["dec_wout"].astype(cdt)
    ebias = _fold_rz_bias(p["enc_bih"], p["enc_bhh"], H)
    dbias = _fold_rz_bias(p["dec_bih"], p["dec_bhh"], H)
    ebhn = p["enc_bhh"][:, 2 * H:]
    dbhn = p["dec_bhh"][:, 2 * H:]

    # ---- fused encoder + decoder recurrence --------------------------------
    per_bb = ((Tx + Ty) * 3 * H * 4                    # gi scratch
              + 2 * (Tx + Ty) * E * 4                  # double-buffered x/y blocks
              + 2 * (Ty * H + 2 * H + 1) * 4)          # double-buffered outputs
    BB = _pick_bb(B, per_bb)
    nb = B // BB
    const = lambda b: (0, 0)

    desc, dec_h, dec_state, prop_fused = pl.pallas_call(
        _fused_kernel,
        out_shape=(
            jax.ShapeDtypeStruct((B, H), jnp.float32),
            jax.ShapeDtypeStruct((Ty, B, H), jnp.float32),
            jax.ShapeDtypeStruct((B, H), jnp.float32),
            jax.ShapeDtypeStruct((B, 1), jnp.float32),
        ),
        grid_spec=pltpu.PrefetchScalarGridSpec(
            num_scalar_prefetch=0,
            grid=(nb,),
            in_specs=[
                pl.BlockSpec((Tx, BB, E), lambda b: (0, b, 0)),
                pl.BlockSpec((Ty, BB, E), lambda b: (0, b, 0)),
                pl.BlockSpec((E, 3 * H), const),
                pl.BlockSpec((H, 3 * H), const),
                pl.BlockSpec((1, 3 * H), const),
                pl.BlockSpec((1, H), const),
                pl.BlockSpec((E, 3 * H), const),
                pl.BlockSpec((H, 3 * H), const),
                pl.BlockSpec((1, 3 * H), const),
                pl.BlockSpec((1, H), const),
                pl.BlockSpec((H, H), const),
                pl.BlockSpec((1, H), const),
                pl.BlockSpec((H, P), const),
                pl.BlockSpec((1, P), const),
                pl.BlockSpec((P, 1), const),
                pl.BlockSpec((1, 1), const),
            ],
            out_specs=(
                pl.BlockSpec((BB, H), lambda b: (b, 0)),
                pl.BlockSpec((Ty, BB, H), lambda b: (0, b, 0)),
                pl.BlockSpec((BB, H), lambda b: (b, 0)),
                pl.BlockSpec((BB, 1), lambda b: (b, 0)),
            ),
            scratch_shapes=[
                pltpu.VMEM((Tx, BB, 3 * H), jnp.float32),
                pltpu.VMEM((Ty, BB, 3 * H), jnp.float32),
            ],
        ),
        compiler_params=pltpu.CompilerParams(
            dimension_semantics=("parallel",),
            vmem_limit_bytes=_VMEM_LIMIT),
    )(x_t, y_t,
      ewih, ewhh, ebias, ebhn,
      dwih, dwhh, dbias, dbhn,
      wdesc, p["desc_b"], w1, p["pred_b1"], p["pred_w2"], p["pred_b2"])

    # ---- vocab-tiled output projection (2 parallel grid axes) --------------
    TV = _pick_tv(V)
    per_bb_p = 2 * Ty * (H + TV) * 4                   # h + logits blocks, 2x buffered
    BBp = _pick_bb(B, per_bb_p)
    nbp = B // BBp
    nv = V // TV

    logits_t = pl.pallas_call(
        _proj_kernel,
        out_shape=jax.ShapeDtypeStruct((Ty, B, V), jnp.float32),
        grid_spec=pltpu.PrefetchScalarGridSpec(
            num_scalar_prefetch=0,
            grid=(nbp, nv),
            in_specs=[
                pl.BlockSpec((Ty, BBp, H), lambda b, v: (0, b, 0)),
                pl.BlockSpec((H, TV), lambda b, v: (0, v)),
                pl.BlockSpec((1, TV), lambda b, v: (0, v)),
            ],
            out_specs=pl.BlockSpec((Ty, BBp, TV), lambda b, v: (0, b, v)),
        ),
        compiler_params=pltpu.CompilerParams(
            dimension_semantics=("parallel", "parallel"),
            vmem_limit_bytes=_VMEM_LIMIT),
    )(dec_h, wout, p["dec_bout"])

    output = jnp.transpose(logits_t, (1, 0, 2))        # (B, Ty, V)
    prop_out = prop_fused if prop else None
    return desc, output, dec_state, prop_out


# ----------------------------------------------------------------------------
# Pure-JAX fp32 reference (PyTorch GRU semantics) for correctness checking
# ----------------------------------------------------------------------------
def _ref_forward(x, y, p):
    def gru(emb_t, h, wih, whh, bih, bhh):
        H = whh.shape[0]
        outs = []
        for t in range(emb_t.shape[0]):
            gi = emb_t[t] @ wih + bih
            gh = h @ whh + bhh
            r = jax.nn.sigmoid(gi[:, :H] + gh[:, :H])
            z = jax.nn.sigmoid(gi[:, H:2 * H] + gh[:, H:2 * H])
            n = jnp.tanh(gi[:, 2 * H:] + r * gh[:, 2 * H:])
            h = (1.0 - z) * n + z * h
            outs.append(h)
        return jnp.stack(outs), h

    B = x.shape[0]
    H = p["enc_whh"].shape[0]
    _, hT = gru(p["enc_emb"][x.T], jnp.zeros((B, H), jnp.float32),
                p["enc_wih"], p["enc_whh"], p["enc_bih"], p["enc_bhh"])
    desc = jnp.tanh(hT @ p["desc_w"] + p["desc_b"])
    houts, hD = gru(p["dec_emb"][y.T], hT,
                    p["dec_wih"], p["dec_whh"], p["dec_bih"], p["dec_bhh"])
    logits = jnp.transpose(houts @ p["dec_wout"] + p["dec_bout"], (1, 0, 2))
    ph = jnp.maximum(desc @ p["pred_w1"] + p["pred_b1"], 0.0)
    prop_out = ph @ p["pred_w2"] + p["pred_b2"]
    return desc, logits, hD, prop_out


# ----------------------------------------------------------------------------
# Deterministic parameter construction
# ----------------------------------------------------------------------------
def make_params(key, vocab, emb_dim, hidden, pred_hidden):
    ks = jax.random.split(key, 16)
    s = 0.1
    return {
        "enc_emb":  jax.random.normal(ks[0], (vocab, emb_dim), jnp.float32) * s,
        "enc_wih":  jax.random.normal(ks[1], (emb_dim, 3 * hidden), jnp.float32) * s,
        "enc_whh":  jax.random.normal(ks[2], (hidden, 3 * hidden), jnp.float32) * s,
        "enc_bih":  jax.random.normal(ks[3], (1, 3 * hidden), jnp.float32) * s,
        "enc_bhh":  jax.random.normal(ks[4], (1, 3 * hidden), jnp.float32) * s,
        "desc_w":   jax.random.normal(ks[5], (hidden, hidden), jnp.float32) * s,
        "desc_b":   jax.random.normal(ks[6], (1, hidden), jnp.float32) * s,
        "dec_emb":  jax.random.normal(ks[7], (vocab, emb_dim), jnp.float32) * s,
        "dec_wih":  jax.random.normal(ks[8], (emb_dim, 3 * hidden), jnp.float32) * s,
        "dec_whh":  jax.random.normal(ks[9], (hidden, 3 * hidden), jnp.float32) * s,
        "dec_bih":  jax.random.normal(ks[10], (1, 3 * hidden), jnp.float32) * s,
        "dec_bhh":  jax.random.normal(ks[11], (1, 3 * hidden), jnp.float32) * s,
        "dec_wout": jax.random.normal(ks[12], (hidden, vocab), jnp.float32) * s,
        "dec_bout": jax.random.normal(ks[13], (1, vocab), jnp.float32) * s,
        "pred_w1":  jax.random.normal(ks[14], (hidden, pred_hidden), jnp.float32) * s,
        "pred_b1":  jnp.zeros((1, pred_hidden), jnp.float32),
        "pred_w2":  jax.random.normal(ks[15], (pred_hidden, 1), jnp.float32) * s,
        "pred_b2":  jnp.zeros((1, 1), jnp.float32),
    }


if __name__ == "__main__":
    # Dims aligned to TPU (8, 128) tiling: B multiple of 8; E/H/V/P = 128.
    B, Tx, Ty = 8, 8, 8
    VOCAB, EMB, HID, PRED_HID = 128, 128, 128, 128

    key = jax.random.PRNGKey(0)
    k_p, k_x, k_y = jax.random.split(key, 3)
    params = make_params(k_p, VOCAB, EMB, HID, PRED_HID)

    x = jax.random.randint(k_x, (B, Tx), 0, VOCAB, dtype=jnp.int32)
    y = jax.random.randint(k_y, (B, Ty), 0, VOCAB, dtype=jnp.int32)

    desc, output, dec_state, prop_out = seq2seq_with_predictor_forward(
        x, y, params, prop=True, compute_dtype=jnp.bfloat16)
    jax.block_until_ready((desc, output, dec_state, prop_out))

    assert desc.shape == (B, HID)
    assert output.shape == (B, Ty, VOCAB)
    assert dec_state.shape == (B, HID)
    assert prop_out.shape == (B, 1)

    # Correctness vs. pure-fp32 reference (tolerances loosened for bf16 MXU
    # operands; f32 accumulation keeps the recurrence close).
    r_desc, r_out, r_dec, r_prop = _ref_forward(x, y, params)
    tol = dict(atol=2e-2, rtol=2e-2)
    assert jnp.allclose(desc, r_desc, **tol)
    assert jnp.allclose(output, r_out, **tol)
    assert jnp.allclose(dec_state, r_dec, **tol)
    assert jnp.allclose(prop_out, r_prop, **tol)

    print("KERNEL_OK")
</pallas_src>

<mosaic_0001>
module attributes {stable_mosaic.version = 11 : i64} {
  func.func @_proj_kernel(%arg0: i32, %arg1: i32, %arg2: memref<8x8x128xf32, #tpu.memory_space<vmem>>, %arg3: memref<128x128xbf16, #tpu.memory_space<vmem>>, %arg4: memref<1x128xf32, #tpu.memory_space<vmem>>, %arg5: memref<8x8x128xf32, #tpu.memory_space<vmem>>) attributes {dimension_semantics = [#tpu.dimension_semantics<parallel>, #tpu.dimension_semantics<parallel>], iteration_bounds = array<i64: 1, 1>, scalar_prefetch = 0 : i64, scratch_operands = 0 : i64, tpu.core_type = #tpu.core_type<tc>, window_params = [{transform_indices = @transform_0, window_bounds = array<i64: 8, 8, 128>}, {transform_indices = @transform_1, window_bounds = array<i64: 128, 128>}, {transform_indices = @transform_2, window_bounds = array<i64: 1, 128>}, {transform_indices = @transform_3, window_bounds = array<i64: 8, 8, 128>}]} {
    %c0 = arith.constant 0 : index
    %c0_0 = arith.constant 0 : index
    %c0_1 = arith.constant 0 : index
    %0 = vector.load %arg2[%c0, %c0_0, %c0_1] : memref<8x8x128xf32, #tpu.memory_space<vmem>>, vector<8x8x128xf32>
    %1 = arith.truncf %0 : vector<8x8x128xf32> to vector<8x8x128xbf16>
    %2 = vector.shape_cast %1 : vector<8x8x128xbf16> to vector<64x128xbf16>
    %c0_2 = arith.constant 0 : index
    %c0_3 = arith.constant 0 : index
    %3 = vector.load %arg3[%c0_2, %c0_3] : memref<128x128xbf16, #tpu.memory_space<vmem>>, vector<128x128xbf16>
    %cst = arith.constant dense<0.000000e+00> : vector<64x128xf32>
    %4 = tpu.matmul %2, %3, %cst {dimension_numbers = #tpu.dot_dimension_numbers<[1], [0], [0], [1], [0, 0, 1, 1], [], []>} : vector<64x128xbf16>, vector<128x128xbf16>, vector<64x128xf32> -> vector<64x128xf32>
    %c0_4 = arith.constant 0 : index
    %c0_5 = arith.constant 0 : index
    %5 = vector.load %arg4[%c0_4, %c0_5] : memref<1x128xf32, #tpu.memory_space<vmem>>, vector<1x128xf32>
    %6 = vector.broadcast %5 : vector<1x128xf32> to vector<64x128xf32>
    %7 = arith.addf %4, %6 : vector<64x128xf32>
    %8 = vector.shape_cast %7 : vector<64x128xf32> to vector<8x8x128xf32>
    %c0_6 = arith.constant 0 : index
    %c0_7 = arith.constant 0 : index
    %c0_8 = arith.constant 0 : index
    %9 = vector.load %arg5[%c0_6, %c0_7, %c0_8] : memref<8x8x128xf32, #tpu.memory_space<vmem>>, vector<8x8x128xf32>
    tpu.vector_store %arg5[%c0_6, %c0_7, %c0_8], %8 {strides = array<i32>} : memref<8x8x128xf32, #tpu.memory_space<vmem>>, vector<8x8x128xf32>,
    return
  }
  func.func @transform_0(%arg0: i32, %arg1: i32) -> (i32, i32, i32) {
    %c0_i32 = arith.constant 0 : i32
    %c0_i32_0 = arith.constant 0 : i32
    %c0_i32_1 = arith.constant 0 : i32
    return %c0_i32, %arg0, %c0_i32_0 : i32, i32, i32
  }
  func.func @transform_1(%arg0: i32, %arg1: i32) -> (i32, i32) {
    %c0_i32 = arith.constant 0 : i32
    %c0_i32_0 = arith.constant 0 : i32
    return %c0_i32, %arg1 : i32, i32
  }
  func.func @transform_2(%arg0: i32, %arg1: i32) -> (i32, i32) {
    %c0_i32 = arith.constant 0 : i32
    %c0_i32_0 = arith.constant 0 : i32
    return %c0_i32, %arg1 : i32, i32
  }
  func.func @transform_3(%arg0: i32, %arg1: i32) -> (i32, i32, i32) {
    %c0_i32 = arith.constant 0 : i32
    %c0_i32_0 = arith.constant 0 : i32
    return %c0_i32, %arg0, %arg1 : i32, i32, i32
  }
}

module attributes {stable_mosaic.version = 11 : i64} {
  func.func @_fused_kernel(%arg0: i32, %arg1: memref<8x8x128xf32, #tpu.memory_space<vmem>>, %arg2: memref<8x8x128xf32, #tpu.memory_space<vmem>>, %arg3: memref<128x384xbf16, #tpu.memory_space<vmem>>, %arg4: memref<128x384xbf16, #tpu.memory_space<vmem>>, %arg5: memref<1x384xf32, #tpu.memory_space<vmem>>, %arg6: memref<1x128xf32, #tpu.memory_space<vmem>>, %arg7: memref<128x384xbf16, #tpu.memory_space<vmem>>, %arg8: memref<128x384xbf16, #tpu.memory_space<vmem>>, %arg9: memref<1x384xf32, #tpu.memory_space<vmem>>, %arg10: memref<1x128xf32, #tpu.memory_space<vmem>>, %arg11: memref<128x128xbf16, #tpu.memory_space<vmem>>, %arg12: memref<1x128xf32, #tpu.memory_space<vmem>>, %arg13: memref<128x128xbf16, #tpu.memory_space<vmem>>, %arg14: memref<1x128xf32, #tpu.memory_space<vmem>>, %arg15: memref<128x1xf32, #tpu.memory_space<vmem>>, %arg16: memref<1x1xf32, #tpu.memory_space<vmem>>, %arg17: memref<8x128xf32, #tpu.memory_space<vmem>>, %arg18: memref<8x8x128xf32, #tpu.memory_space<vmem>>, %arg19: memref<8x128xf32, #tpu.memory_space<vmem>>, %arg20: memref<8x1xf32, #tpu.memory_space<vmem>>, %arg21: memref<8x8x384xf32, #tpu.memory_space<vmem>>, %arg22: memref<8x8x384xf32, #tpu.memory_space<vmem>>) attributes {dimension_semantics = [#tpu.dimension_semantics<parallel>], iteration_bounds = array<i64: 1>, scalar_prefetch = 0 : i64, scratch_operands = 2 : i64, tpu.core_type = #tpu.core_type<tc>, window_params = [{transform_indices = @transform_0, window_bounds = array<i64: 8, 8, 128>}, {transform_indices = @transform_1, window_bounds = array<i64: 8, 8, 128>}, {pipeline_mode = #tpu.pipeline_mode<synchronous>, transform_indices = @transform_2, window_bounds = array<i64: 128, 384>}, {pipeline_mode = #tpu.pipeline_mode<synchronous>, transform_indices = @transform_3, window_bounds = array<i64: 128, 384>}, {pipeline_mode = #tpu.pipeline_mode<synchronous>, transform_indices = @transform_4, window_bounds = array<i64: 1, 384>}, {pipeline_mode = #tpu.pipeline_mode<synchronous>, transform_indices = @transform_5, window_bounds = array<i64: 1, 128>}, {pipeline_mode = #tpu.pipeline_mode<synchronous>, transform_indices = @transform_6, window_bounds = array<i64: 128, 384>}, {pipeline_mode = #tpu.pipeline_mode<synchronous>, transform_indices = @transform_7, window_bounds = array<i64: 128, 384>}, {pipeline_mode = #tpu.pipeline_mode<synchronous>, transform_indices = @transform_8, window_bounds = array<i64: 1, 384>}, {pipeline_mode = #tpu.pipeline_mode<synchronous>, transform_indices = @transform_9, window_bounds = array<i64: 1, 128>}, {pipeline_mode = #tpu.pipeline_mode<synchronous>, transform_indices = @transform_10, window_bounds = array<i64: 128, 128>}, {pipeline_mode = #tpu.pipeline_mode<synchronous>, transform_indices = @transform_11, window_bounds = array<i64: 1, 128>}, {pipeline_mode = #tpu.pipeline_mode<synchronous>, transform_indices = @transform_12, window_bounds = array<i64: 128, 128>}, {pipeline_mode = #tpu.pipeline_mode<synchronous>, transform_indices = @transform_13, window_bounds = array<i64: 1, 128>}, {pipeline_mode = #tpu.pipeline_mode<synchronous>, transform_indices = @transform_14, window_bounds = array<i64: 128, 1>}, {pipeline_mode = #tpu.pipeline_mode<synchronous>, transform_indices = @transform_15, window_bounds = array<i64: 1, 1>}, {transform_indices = @transform_16, window_bounds = array<i64: 8, 128>}, {transform_indices = @transform_17, window_bounds = array<i64: 8, 8, 128>}, {transform_indices = @transform_18, window_bounds = array<i64: 8, 128>}, {transform_indices = @transform_19, window_bounds = array<i64: 8, 1>}]} {
    %c0 = arith.constant 0 : index
    %c0_0 = arith.constant 0 : index
    %c0_1 = arith.constant 0 : index
    %0 = vector.load %arg1[%c0, %c0_0, %c0_1] : memref<8x8x128xf32, #tpu.memory_space<vmem>>, vector<8x8x128xf32>
    %1 = arith.truncf %0 : vector<8x8x128xf32> to vector<8x8x128xbf16>
    %2 = vector.shape_cast %1 : vector<8x8x128xbf16> to vector<64x128xbf16>
    %c0_2 = arith.constant 0 : index
    %c0_3 = arith.constant 0 : index
    %3 = vector.load %arg3[%c0_2, %c0_3] : memref<128x384xbf16, #tpu.memory_space<vmem>>, vector<128x384xbf16>
    %cst = arith.constant dense<0.000000e+00> : vector<64x384xf32>
    %4 = tpu.matmul %2, %3, %cst {dimension_numbers = #tpu.dot_dimension_numbers<[1], [0], [0], [1], [0, 0, 1, 1], [], []>} : vector<64x128xbf16>, vector<128x384xbf16>, vector<64x384xf32> -> vector<64x384xf32>
    %c0_4 = arith.constant 0 : index
    %c0_5 = arith.constant 0 : index
    %5 = vector.load %arg5[%c0_4, %c0_5] : memref<1x384xf32, #tpu.memory_space<vmem>>, vector<1x384xf32>
    %6 = vector.broadcast %5 : vector<1x384xf32> to vector<64x384xf32>
    %7 = arith.addf %4, %6 : vector<64x384xf32>
    %8 = vector.shape_cast %7 : vector<64x384xf32> to vector<8x8x384xf32>
    %c0_6 = arith.constant 0 : index
    %c0_7 = arith.constant 0 : index
    %c0_8 = arith.constant 0 : index
    %9 = vector.load %arg21[%c0_6, %c0_7, %c0_8] : memref<8x8x384xf32, #tpu.memory_space<vmem>>, vector<8x8x384xf32>
    tpu.vector_store %arg21[%c0_6, %c0_7, %c0_8], %8 {strides = array<i32>} : memref<8x8x384xf32, #tpu.memory_space<vmem>>, vector<8x8x384xf32>,
    %c0_9 = arith.constant 0 : index
    %c0_10 = arith.constant 0 : index
    %c0_11 = arith.constant 0 : index
    %10 = vector.load %arg2[%c0_9, %c0_10, %c0_11] : memref<8x8x128xf32, #tpu.memory_space<vmem>>, vector<8x8x128xf32>
    %11 = arith.truncf %10 : vector<8x8x128xf32> to vector<8x8x128xbf16>
    %12 = vector.shape_cast %11 : vector<8x8x128xbf16> to vector<64x128xbf16>
    %c0_12 = arith.constant 0 : index
    %c0_13 = arith.constant 0 : index
    %13 = vector.load %arg7[%c0_12, %c0_13] : memref<128x384xbf16, #tpu.memory_space<vmem>>, vector<128x384xbf16>
    %cst_14 = arith.constant dense<0.000000e+00> : vector<64x384xf32>
    %14 = tpu.matmul %12, %13, %cst_14 {dimension_numbers = #tpu.dot_dimension_numbers<[1], [0], [0], [1], [0, 0, 1, 1], [], []>} : vector<64x128xbf16>, vector<128x384xbf16>, vector<64x384xf32> -> vector<64x384xf32>
    %c0_15 = arith.constant 0 : index
    %c0_16 = arith.constant 0 : index
    %15 = vector.load %arg9[%c0_15, %c0_16] : memref<1x384xf32, #tpu.memory_space<vmem>>, vector<1x384xf32>
    %16 = vector.broadcast %15 : vector<1x384xf32> to vector<64x384xf32>
    %17 = arith.addf %14, %16 : vector<64x384xf32>
    %18 = vector.shape_cast %17 : vector<64x384xf32> to vector<8x8x384xf32>
    %c0_17 = arith.constant 0 : index
    %c0_18 = arith.constant 0 : index
    %c0_19 = arith.constant 0 : index
    %19 = vector.load %arg22[%c0_17, %c0_18, %c0_19] : memref<8x8x384xf32, #tpu.memory_space<vmem>>, vector<8x8x384xf32>
    tpu.vector_store %arg22[%c0_17, %c0_18, %c0_19], %18 {strides = array<i32>} : memref<8x8x384xf32, #tpu.memory_space<vmem>>, vector<8x8x384xf32>,
    %cst_20 = arith.constant 0.000000e+00 : f32
    %20 = vector.broadcast %cst_20 : f32 to vector<8x128xf32>
    %c0_i32 = arith.constant 0 : i32
    %21 = arith.truncf %20 : vector<8x128xf32> to vector<8x128xbf16>
    %c0_21 = arith.constant 0 : index
    %c0_22 = arith.constant 0 : index
    %22 = vector.load %arg4[%c0_21, %c0_22] : memref<128x384xbf16, #tpu.memory_space<vmem>>, vector<128x384xbf16>
    %cst_23 = arith.constant dense<0.000000e+00> : vector<8x384xf32>
    %23 = tpu.matmul %21, %22, %cst_23 {dimension_numbers = #tpu.dot_dimension_numbers<[1], [0], [0], [1], [0, 0, 1, 1], [], []>} : vector<8x128xbf16>, vector<128x384xbf16>, vector<8x384xf32> -> vector<8x384xf32>
    %24 = arith.index_cast %c0_i32 : i32 to index
    %c0_24 = arith.constant 0 : index
    %c0_25 = arith.constant 0 : index
    %25 = vector.load %arg21[%24, %c0_24, %c0_25] : memref<8x8x384xf32, #tpu.memory_space<vmem>>, vector<1x8x384xf32>
    %26 = vector.shape_cast %25 : vector<1x8x384xf32> to vector<8x384xf32>
    %27 = vector.extract_strided_slice %26 {offsets = [0, 0], sizes = [8, 128], strides = [1, 1]} : vector<8x384xf32> to vector<8x128xf32>
    %28 = vector.extract_strided_slice %23 {offsets = [0, 0], sizes = [8, 128], strides = [1, 1]} : vector<8x384xf32> to vector<8x128xf32>
    %29 = arith.addf %27, %28 : vector<8x128xf32>
    %30 = arith.negf %29 : vector<8x128xf32>
    %31 = math.exp %30 : vector<8x128xf32>
    %cst_26 = arith.constant 1.000000e+00 : f32
    %32 = vector.broadcast %cst_26 : f32 to vector<8x128xf32>
    %33 = arith.addf %32, %31 : vector<8x128xf32>
    %34 = arith.divf %32, %33 : vector<8x128xf32>
    %35 = vector.extract_strided_slice %26 {offsets = [0, 128], sizes = [8, 128], strides = [1, 1]} : vector<8x384xf32> to vector<8x128xf32>
    %36 = vector.extract_strided_slice %23 {offsets = [0, 128], sizes = [8, 128], strides = [1, 1]} : vector<8x384xf32> to vector<8x128xf32>
    %37 = arith.addf %35, %36 : vector<8x128xf32>
    %38 = arith.negf %37 : vector<8x128xf32>
    %39 = math.exp %38 : vector<8x128xf32>
    %cst_27 = arith.constant 1.000000e+00 : f32
    %40 = vector.broadcast %cst_27 : f32 to vector<8x128xf32>
    %41 = arith.addf %40, %39 : vector<8x128xf32>
    %42 = arith.divf %40, %41 : vector<8x128xf32>
    %43 = vector.extract_strided_slice %26 {offsets = [0, 256], sizes = [8, 128], strides = [1, 1]} : vector<8x384xf32> to vector<8x128xf32>
    %44 = vector.extract_strided_slice %23 {offsets = [0, 256], sizes = [8, 128], strides = [1, 1]} : vector<8x384xf32> to vector<8x128xf32>
    %c0_28 = arith.constant 0 : index
    %c0_29 = arith.constant 0 : index
    %45 = vector.load %arg6[%c0_28, %c0_29] : memref<1x128xf32, #tpu.memory_space<vmem>>, vector<1x128xf32>
    %46 = vector.broadcast %45 : vector<1x128xf32> to vector<8x128xf32>
    %47 = arith.addf %44, %46 : vector<8x128xf32>
    %48 = arith.mulf %34, %47 : vector<8x128xf32>
    %49 = arith.addf %43, %48 : vector<8x128xf32>
    %50 = math.tanh %49 : vector<8x128xf32>
    %cst_30 = arith.constant 1.000000e+00 : f32
    %51 = vector.broadcast %cst_30 : f32 to vector<8x128xf32>
    %52 = arith.subf %51, %42 : vector<8x128xf32>
    %53 = arith.mulf %52, %50 : vector<8x128xf32>
    %54 = arith.mulf %42, %20 : vector<8x128xf32>
    %55 = arith.addf %53, %54 : vector<8x128xf32>
    %c1_i32 = arith.constant 1 : i32
    %56 = arith.truncf %55 : vector<8x128xf32> to vector<8x128xbf16>
    %c0_31 = arith.constant 0 : index
    %c0_32 = arith.constant 0 : index
    %57 = vector.load %arg4[%c0_31, %c0_32] : memref<128x384xbf16, #tpu.memory_space<vmem>>, vector<128x384xbf16>
    %cst_33 = arith.constant dense<0.000000e+00> : vector<8x384xf32>
    %58 = tpu.matmul %56, %57, %cst_33 {dimension_numbers = #tpu.dot_dimension_numbers<[1], [0], [0], [1], [0, 0, 1, 1], [], []>} : vector<8x128xbf16>, vector<128x384xbf16>, vector<8x384xf32> -> vector<8x384xf32>
    %59 = arith.index_cast %c1_i32 : i32 to index
    %c0_34 = arith.constant 0 : index
    %c0_35 = arith.constant 0 : index
    %60 = vector.load %arg21[%59, %c0_34, %c0_35] : memref<8x8x384xf32, #tpu.memory_space<vmem>>, vector<1x8x384xf32>
    %61 = vector.shape_cast %60 : vector<1x8x384xf32> to vector<8x384xf32>
    %62 = vector.extract_strided_slice %61 {offsets = [0, 0], sizes = [8, 128], strides = [1, 1]} : vector<8x384xf32> to vector<8x128xf32>
    %63 = vector.extract_strided_slice %58 {offsets = [0, 0], sizes = [8, 128], strides = [1, 1]} : vector<8x384xf32> to vector<8x128xf32>
    %64 = arith.addf %62, %63 : vector<8x128xf32>
    %65 = arith.negf %64 : vector<8x128xf32>
    %66 = math.exp %65 : vector<8x128xf32>
    %cst_36 = arith.constant 1.000000e+00 : f32
    %67 = vector.broadcast %cst_36 : f32 to vector<8x128xf32>
    %68 = arith.addf %67, %66 : vector<8x128xf32>
    %69 = arith.divf %67, %68 : vector<8x128xf32>
    %70 = vector.extract_strided_slice %61 {offsets = [0, 128], sizes = [8, 128], strides = [1, 1]} : vector<8x384xf32> to vector<8x128xf32>
    %71 = vector.extract_strided_slice %58 {offsets = [0, 128], sizes = [8, 128], strides = [1, 1]} : vector<8x384xf32> to vector<8x128xf32>
    %72 = arith.addf %70, %71 : vector<8x128xf32>
    %73 = arith.negf %72 : vector<8x128xf32>
    %74 = math.exp %73 : vector<8x128xf32>
    %cst_37 = arith.constant 1.000000e+00 : f32
    %75 = vector.broadcast %cst_37 : f32 to vector<8x128xf32>
    %76 = arith.addf %75, %74 : vector<8x128xf32>
    %77 = arith.divf %75, %76 : vector<8x128xf32>
    %78 = vector.extract_strided_slice %61 {offsets = [0, 256], sizes = [8, 128], strides = [1, 1]} : vector<8x384xf32> to vector<8x128xf32>
    %79 = vector.extract_strided_slice %58 {offsets = [0, 256], sizes = [8, 128], strides = [1, 1]} : vector<8x384xf32> to vector<8x128xf32>
    %c0_38 = arith.constant 0 : index
    %c0_39 = arith.constant 0 : index
    %80 = vector.load %arg6[%c0_38, %c0_39] : memref<1x128xf32, #tpu.memory_space<vmem>>, vector<1x128xf32>
    %81 = vector.broadcast %80 : vector<1x128xf32> to vector<8x128xf32>
    %82 = arith.addf %79, %81 : vector<8x128xf32>
    %83 = arith.mulf %69, %82 : vector<8x128xf32>
    %84 = arith.addf %78, %83 : vector<8x128xf32>
    %85 = math.tanh %84 : vector<8x128xf32>
    %cst_40 = arith.constant 1.000000e+00 : f32
    %86 = vector.broadcast %cst_40 : f32 to vector<8x128xf32>
    %87 = arith.subf %86, %77 : vector<8x128xf32>
    %88 = arith.mulf %87, %85 : vector<8x128xf32>
    %89 = arith.mulf %77, %55 : vector<8x128xf32>
    %90 = arith.addf %88, %89 : vector<8x128xf32>
    %c2_i32 = arith.constant 2 : i32
    %91 = arith.truncf %90 : vector<8x128xf32> to vector<8x128xbf16>
    %c0_41 = arith.constant 0 : index
    %c0_42 = arith.constant 0 : index
    %92 = vector.load %arg4[%c0_41, %c0_42] : memref<128x384xbf16, #tpu.memory_space<vmem>>, vector<128x384xbf16>
    %cst_43 = arith.constant dense<0.000000e+00> : vector<8x384xf32>
    %93 = tpu.matmul %91, %92, %cst_43 {dimension_numbers = #tpu.dot_dimension_numbers<[1], [0], [0], [1], [0, 0, 1, 1], [], []>} : vector<8x128xbf16>, vector<128x384xbf16>, vector<8x384xf32> -> vector<8x384xf32>
    %94 = arith.index_cast %c2_i32 : i32 to index
    %c0_44 = arith.constant 0 : index
    %c0_45 = arith.constant 0 : index
    %95 = vector.load %arg21[%94, %c0_44, %c0_45] : memref<8x8x384xf32, #tpu.memory_space<vmem>>, vector<1x8x384xf32>
    %96 = vector.shape_cast %95 : vector<1x8x384xf32> to vector<8x384xf32>
    %97 = vector.extract_strided_slice %96 {offsets = [0, 0], sizes = [8, 128], strides = [1, 1]} : vector<8x384xf32> to vector<8x128xf32>
    %98 = vector.extract_strided_slice %93 {offsets = [0, 0], sizes = [8, 128], strides = [1, 1]} : vector<8x384xf32> to vector<8x128xf32>
    %99 = arith.addf %97, %98 : vector<8x128xf32>
    %100 = arith.negf %99 : vector<8x128xf32>
    %101 = math.exp %100 : vector<8x128xf32>
    %cst_46 = arith.constant 1.000000e+00 : f32
    %102 = vector.broadcast %cst_46 : f32 to vector<8x128xf32>
    %103 = arith.addf %102, %101 : vector<8x128xf32>
    %104 = arith.divf %102, %103 : vector<8x128xf32>
    %105 = vector.extract_strided_slice %96 {offsets = [0, 128], sizes = [8, 128], strides = [1, 1]} : vector<8x384xf32> to vector<8x128xf32>
    %106 = vector.extract_strided_slice %93 {offsets = [0, 128], sizes = [8, 128], strides = [1, 1]} : vector<8x384xf32> to vector<8x128xf32>
    %107 = arith.addf %105, %106 : vector<8x128xf32>
    %108 = arith.negf %107 : vector<8x128xf32>
    %109 = math.exp %108 : vector<8x128xf32>
    %cst_47 = arith.constant 1.000000e+00 : f32
    %110 = vector.broadcast %cst_47 : f32 to vector<8x128xf32>
    %111 = arith.addf %110, %109 : vector<8x128xf32>
    %112 = arith.divf %110, %111 : vector<8x128xf32>
    %113 = vector.extract_strided_slice %96 {offsets = [0, 256], sizes = [8, 128], strides = [1, 1]} : vector<8x384xf32> to vector<8x128xf32>
    %114 = vector.extract_strided_slice %93 {offsets = [0, 256], sizes = [8, 128], strides = [1, 1]} : vector<8x384xf32> to vector<8x128xf32>
    %c0_48 = arith.constant 0 : index
    %c0_49 = arith.constant 0 : index
    %115 = vector.load %arg6[%c0_48, %c0_49] : memref<1x128xf32, #tpu.memory_space<vmem>>, vector<1x128xf32>
    %116 = vector.broadcast %115 : vector<1x128xf32> to vector<8x128xf32>
    %117 = arith.addf %114, %116 : vector<8x128xf32>
    %118 = arith.mulf %104, %117 : vector<8x128xf32>
    %119 = arith.addf %113, %118 : vector<8x128xf32>
    %120 = math.tanh %119 : vector<8x128xf32>
    %cst_50 = arith.constant 1.000000e+00 : f32
    %121 = vector.broadcast %cst_50 : f32 to vector<8x128xf32>
    %122 = arith.subf %121, %112 : vector<8x128xf32>
    %123 = arith.mulf %122, %120 : vector<8x128xf32>
    %124 = arith.mulf %112, %90 : vector<8x128xf32>
    %125 = arith.addf %123, %124 : vector<8x128xf32>
    %c3_i32 = arith.constant 3 : i32
    %126 = arith.truncf %125 : vector<8x128xf32> to vector<8x128xbf16>
    %c0_51 = arith.constant 0 : index
    %c0_52 = arith.constant 0 : index
    %127 = vector.load %arg4[%c0_51, %c0_52] : memref<128x384xbf16, #tpu.memory_space<vmem>>, vector<128x384xbf16>
    %cst_53 = arith.constant dense<0.000000e+00> : vector<8x384xf32>
    %128 = tpu.matmul %126, %127, %cst_53 {dimension_numbers = #tpu.dot_dimension_numbers<[1], [0], [0], [1], [0, 0, 1, 1], [], []>} : vector<8x128xbf16>, vector<128x384xbf16>, vector<8x384xf32> -> vector<8x384xf32>
    %129 = arith.index_cast %c3_i32 : i32 to index
    %c0_54 = arith.constant 0 : index
    %c0_55 = arith.constant 0 : index
    %130 = vector.load %arg21[%129, %c0_54, %c0_55] : memref<8x8x384xf32, #tpu.memory_space<vmem>>, vector<1x8x384xf32>
    %131 = vector.shape_cast %130 : vector<1x8x384xf32> to vector<8x384xf32>
    %132 = vector.extract_strided_slice %131 {offsets = [0, 0], sizes = [8, 128], strides = [1, 1]} : vector<8x384xf32> to vector<8x128xf32>
    %133 = vector.extract_strided_slice %128 {offsets = [0, 0], sizes = [8, 128], strides = [1, 1]} : vector<8x384xf32> to vector<8x128xf32>
    %134 = arith.addf %132, %133 : vector<8x128xf32>
    %135 = arith.negf %134 : vector<8x128xf32>
    %136 = math.exp %135 : vector<8x128xf32>
    %cst_56 = arith.constant 1.000000e+00 : f32
    %137 = vector.broadcast %cst_56 : f32 to vector<8x128xf32>
    %138 = arith.addf %137, %136 : vector<8x128xf32>
    %139 = arith.divf %137, %138 : vector<8x128xf32>
    %140 = vector.extract_strided_slice %131 {offsets = [0, 128], sizes = [8, 128], strides = [1, 1]} : vector<8x384xf32> to vector<8x128xf32>
    %141 = vector.extract_strided_slice %128 {offsets = [0, 128], sizes = [8, 128], strides = [1, 1]} : vector<8x384xf32> to vector<8x128xf32>
    %142 = arith.addf %140, %141 : vector<8x128xf32>
    %143 = arith.negf %142 : vector<8x128xf32>
    %144 = math.exp %143 : vector<8x128xf32>
    %cst_57 = arith.constant 1.000000e+00 : f32
    %145 = vector.broadcast %cst_57 : f32 to vector<8x128xf32>
    %146 = arith.addf %145, %144 : vector<8x128xf32>
    %147 = arith.divf %145, %146 : vector<8x128xf32>
    %148 = vector.extract_strided_slice %131 {offsets = [0, 256], sizes = [8, 128], strides = [1, 1]} : vector<8x384xf32> to vector<8x128xf32>
    %149 = vector.extract_strided_slice %128 {offsets = [0, 256], sizes = [8, 128], strides = [1, 1]} : vector<8x384xf32> to vector<8x128xf32>
    %c0_58 = arith.constant 0 : index
    %c0_59 = arith.constant 0 : index
    %150 = vector.load %arg6[%c0_58, %c0_59] : memref<1x128xf32, #tpu.memory_space<vmem>>, vector<1x128xf32>
    %151 = vector.broadcast %150 : vector<1x128xf32> to vector<8x128xf32>
    %152 = arith.addf %149, %151 : vector<8x128xf32>
    %153 = arith.mulf %139, %152 : vector<8x128xf32>
    %154 = arith.addf %148, %153 : vector<8x128xf32>
    %155 = math.tanh %154 : vector<8x128xf32>
    %cst_60 = arith.constant 1.000000e+00 : f32
    %156 = vector.broadcast %cst_60 : f32 to vector<8x128xf32>
    %157 = arith.subf %156, %147 : vector<8x128xf32>
    %158 = arith.mulf %157, %155 : vector<8x128xf32>
    %159 = arith.mulf %147, %125 : vector<8x128xf32>
    %160 = arith.addf %158, %159 : vector<8x128xf32>
    %c4_i32 = arith.constant 4 : i32
    %161 = arith.truncf %160 : vector<8x128xf32> to vector<8x128xbf16>
    %c0_61 = arith.constant 0 : index
    %c0_62 = arith.constant 0 : index
    %162 = vector.load %arg4[%c0_61, %c0_62] : memref<128x384xbf16, #tpu.memory_space<vmem>>, vector<128x384xbf16>
    %cst_63 = arith.constant dense<0.000000e+00> : vector<8x384xf32>
    %163 = tpu.matmul %161, %162, %cst_63 {dimension_numbers = #tpu.dot_dimension_numbers<[1], [0], [0], [1], [0, 0, 1, 1], [], []>} : vector<8x128xbf16>, vector<128x384xbf16>, vector<8x384xf32> -> vector<8x384xf32>
    %164 = arith.index_cast %c4_i32 : i32 to index
    %c0_64 = arith.constant 0 : index
    %c0_65 = arith.constant 0 : index
    %165 = vector.load %arg21[%164, %c0_64, %c0_65] : memref<8x8x384xf32, #tpu.memory_space<vmem>>, vector<1x8x384xf32>
    %166 = vector.shape_cast %165 : vector<1x8x384xf32> to vector<8x384xf32>
    %167 = vector.extract_strided_slice %166 {offsets = [0, 0], sizes = [8, 128], strides = [1, 1]} : vector<8x384xf32> to vector<8x128xf32>
    %168 = vector.extract_strided_slice %163 {offsets = [0, 0], sizes = [8, 128], strides = [1, 1]} : vector<8x384xf32> to vector<8x128xf32>
    %169 = arith.addf %167, %168 : vector<8x128xf32>
    %170 = arith.negf %169 : vector<8x128xf32>
    %171 = math.exp %170 : vector<8x128xf32>
    %cst_66 = arith.constant 1.000000e+00 : f32
    %172 = vector.broadcast %cst_66 : f32 to vector<8x128xf32>
    %173 = arith.addf %172, %171 : vector<8x128xf32>
    %174 = arith.divf %172, %173 : vector<8x128xf32>
    %175 = vector.extract_strided_slice %166 {offsets = [0, 128], sizes = [8, 128], strides = [1, 1]} : vector<8x384xf32> to vector<8x128xf32>
    %176 = vector.extract_strided_slice %163 {offsets = [0, 128], sizes = [8, 128], strides = [1, 1]} : vector<8x384xf32> to vector<8x128xf32>
    %177 = arith.addf %175, %176 : vector<8x128xf32>
    %178 = arith.negf %177 : vector<8x128xf32>
    %179 = math.exp %178 : vector<8x128xf32>
    %cst_67 = arith.constant 1.000000e+00 : f32
    %180 = vector.broadcast %cst_67 : f32 to vector<8x128xf32>
    %181 = arith.addf %180, %179 : vector<8x128xf32>
    %182 = arith.divf %180, %181 : vector<8x128xf32>
    %183 = vector.extract_strided_slice %166 {offsets = [0, 256], sizes = [8, 128], strides = [1, 1]} : vector<8x384xf32> to vector<8x128xf32>
    %184 = vector.extract_strided_slice %163 {offsets = [0, 256], sizes = [8, 128], strides = [1, 1]} : vector<8x384xf32> to vector<8x128xf32>
    %c0_68 = arith.constant 0 : index
    %c0_69 = arith.constant 0 : index
    %185 = vector.load %arg6[%c0_68, %c0_69] : memref<1x128xf32, #tpu.memory_space<vmem>>, vector<1x128xf32>
    %186 = vector.broadcast %185 : vector<1x128xf32> to vector<8x128xf32>
    %187 = arith.addf %184, %186 : vector<8x128xf32>
    %188 = arith.mulf %174, %187 : vector<8x128xf32>
    %189 = arith.addf %183, %188 : vector<8x128xf32>
    %190 = math.tanh %189 : vector<8x128xf32>
    %cst_70 = arith.constant 1.000000e+00 : f32
    %191 = vector.broadcast %cst_70 : f32 to vector<8x128xf32>
    %192 = arith.subf %191, %182 : vector<8x128xf32>
    %193 = arith.mulf %192, %190 : vector<8x128xf32>
    %194 = arith.mulf %182, %160 : vector<8x128xf32>
    %195 = arith.addf %193, %194 : vector<8x128xf32>
    %c5_i32 = arith.constant 5 : i32
    %196 = arith.truncf %195 : vector<8x128xf32> to vector<8x128xbf16>
    %c0_71 = arith.constant 0 : index
    %c0_72 = arith.constant 0 : index
    %197 = vector.load %arg4[%c0_71, %c0_72] : memref<128x384xbf16, #tpu.memory_space<vmem>>, vector<128x384xbf16>
    %cst_73 = arith.constant dense<0.000000e+00> : vector<8x384xf32>
    %198 = tpu.matmul %196, %197, %cst_73 {dimension_numbers = #tpu.dot_dimension_numbers<[1], [0], [0], [1], [0, 0, 1, 1], [], []>} : vector<8x128xbf16>, vector<128x384xbf16>, vector<8x384xf32> -> vector<8x384xf32>
    %199 = arith.index_cast %c5_i32 : i32 to index
    %c0_74 = arith.constant 0 : index
    %c0_75 = arith.constant 0 : index
    %200 = vector.load %arg21[%199, %c0_74, %c0_75] : memref<8x8x384xf32, #tpu.memory_space<vmem>>, vector<1x8x384xf32>
    %201 = vector.shape_cast %200 : vector<1x8x384xf32> to vector<8x384xf32>
    %202 = vector.extract_strided_slice %201 {offsets = [0, 0], sizes = [8, 128], strides = [1, 1]} : vector<8x384xf32> to vector<8x128xf32>
    %203 = vector.extract_strided_slice %198 {offsets = [0, 0], sizes = [8, 128], strides = [1, 1]} : vector<8x384xf32> to vector<8x128xf32>
    %204 = arith.addf %202, %203 : vector<8x128xf32>
    %205 = arith.negf %204 : vector<8x128xf32>
    %206 = math.exp %205 : vector<8x128xf32>
    %cst_76 = arith.constant 1.000000e+00 : f32
    %207 = vector.broadcast %cst_76 : f32 to vector<8x128xf32>
    %208 = arith.addf %207, %206 : vector<8x128xf32>
    %209 = arith.divf %207, %208 : vector<8x128xf32>
    %210 = vector.extract_strided_slice %201 {offsets = [0, 128], sizes = [8, 128], strides = [1, 1]} : vector<8x384xf32> to vector<8x128xf32>
    %211 = vector.extract_strided_slice %198 {offsets = [0, 128], sizes = [8, 128], strides = [1, 1]} : vector<8x384xf32> to vector<8x128xf32>
    %212 = arith.addf %210, %211 : vector<8x128xf32>
    %213 = arith.negf %212 : vector<8x128xf32>
    %214 = math.exp %213 : vector<8x128xf32>
    %cst_77 = arith.constant 1.000000e+00 : f32
    %215 = vector.broadcast %cst_77 : f32 to vector<8x128xf32>
    %216 = arith.addf %215, %214 : vector<8x128xf32>
    %217 = arith.divf %215, %216 : vector<8x128xf32>
    %218 = vector.extract_strided_slice %201 {offsets = [0, 256], sizes = [8, 128], strides = [1, 1]} : vector<8x384xf32> to vector<8x128xf32>
    %219 = vector.extract_strided_slice %198 {offsets = [0, 256], sizes = [8, 128], strides = [1, 1]} : vector<8x384xf32> to vector<8x128xf32>
    %c0_78 = arith.constant 0 : index
    %c0_79 = arith.constant 0 : index
    %220 = vector.load %arg6[%c0_78, %c0_79] : memref<1x128xf32, #tpu.memory_space<vmem>>, vector<1x128xf32>
    %221 = vector.broadcast %220 : vector<1x128xf32> to vector<8x128xf32>
    %222 = arith.addf %219, %221 : vector<8x128xf32>
    %223 = arith.mulf %209, %222 : vector<8x128xf32>
    %224 = arith.addf %218, %223 : vector<8x128xf32>
    %225 = math.tanh %224 : vector<8x128xf32>
    %cst_80 = arith.constant 1.000000e+00 : f32
    %226 = vector.broadcast %cst_80 : f32 to vector<8x128xf32>
    %227 = arith.subf %226, %217 : vector<8x128xf32>
    %228 = arith.mulf %227, %225 : vector<8x128xf32>
    %229 = arith.mulf %217, %195 : vector<8x128xf32>
    %230 = arith.addf %228, %229 : vector<8x128xf32>
    %c6_i32 = arith.constant 6 : i32
    %231 = arith.truncf %230 : vector<8x128xf32> to vector<8x128xbf16>
    %c0_81 = arith.constant 0 : index
    %c0_82 = arith.constant 0 : index
    %232 = vector.load %arg4[%c0_81, %c0_82] : memref<128x384xbf16, #tpu.memory_space<vmem>>, vector<128x384xbf16>
    %cst_83 = arith.constant dense<0.000000e+00> : vector<8x384xf32>
    %233 = tpu.matmul %231, %232, %cst_83 {dimension_numbers = #tpu.dot_dimension_numbers<[1], [0], [0], [1], [0, 0, 1, 1], [], []>} : vector<8x128xbf16>, vector<128x384xbf16>, vector<8x384xf32> -> vector<8x384xf32>
    %234 = arith.index_cast %c6_i32 : i32 to index
    %c0_84 = arith.constant 0 : index
    %c0_85 = arith.constant 0 : index
    %235 = vector.load %arg21[%234, %c0_84, %c0_85] : memref<8x8x384xf32, #tpu.memory_space<vmem>>, vector<1x8x384xf32>
    %236 = vector.shape_cast %235 : vector<1x8x384xf32> to vector<8x384xf32>
    %237 = vector.extract_strided_slice %236 {offsets = [0, 0], sizes = [8, 128], strides = [1, 1]} : vector<8x384xf32> to vector<8x128xf32>
    %238 = vector.extract_strided_slice %233 {offsets = [0, 0], sizes = [8, 128], strides = [1, 1]} : vector<8x384xf32> to vector<8x128xf32>
    %239 = arith.addf %237, %238 : vector<8x128xf32>
    %240 = arith.negf %239 : vector<8x128xf32>
    %241 = math.exp %240 : vector<8x128xf32>
    %cst_86 = arith.constant 1.000000e+00 : f32
    %242 = vector.broadcast %cst_86 : f32 to vector<8x128xf32>
    %243 = arith.addf %242, %241 : vector<8x128xf32>
    %244 = arith.divf %242, %243 : vector<8x128xf32>
    %245 = vector.extract_strided_slice %236 {offsets = [0, 128], sizes = [8, 128], strides = [1, 1]} : vector<8x384xf32> to vector<8x128xf32>
    %246 = vector.extract_strided_slice %233 {offsets = [0, 128], sizes = [8, 128], strides = [1, 1]} : vector<8x384xf32> to vector<8x128xf32>
    %247 = arith.addf %245, %246 : vector<8x128xf32>
    %248 = arith.negf %247 : vector<8x128xf32>
    %249 = math.exp %248 : vector<8x128xf32>
    %cst_87 = arith.constant 1.000000e+00 : f32
    %250 = vector.broadcast %cst_87 : f32 to vector<8x128xf32>
    %251 = arith.addf %250, %249 : vector<8x128xf32>
    %252 = arith.divf %250, %251 : vector<8x128xf32>
    %253 = vector.extract_strided_slice %236 {offsets = [0, 256], sizes = [8, 128], strides = [1, 1]} : vector<8x384xf32> to vector<8x128xf32>
    %254 = vector.extract_strided_slice %233 {offsets = [0, 256], sizes = [8, 128], strides = [1, 1]} : vector<8x384xf32> to vector<8x128xf32>
    %c0_88 = arith.constant 0 : index
    %c0_89 = arith.constant 0 : index
    %255 = vector.load %arg6[%c0_88, %c0_89] : memref<1x128xf32, #tpu.memory_space<vmem>>, vector<1x128xf32>
    %256 = vector.broadcast %255 : vector<1x128xf32> to vector<8x128xf32>
    %257 = arith.addf %254, %256 : vector<8x128xf32>
    %258 = arith.mulf %244, %257 : vector<8x128xf32>
    %259 = arith.addf %253, %258 : vector<8x128xf32>
    %260 = math.tanh %259 : vector<8x128xf32>
    %cst_90 = arith.constant 1.000000e+00 : f32
    %261 = vector.broadcast %cst_90 : f32 to vector<8x128xf32>
    %262 = arith.subf %261, %252 : vector<8x128xf32>
    %263 = arith.mulf %262, %260 : vector<8x128xf32>
    %264 = arith.mulf %252, %230 : vector<8x128xf32>
    %265 = arith.addf %263, %264 : vector<8x128xf32>
    %c7_i32 = arith.constant 7 : i32
    %266 = arith.truncf %265 : vector<8x128xf32> to vector<8x128xbf16>
    %c0_91 = arith.constant 0 : index
    %c0_92 = arith.constant 0 : index
    %267 = vector.load %arg4[%c0_91, %c0_92] : memref<128x384xbf16, #tpu.memory_space<vmem>>, vector<128x384xbf16>
    %cst_93 = arith.constant dense<0.000000e+00> : vector<8x384xf32>
    %268 = tpu.matmul %266, %267, %cst_93 {dimension_numbers = #tpu.dot_dimension_numbers<[1], [0], [0], [1], [0, 0, 1, 1], [], []>} : vector<8x128xbf16>, vector<128x384xbf16>, vector<8x384xf32> -> vector<8x384xf32>
    %269 = arith.index_cast %c7_i32 : i32 to index
    %c0_94 = arith.constant 0 : index
    %c0_95 = arith.constant 0 : index
    %270 = vector.load %arg21[%269, %c0_94, %c0_95] : memref<8x8x384xf32, #tpu.memory_space<vmem>>, vector<1x8x384xf32>
    %271 = vector.shape_cast %270 : vector<1x8x384xf32> to vector<8x384xf32>
    %272 = vector.extract_strided_slice %271 {offsets = [0, 0], sizes = [8, 128], strides = [1, 1]} : vector<8x384xf32> to vector<8x128xf32>
    %273 = vector.extract_strided_slice %268 {offsets = [0, 0], sizes = [8, 128], strides = [1, 1]} : vector<8x384xf32> to vector<8x128xf32>
    %274 = arith.addf %272, %273 : vector<8x128xf32>
    %275 = arith.negf %274 : vector<8x128xf32>
    %276 = math.exp %275 : vector<8x128xf32>
    %cst_96 = arith.constant 1.000000e+00 : f32
    %277 = vector.broadcast %cst_96 : f32 to vector<8x128xf32>
    %278 = arith.addf %277, %276 : vector<8x128xf32>
    %279 = arith.divf %277, %278 : vector<8x128xf32>
    %280 = vector.extract_strided_slice %271 {offsets = [0, 128], sizes = [8, 128], strides = [1, 1]} : vector<8x384xf32> to vector<8x128xf32>
    %281 = vector.extract_strided_slice %268 {offsets = [0, 128], sizes = [8, 128], strides = [1, 1]} : vector<8x384xf32> to vector<8x128xf32>
    %282 = arith.addf %280, %281 : vector<8x128xf32>
    %283 = arith.negf %282 : vector<8x128xf32>
    %284 = math.exp %283 : vector<8x128xf32>
    %cst_97 = arith.constant 1.000000e+00 : f32
    %285 = vector.broadcast %cst_97 : f32 to vector<8x128xf32>
    %286 = arith.addf %285, %284 : vector<8x128xf32>
    %287 = arith.divf %285, %286 : vector<8x128xf32>
    %288 = vector.extract_strided_slice %271 {offsets = [0, 256], sizes = [8, 128], strides = [1, 1]} : vector<8x384xf32> to vector<8x128xf32>
    %289 = vector.extract_strided_slice %268 {offsets = [0, 256], sizes = [8, 128], strides = [1, 1]} : vector<8x384xf32> to vector<8x128xf32>
    %c0_98 = arith.constant 0 : index
    %c0_99 = arith.constant 0 : index
    %290 = vector.load %arg6[%c0_98, %c0_99] : memref<1x128xf32, #tpu.memory_space<vmem>>, vector<1x128xf32>
    %291 = vector.broadcast %290 : vector<1x128xf32> to vector<8x128xf32>
    %292 = arith.addf %289, %291 : vector<8x128xf32>
    %293 = arith.mulf %279, %292 : vector<8x128xf32>
    %294 = arith.addf %288, %293 : vector<8x128xf32>
    %295 = math.tanh %294 : vector<8x128xf32>
    %cst_100 = arith.constant 1.000000e+00 : f32
    %296 = vector.broadcast %cst_100 : f32 to vector<8x128xf32>
    %297 = arith.subf %296, %287 : vector<8x128xf32>
    %298 = arith.mulf %297, %295 : vector<8x128xf32>
    %299 = arith.mulf %287, %265 : vector<8x128xf32>
    %300 = arith.addf %298, %299 : vector<8x128xf32>
    %c8_i32 = arith.constant 8 : i32
    %301 = arith.truncf %300 : vector<8x128xf32> to vector<8x128xbf16>
    %c0_101 = arith.constant 0 : index
    %c0_102 = arith.constant 0 : index
    %302 = vector.load %arg11[%c0_101, %c0_102] : memref<128x128xbf16, #tpu.memory_space<vmem>>, vector<128x128xbf16>
    %cst_103 = arith.constant dense<0.000000e+00> : vector<8x128xf32>
    %303 = tpu.matmul %301, %302, %cst_103 {dimension_numbers = #tpu.dot_dimension_numbers<[1], [0], [0], [1], [0, 0, 1, 1], [], []>} : vector<8x128xbf16>, vector<128x128xbf16>, vector<8x128xf32> -> vector<8x128xf32>
    %c0_104 = arith.constant 0 : index
    %c0_105 = arith.constant 0 : index
    %304 = vector.load %arg12[%c0_104, %c0_105] : memref<1x128xf32, #tpu.memory_space<vmem>>, vector<1x128xf32>
    %305 = vector.broadcast %304 : vector<1x128xf32> to vector<8x128xf32>
    %306 = arith.addf %303, %305 : vector<8x128xf32>
    %307 = math.tanh %306 : vector<8x128xf32>
    %c0_106 = arith.constant 0 : index
    %c0_107 = arith.constant 0 : index
    %308 = vector.load %arg17[%c0_106, %c0_107] : memref<8x128xf32, #tpu.memory_space<vmem>>, vector<8x128xf32>
    tpu.vector_store %arg17[%c0_106, %c0_107], %307 {strides = array<i32>} : memref<8x128xf32, #tpu.memory_space<vmem>>, vector<8x128xf32>,
    %309 = arith.truncf %307 : vector<8x128xf32> to vector<8x128xbf16>
    %c0_108 = arith.constant 0 : index
    %c0_109 = arith.constant 0 : index
    %310 = vector.load %arg13[%c0_108, %c0_109] : memref<128x128xbf16, #tpu.memory_space<vmem>>, vector<128x128xbf16>
    %cst_110 = arith.constant dense<0.000000e+00> : vector<8x128xf32>
    %311 = tpu.matmul %309, %310, %cst_110 {dimension_numbers = #tpu.dot_dimension_numbers<[1], [0], [0], [1], [0, 0, 1, 1], [], []>} : vector<8x128xbf16>, vector<128x128xbf16>, vector<8x128xf32> -> vector<8x128xf32>
    %c0_111 = arith.constant 0 : index
    %c0_112 = arith.constant 0 : index
    %312 = vector.load %arg14[%c0_111, %c0_112] : memref<1x128xf32, #tpu.memory_space<vmem>>, vector<1x128xf32>
    %313 = vector.broadcast %312 : vector<1x128xf32> to vector<8x128xf32>
    %314 = arith.addf %311, %313 : vector<8x128xf32>
    %cst_113 = arith.constant 0.000000e+00 : f32
    %315 = vector.broadcast %cst_113 : f32 to vector<8x128xf32>
    %316 = arith.maximumf %314, %315 : vector<8x128xf32>
    %c0_114 = arith.constant 0 : index
    %c0_115 = arith.constant 0 : index
    %317 = vector.load %arg15[%c0_114, %c0_115] : memref<128x1xf32, #tpu.memory_space<vmem>>, vector<128x1xf32>
    %cst_116 = arith.constant dense<0.000000e+00> : vector<8x1xf32>
    %318 = tpu.matmul %316, %317, %cst_116 {dimension_numbers = #tpu.dot_dimension_numbers<[1], [0], [0], [1], [0, 0, 1, 1], [], []>} : vector<8x128xf32>, vector<128x1xf32>, vector<8x1xf32> -> vector<8x1xf32>
    %c0_117 = arith.constant 0 : index
    %c0_118 = arith.constant 0 : index
    %319 = vector.load %arg16[%c0_117, %c0_118] : memref<1x1xf32, #tpu.memory_space<vmem>>, vector<1x1xf32>
    %320 = vector.broadcast %319 : vector<1x1xf32> to vector<8x1xf32>
    %321 = arith.addf %318, %320 : vector<8x1xf32>
    %c0_119 = arith.constant 0 : index
    %c0_120 = arith.constant 0 : index
    %322 = vector.load %arg20[%c0_119, %c0_120] : memref<8x1xf32, #tpu.memory_space<vmem>>, vector<8x1xf32>
    tpu.vector_store %arg20[%c0_119, %c0_120], %321 {strides = array<i32>} : memref<8x1xf32, #tpu.memory_space<vmem>>, vector<8x1xf32>,
    %c0_i32_121 = arith.constant 0 : i32
    %323 = arith.truncf %300 : vector<8x128xf32> to vector<8x128xbf16>
    %c0_122 = arith.constant 0 : index
    %c0_123 = arith.constant 0 : index
    %324 = vector.load %arg8[%c0_122, %c0_123] : memref<128x384xbf16, #tpu.memory_space<vmem>>, vector<128x384xbf16>
    %cst_124 = arith.constant dense<0.000000e+00> : vector<8x384xf32>
    %325 = tpu.matmul %323, %324, %cst_124 {dimension_numbers = #tpu.dot_dimension_numbers<[1], [0], [0], [1], [0, 0, 1, 1], [], []>} : vector<8x128xbf16>, vector<128x384xbf16>, vector<8x384xf32> -> vector<8x384xf32>
    %326 = arith.index_cast %c0_i32_121 : i32 to index
    %c0_125 = arith.constant 0 : index
    %c0_126 = arith.constant 0 : index
    %327 = vector.load %arg22[%326, %c0_125, %c0_126] : memref<8x8x384xf32, #tpu.memory_space<vmem>>, vector<1x8x384xf32>
    %328 = vector.shape_cast %327 : vector<1x8x384xf32> to vector<8x384xf32>
    %329 = vector.extract_strided_slice %328 {offsets = [0, 0], sizes = [8, 128], strides = [1, 1]} : vector<8x384xf32> to vector<8x128xf32>
    %330 = vector.extract_strided_slice %325 {offsets = [0, 0], sizes = [8, 128], strides = [1, 1]} : vector<8x384xf32> to vector<8x128xf32>
    %331 = arith.addf %329, %330 : vector<8x128xf32>
    %332 = arith.negf %331 : vector<8x128xf32>
    %333 = math.exp %332 : vector<8x128xf32>
    %cst_127 = arith.constant 1.000000e+00 : f32
    %334 = vector.broadcast %cst_127 : f32 to vector<8x128xf32>
    %335 = arith.addf %334, %333 : vector<8x128xf32>
    %336 = arith.divf %334, %335 : vector<8x128xf32>
    %337 = vector.extract_strided_slice %328 {offsets = [0, 128], sizes = [8, 128], strides = [1, 1]} : vector<8x384xf32> to vector<8x128xf32>
    %338 = vector.extract_strided_slice %325 {offsets = [0, 128], sizes = [8, 128], strides = [1, 1]} : vector<8x384xf32> to vector<8x128xf32>
    %339 = arith.addf %337, %338 : vector<8x128xf32>
    %340 = arith.negf %339 : vector<8x128xf32>
    %341 = math.exp %340 : vector<8x128xf32>
    %cst_128 = arith.constant 1.000000e+00 : f32
    %342 = vector.broadcast %cst_128 : f32 to vector<8x128xf32>
    %343 = arith.addf %342, %341 : vector<8x128xf32>
    %344 = arith.divf %342, %343 : vector<8x128xf32>
    %345 = vector.extract_strided_slice %328 {offsets = [0, 256], sizes = [8, 128], strides = [1, 1]} : vector<8x384xf32> to vector<8x128xf32>
    %346 = vector.extract_strided_slice %325 {offsets = [0, 256], sizes = [8, 128], strides = [1, 1]} : vector<8x384xf32> to vector<8x128xf32>
    %c0_129 = arith.constant 0 : index
    %c0_130 = arith.constant 0 : index
    %347 = vector.load %arg10[%c0_129, %c0_130] : memref<1x128xf32, #tpu.memory_space<vmem>>, vector<1x128xf32>
    %348 = vector.broadcast %347 : vector<1x128xf32> to vector<8x128xf32>
    %349 = arith.addf %346, %348 : vector<8x128xf32>
    %350 = arith.mulf %336, %349 : vector<8x128xf32>
    %351 = arith.addf %345, %350 : vector<8x128xf32>
    %352 = math.tanh %351 : vector<8x128xf32>
    %cst_131 = arith.constant 1.000000e+00 : f32
    %353 = vector.broadcast %cst_131 : f32 to vector<8x128xf32>
    %354 = arith.subf %353, %344 : vector<8x128xf32>
    %355 = arith.mulf %354, %352 : vector<8x128xf32>
    %356 = arith.mulf %344, %300 : vector<8x128xf32>
    %357 = arith.addf %355, %356 : vector<8x128xf32>
    %358 = arith.index_cast %c0_i32_121 : i32 to index
    %c0_132 = arith.constant 0 : index
    %c0_133 = arith.constant 0 : index
    %359 = vector.load %arg18[%358, %c0_132, %c0_133] : memref<8x8x128xf32, #tpu.memory_space<vmem>>, vector<1x8x128xf32>
    %360 = vector.shape_cast %359 : vector<1x8x128xf32> to vector<8x128xf32>
    %361 = vector.shape_cast %357 : vector<8x128xf32> to vector<1x8x128xf32>
    tpu.vector_store %arg18[%358, %c0_132, %c0_133], %361 {strides = array<i32>} : memref<8x8x128xf32, #tpu.memory_space<vmem>>, vector<1x8x128xf32>,
    %c1_i32_134 = arith.constant 1 : i32
    %362 = arith.truncf %357 : vector<8x128xf32> to vector<8x128xbf16>
    %c0_135 = arith.constant 0 : index
    %c0_136 = arith.constant 0 : index
    %363 = vector.load %arg8[%c0_135, %c0_136] : memref<128x384xbf16, #tpu.memory_space<vmem>>, vector<128x384xbf16>
    %cst_137 = arith.constant dense<0.000000e+00> : vector<8x384xf32>
    %364 = tpu.matmul %362, %363, %cst_137 {dimension_numbers = #tpu.dot_dimension_numbers<[1], [0], [0], [1], [0, 0, 1, 1], [], []>} : vector<8x128xbf16>, vector<128x384xbf16>, vector<8x384xf32> -> vector<8x384xf32>
    %365 = arith.index_cast %c1_i32_134 : i32 to index
    %c0_138 = arith.constant 0 : index
    %c0_139 = arith.constant 0 : index
    %366 = vector.load %arg22[%365, %c0_138, %c0_139] : memref<8x8x384xf32, #tpu.memory_space<vmem>>, vector<1x8x384xf32>
    %367 = vector.shape_cast %366 : vector<1x8x384xf32> to vector<8x384xf32>
    %368 = vector.extract_strided_slice %367 {offsets = [0, 0], sizes = [8, 128], strides = [1, 1]} : vector<8x384xf32> to vector<8x128xf32>
    %369 = vector.extract_strided_slice %364 {offsets = [0, 0], sizes = [8, 128], strides = [1, 1]} : vector<8x384xf32> to vector<8x128xf32>
    %370 = arith.addf %368, %369 : vector<8x128xf32>
    %371 = arith.negf %370 : vector<8x128xf32>
    %372 = math.exp %371 : vector<8x128xf32>
    %cst_140 = arith.constant 1.000000e+00 : f32
    %373 = vector.broadcast %cst_140 : f32 to vector<8x128xf32>
    %374 = arith.addf %373, %372 : vector<8x128xf32>
    %375 = arith.divf %373, %374 : vector<8x128xf32>
    %376 = vector.extract_strided_slice %367 {offsets = [0, 128], sizes = [8, 128], strides = [1, 1]} : vector<8x384xf32> to vector<8x128xf32>
    %377 = vector.extract_strided_slice %364 {offsets = [0, 128], sizes = [8, 128], strides = [1, 1]} : vector<8x384xf32> to vector<8x128xf32>
    %378 = arith.addf %376, %377 : vector<8x128xf32>
    %379 = arith.negf %378 : vector<8x128xf32>
    %380 = math.exp %379 : vector<8x128xf32>
    %cst_141 = arith.constant 1.000000e+00 : f32
    %381 = vector.broadcast %cst_141 : f32 to vector<8x128xf32>
    %382 = arith.addf %381, %380 : vector<8x128xf32>
    %383 = arith.divf %381, %382 : vector<8x128xf32>
    %384 = vector.extract_strided_slice %367 {offsets = [0, 256], sizes = [8, 128], strides = [1, 1]} : vector<8x384xf32> to vector<8x128xf32>
    %385 = vector.extract_strided_slice %364 {offsets = [0, 256], sizes = [8, 128], strides = [1, 1]} : vector<8x384xf32> to vector<8x128xf32>
    %c0_142 = arith.constant 0 : index
    %c0_143 = arith.constant 0 : index
    %386 = vector.load %arg10[%c0_142, %c0_143] : memref<1x128xf32, #tpu.memory_space<vmem>>, vector<1x128xf32>
    %387 = vector.broadcast %386 : vector<1x128xf32> to vector<8x128xf32>
    %388 = arith.addf %385, %387 : vector<8x128xf32>
    %389 = arith.mulf %375, %388 : vector<8x128xf32>
    %390 = arith.addf %384, %389 : vector<8x128xf32>
    %391 = math.tanh %390 : vector<8x128xf32>
    %cst_144 = arith.constant 1.000000e+00 : f32
    %392 = vector.broadcast %cst_144 : f32 to vector<8x128xf32>
    %393 = arith.subf %392, %383 : vector<8x128xf32>
    %394 = arith.mulf %393, %391 : vector<8x128xf32>
    %395 = arith.mulf %383, %357 : vector<8x128xf32>
    %396 = arith.addf %394, %395 : vector<8x128xf32>
    %397 = arith.index_cast %c1_i32_134 : i32 to index
    %c0_145 = arith.constant 0 : index
    %c0_146 = arith.constant 0 : index
    %398 = vector.load %arg18[%397, %c0_145, %c0_146] : memref<8x8x128xf32, #tpu.memory_space<vmem>>, vector<1x8x128xf32>
    %399 = vector.shape_cast %398 : vector<1x8x128xf32> to vector<8x128xf32>
    %400 = vector.shape_cast %396 : vector<8x128xf32> to vector<1x8x128xf32>
    tpu.vector_store %arg18[%397, %c0_145, %c0_146], %400 {strides = array<i32>} : memref<8x8x128xf32, #tpu.memory_space<vmem>>, vector<1x8x128xf32>,
    %c2_i32_147 = arith.constant 2 : i32
    %401 = arith.truncf %396 : vector<8x128xf32> to vector<8x128xbf16>
    %c0_148 = arith.constant 0 : index
    %c0_149 = arith.constant 0 : index
    %402 = vector.load %arg8[%c0_148, %c0_149] : memref<128x384xbf16, #tpu.memory_space<vmem>>, vector<128x384xbf16>
    %cst_150 = arith.constant dense<0.000000e+00> : vector<8x384xf32>
    %403 = tpu.matmul %401, %402, %cst_150 {dimension_numbers = #tpu.dot_dimension_numbers<[1], [0], [0], [1], [0, 0, 1, 1], [], []>} : vector<8x128xbf16>, vector<128x384xbf16>, vector<8x384xf32> -> vector<8x384xf32>
    %404 = arith.index_cast %c2_i32_147 : i32 to index
    %c0_151 = arith.constant 0 : index
    %c0_152 = arith.constant 0 : index
    %405 = vector.load %arg22[%404, %c0_151, %c0_152] : memref<8x8x384xf32, #tpu.memory_space<vmem>>, vector<1x8x384xf32>
    %406 = vector.shape_cast %405 : vector<1x8x384xf32> to vector<8x384xf32>
    %407 = vector.extract_strided_slice %406 {offsets = [0, 0], sizes = [8, 128], strides = [1, 1]} : vector<8x384xf32> to vector<8x128xf32>
    %408 = vector.extract_strided_slice %403 {offsets = [0, 0], sizes = [8, 128], strides = [1, 1]} : vector<8x384xf32> to vector<8x128xf32>
    %409 = arith.addf %407, %408 : vector<8x128xf32>
    %410 = arith.negf %409 : vector<8x128xf32>
    %411 = math.exp %410 : vector<8x128xf32>
    %cst_153 = arith.constant 1.000000e+00 : f32
    %412 = vector.broadcast %cst_153 : f32 to vector<8x128xf32>
    %413 = arith.addf %412, %411 : vector<8x128xf32>
    %414 = arith.divf %412, %413 : vector<8x128xf32>
    %415 = vector.extract_strided_slice %406 {offsets = [0, 128], sizes = [8, 128], strides = [1, 1]} : vector<8x384xf32> to vector<8x128xf32>
    %416 = vector.extract_strided_slice %403 {offsets = [0, 128], sizes = [8, 128], strides = [1, 1]} : vector<8x384xf32> to vector<8x128xf32>
    %417 = arith.addf %415, %416 : vector<8x128xf32>
    %418 = arith.negf %417 : vector<8x128xf32>
    %419 = math.exp %418 : vector<8x128xf32>
    %cst_154 = arith.constant 1.000000e+00 : f32
    %420 = vector.broadcast %cst_154 : f32 to vector<8x128xf32>
    %421 = arith.addf %420, %419 : vector<8x128xf32>
    %422 = arith.divf %420, %421 : vector<8x128xf32>
    %423 = vector.extract_strided_slice %406 {offsets = [0, 256], sizes = [8, 128], strides = [1, 1]} : vector<8x384xf32> to vector<8x128xf32>
    %424 = vector.extract_strided_slice %403 {offsets = [0, 256], sizes = [8, 128], strides = [1, 1]} : vector<8x384xf32> to vector<8x128xf32>
    %c0_155 = arith.constant 0 : index
    %c0_156 = arith.constant 0 : index
    %425 = vector.load %arg10[%c0_155, %c0_156] : memref<1x128xf32, #tpu.memory_space<vmem>>, vector<1x128xf32>
    %426 = vector.broadcast %425 : vector<1x128xf32> to vector<8x128xf32>
    %427 = arith.addf %424, %426 : vector<8x128xf32>
    %428 = arith.mulf %414, %427 : vector<8x128xf32>
    %429 = arith.addf %423, %428 : vector<8x128xf32>
    %430 = math.tanh %429 : vector<8x128xf32>
    %cst_157 = arith.constant 1.000000e+00 : f32
    %431 = vector.broadcast %cst_157 : f32 to vector<8x128xf32>
    %432 = arith.subf %431, %422 : vector<8x128xf32>
    %433 = arith.mulf %432, %430 : vector<8x128xf32>
    %434 = arith.mulf %422, %396 : vector<8x128xf32>
    %435 = arith.addf %433, %434 : vector<8x128xf32>
    %436 = arith.index_cast %c2_i32_147 : i32 to index
    %c0_158 = arith.constant 0 : index
    %c0_159 = arith.constant 0 : index
    %437 = vector.load %arg18[%436, %c0_158, %c0_159] : memref<8x8x128xf32, #tpu.memory_space<vmem>>, vector<1x8x128xf32>
    %438 = vector.shape_cast %437 : vector<1x8x128xf32> to vector<8x128xf32>
    %439 = vector.shape_cast %435 : vector<8x128xf32> to vector<1x8x128xf32>
    tpu.vector_store %arg18[%436, %c0_158, %c0_159], %439 {strides = array<i32>} : memref<8x8x128xf32, #tpu.memory_space<vmem>>, vector<1x8x128xf32>,
    %c3_i32_160 = arith.constant 3 : i32
    %440 = arith.truncf %435 : vector<8x128xf32> to vector<8x128xbf16>
    %c0_161 = arith.constant 0 : index
    %c0_162 = arith.constant 0 : index
    %441 = vector.load %arg8[%c0_161, %c0_162] : memref<128x384xbf16, #tpu.memory_space<vmem>>, vector<128x384xbf16>
    %cst_163 = arith.constant dense<0.000000e+00> : vector<8x384xf32>
    %442 = tpu.matmul %440, %441, %cst_163 {dimension_numbers = #tpu.dot_dimension_numbers<[1], [0], [0], [1], [0, 0, 1, 1], [], []>} : vector<8x128xbf16>, vector<128x384xbf16>, vector<8x384xf32> -> vector<8x384xf32>
    %443 = arith.index_cast %c3_i32_160 : i32 to index
    %c0_164 = arith.constant 0 : index
    %c0_165 = arith.constant 0 : index
    %444 = vector.load %arg22[%443, %c0_164, %c0_165] : memref<8x8x384xf32, #tpu.memory_space<vmem>>, vector<1x8x384xf32>
    %445 = vector.shape_cast %444 : vector<1x8x384xf32> to vector<8x384xf32>
    %446 = vector.extract_strided_slice %445 {offsets = [0, 0], sizes = [8, 128], strides = [1, 1]} : vector<8x384xf32> to vector<8x128xf32>
    %447 = vector.extract_strided_slice %442 {offsets = [0, 0], sizes = [8, 128], strides = [1, 1]} : vector<8x384xf32> to vector<8x128xf32>
    %448 = arith.addf %446, %447 : vector<8x128xf32>
    %449 = arith.negf %448 : vector<8x128xf32>
    %450 = math.exp %449 : vector<8x128xf32>
    %cst_166 = arith.constant 1.000000e+00 : f32
    %451 = vector.broadcast %cst_166 : f32 to vector<8x128xf32>
    %452 = arith.addf %451, %450 : vector<8x128xf32>
    %453 = arith.divf %451, %452 : vector<8x128xf32>
    %454 = vector.extract_strided_slice %445 {offsets = [0, 128], sizes = [8, 128], strides = [1, 1]} : vector<8x384xf32> to vector<8x128xf32>
    %455 = vector.extract_strided_slice %442 {offsets = [0, 128], sizes = [8, 128], strides = [1, 1]} : vector<8x384xf32> to vector<8x128xf32>
    %456 = arith.addf %454, %455 : vector<8x128xf32>
    %457 = arith.negf %456 : vector<8x128xf32>
    %458 = math.exp %457 : vector<8x128xf32>
    %cst_167 = arith.constant 1.000000e+00 : f32
    %459 = vector.broadcast %cst_167 : f32 to vector<8x128xf32>
    %460 = arith.addf %459, %458 : vector<8x128xf32>
    %461 = arith.divf %459, %460 : vector<8x128xf32>
    %462 = vector.extract_strided_slice %445 {offsets = [0, 256], sizes = [8, 128], strides = [1, 1]} : vector<8x384xf32> to vector<8x128xf32>
    %463 = vector.extract_strided_slice %442 {offsets = [0, 256], sizes = [8, 128], strides = [1, 1]} : vector<8x384xf32> to vector<8x128xf32>
    %c0_168 = arith.constant 0 : index
    %c0_169 = arith.constant 0 : index
    %464 = vector.load %arg10[%c0_168, %c0_169] : memref<1x128xf32, #tpu.memory_space<vmem>>, vector<1x128xf32>
    %465 = vector.broadcast %464 : vector<1x128xf32> to vector<8x128xf32>
    %466 = arith.addf %463, %465 : vector<8x128xf32>
    %467 = arith.mulf %453, %466 : vector<8x128xf32>
    %468 = arith.addf %462, %467 : vector<8x128xf32>
    %469 = math.tanh %468 : vector<8x128xf32>
    %cst_170 = arith.constant 1.000000e+00 : f32
    %470 = vector.broadcast %cst_170 : f32 to vector<8x128xf32>
    %471 = arith.subf %470, %461 : vector<8x128xf32>
    %472 = arith.mulf %471, %469 : vector<8x128xf32>
    %473 = arith.mulf %461, %435 : vector<8x128xf32>
    %474 = arith.addf %472, %473 : vector<8x128xf32>
    %475 = arith.index_cast %c3_i32_160 : i32 to index
    %c0_171 = arith.constant 0 : index
    %c0_172 = arith.constant 0 : index
    %476 = vector.load %arg18[%475, %c0_171, %c0_172] : memref<8x8x128xf32, #tpu.memory_space<vmem>>, vector<1x8x128xf32>
    %477 = vector.shape_cast %476 : vector<1x8x128xf32> to vector<8x128xf32>
    %478 = vector.shape_cast %474 : vector<8x128xf32> to vector<1x8x128xf32>
    tpu.vector_store %arg18[%475, %c0_171, %c0_172], %478 {strides = array<i32>} : memref<8x8x128xf32, #tpu.memory_space<vmem>>, vector<1x8x128xf32>,
    %c4_i32_173 = arith.constant 4 : i32
    %479 = arith.truncf %474 : vector<8x128xf32> to vector<8x128xbf16>
    %c0_174 = arith.constant 0 : index
    %c0_175 = arith.constant 0 : index
    %480 = vector.load %arg8[%c0_174, %c0_175] : memref<128x384xbf16, #tpu.memory_space<vmem>>, vector<128x384xbf16>
    %cst_176 = arith.constant dense<0.000000e+00> : vector<8x384xf32>
    %481 = tpu.matmul %479, %480, %cst_176 {dimension_numbers = #tpu.dot_dimension_numbers<[1], [0], [0], [1], [0, 0, 1, 1], [], []>} : vector<8x128xbf16>, vector<128x384xbf16>, vector<8x384xf32> -> vector<8x384xf32>
    %482 = arith.index_cast %c4_i32_173 : i32 to index
    %c0_177 = arith.constant 0 : index
    %c0_178 = arith.constant 0 : index
    %483 = vector.load %arg22[%482, %c0_177, %c0_178] : memref<8x8x384xf32, #tpu.memory_space<vmem>>, vector<1x8x384xf32>
    %484 = vector.shape_cast %483 : vector<1x8x384xf32> to vector<8x384xf32>
    %485 = vector.extract_strided_slice %484 {offsets = [0, 0], sizes = [8, 128], strides = [1, 1]} : vector<8x384xf32> to vector<8x128xf32>
    %486 = vector.extract_strided_slice %481 {offsets = [0, 0], sizes = [8, 128], strides = [1, 1]} : vector<8x384xf32> to vector<8x128xf32>
    %487 = arith.addf %485, %486 : vector<8x128xf32>
    %488 = arith.negf %487 : vector<8x128xf32>
    %489 = math.exp %488 : vector<8x128xf32>
    %cst_179 = arith.constant 1.000000e+00 : f32
    %490 = vector.broadcast %cst_179 : f32 to vector<8x128xf32>
    %491 = arith.addf %490, %489 : vector<8x128xf32>
    %492 = arith.divf %490, %491 : vector<8x128xf32>
    %493 = vector.extract_strided_slice %484 {offsets = [0, 128], sizes = [8, 128], strides = [1, 1]} : vector<8x384xf32> to vector<8x128xf32>
    %494 = vector.extract_strided_slice %481 {offsets = [0, 128], sizes = [8, 128], strides = [1, 1]} : vector<8x384xf32> to vector<8x128xf32>
    %495 = arith.addf %493, %494 : vector<8x128xf32>
    %496 = arith.negf %495 : vector<8x128xf32>
    %497 = math.exp %496 : vector<8x128xf32>
    %cst_180 = arith.constant 1.000000e+00 : f32
    %498 = vector.broadcast %cst_180 : f32 to vector<8x128xf32>
    %499 = arith.addf %498, %497 : vector<8x128xf32>
    %500 = arith.divf %498, %499 : vector<8x128xf32>
    %501 = vector.extract_strided_slice %484 {offsets = [0, 256], sizes = [8, 128], strides = [1, 1]} : vector<8x384xf32> to vector<8x128xf32>
    %502 = vector.extract_strided_slice %481 {offsets = [0, 256], sizes = [8, 128], strides = [1, 1]} : vector<8x384xf32> to vector<8x128xf32>
    %c0_181 = arith.constant 0 : index
    %c0_182 = arith.constant 0 : index
    %503 = vector.load %arg10[%c0_181, %c0_182] : memref<1x128xf32, #tpu.memory_space<vmem>>, vector<1x128xf32>
    %504 = vector.broadcast %503 : vector<1x128xf32> to vector<8x128xf32>
    %505 = arith.addf %502, %504 : vector<8x128xf32>
    %506 = arith.mulf %492, %505 : vector<8x128xf32>
    %507 = arith.addf %501, %506 : vector<8x128xf32>
    %508 = math.tanh %507 : vector<8x128xf32>
    %cst_183 = arith.constant 1.000000e+00 : f32
    %509 = vector.broadcast %cst_183 : f32 to vector<8x128xf32>
    %510 = arith.subf %509, %500 : vector<8x128xf32>
    %511 = arith.mulf %510, %508 : vector<8x128xf32>
    %512 = arith.mulf %500, %474 : vector<8x128xf32>
    %513 = arith.addf %511, %512 : vector<8x128xf32>
    %514 = arith.index_cast %c4_i32_173 : i32 to index
    %c0_184 = arith.constant 0 : index
    %c0_185 = arith.constant 0 : index
    %515 = vector.load %arg18[%514, %c0_184, %c0_185] : memref<8x8x128xf32, #tpu.memory_space<vmem>>, vector<1x8x128xf32>
    %516 = vector.shape_cast %515 : vector<1x8x128xf32> to vector<8x128xf32>
    %517 = vector.shape_cast %513 : vector<8x128xf32> to vector<1x8x128xf32>
    tpu.vector_store %arg18[%514, %c0_184, %c0_185], %517 {strides = array<i32>} : memref<8x8x128xf32, #tpu.memory_space<vmem>>, vector<1x8x128xf32>,
    %c5_i32_186 = arith.constant 5 : i32
    %518 = arith.truncf %513 : vector<8x128xf32> to vector<8x128xbf16>
    %c0_187 = arith.constant 0 : index
    %c0_188 = arith.constant 0 : index
    %519 = vector.load %arg8[%c0_187, %c0_188] : memref<128x384xbf16, #tpu.memory_space<vmem>>, vector<128x384xbf16>
    %cst_189 = arith.constant dense<0.000000e+00> : vector<8x384xf32>
    %520 = tpu.matmul %518, %519, %cst_189 {dimension_numbers = #tpu.dot_dimension_numbers<[1], [0], [0], [1], [0, 0, 1, 1], [], []>} : vector<8x128xbf16>, vector<128x384xbf16>, vector<8x384xf32> -> vector<8x384xf32>
    %521 = arith.index_cast %c5_i32_186 : i32 to index
    %c0_190 = arith.constant 0 : index
    %c0_191 = arith.constant 0 : index
    %522 = vector.load %arg22[%521, %c0_190, %c0_191] : memref<8x8x384xf32, #tpu.memory_space<vmem>>, vector<1x8x384xf32>
    %523 = vector.shape_cast %522 : vector<1x8x384xf32> to vector<8x384xf32>
    %524 = vector.extract_strided_slice %523 {offsets = [0, 0], sizes = [8, 128], strides = [1, 1]} : vector<8x384xf32> to vector<8x128xf32>
    %525 = vector.extract_strided_slice %520 {offsets = [0, 0], sizes = [8, 128], strides = [1, 1]} : vector<8x384xf32> to vector<8x128xf32>
    %526 = arith.addf %524, %525 : vector<8x128xf32>
    %527 = arith.negf %526 : vector<8x128xf32>
    %528 = math.exp %527 : vector<8x128xf32>
    %cst_192 = arith.constant 1.000000e+00 : f32
    %529 = vector.broadcast %cst_192 : f32 to vector<8x128xf32>
    %530 = arith.addf %529, %528 : vector<8x128xf32>
    %531 = arith.divf %529, %530 : vector<8x128xf32>
    %532 = vector.extract_strided_slice %523 {offsets = [0, 128], sizes = [8, 128], strides = [1, 1]} : vector<8x384xf32> to vector<8x128xf32>
    %533 = vector.extract_strided_slice %520 {offsets = [0, 128], sizes = [8, 128], strides = [1, 1]} : vector<8x384xf32> to vector<8x128xf32>
    %534 = arith.addf %532, %533 : vector<8x128xf32>
    %535 = arith.negf %534 : vector<8x128xf32>
    %536 = math.exp %535 : vector<8x128xf32>
    %cst_193 = arith.constant 1.000000e+00 : f32
    %537 = vector.broadcast %cst_193 : f32 to vector<8x128xf32>
    %538 = arith.addf %537, %536 : vector<8x128xf32>
    %539 = arith.divf %537, %538 : vector<8x128xf32>
    %540 = vector.extract_strided_slice %523 {offsets = [0, 256], sizes = [8, 128], strides = [1, 1]} : vector<8x384xf32> to vector<8x128xf32>
    %541 = vector.extract_strided_slice %520 {offsets = [0, 256], sizes = [8, 128], strides = [1, 1]} : vector<8x384xf32> to vector<8x128xf32>
    %c0_194 = arith.constant 0 : index
    %c0_195 = arith.constant 0 : index
    %542 = vector.load %arg10[%c0_194, %c0_195] : memref<1x128xf32, #tpu.memory_space<vmem>>, vector<1x128xf32>
    %543 = vector.broadcast %542 : vector<1x128xf32> to vector<8x128xf32>
    %544 = arith.addf %541, %543 : vector<8x128xf32>
    %545 = arith.mulf %531, %544 : vector<8x128xf32>
    %546 = arith.addf %540, %545 : vector<8x128xf32>
    %547 = math.tanh %546 : vector<8x128xf32>
    %cst_196 = arith.constant 1.000000e+00 : f32
    %548 = vector.broadcast %cst_196 : f32 to vector<8x128xf32>
    %549 = arith.subf %548, %539 : vector<8x128xf32>
    %550 = arith.mulf %549, %547 : vector<8x128xf32>
    %551 = arith.mulf %539, %513 : vector<8x128xf32>
    %552 = arith.addf %550, %551 : vector<8x128xf32>
    %553 = arith.index_cast %c5_i32_186 : i32 to index
    %c0_197 = arith.constant 0 : index
    %c0_198 = arith.constant 0 : index
    %554 = vector.load %arg18[%553, %c0_197, %c0_198] : memref<8x8x128xf32, #tpu.memory_space<vmem>>, vector<1x8x128xf32>
    %555 = vector.shape_cast %554 : vector<1x8x128xf32> to vector<8x128xf32>
    %556 = vector.shape_cast %552 : vector<8x128xf32> to vector<1x8x128xf32>
    tpu.vector_store %arg18[%553, %c0_197, %c0_198], %556 {strides = array<i32>} : memref<8x8x128xf32, #tpu.memory_space<vmem>>, vector<1x8x128xf32>,
    %c6_i32_199 = arith.constant 6 : i32
    %557 = arith.truncf %552 : vector<8x128xf32> to vector<8x128xbf16>
    %c0_200 = arith.constant 0 : index
    %c0_201 = arith.constant 0 : index
    %558 = vector.load %arg8[%c0_200, %c0_201] : memref<128x384xbf16, #tpu.memory_space<vmem>>, vector<128x384xbf16>
    %cst_202 = arith.constant dense<0.000000e+00> : vector<8x384xf32>
    %559 = tpu.matmul %557, %558, %cst_202 {dimension_numbers = #tpu.dot_dimension_numbers<[1], [0], [0], [1], [0, 0, 1, 1], [], []>} : vector<8x128xbf16>, vector<128x384xbf16>, vector<8x384xf32> -> vector<8x384xf32>
    %560 = arith.index_cast %c6_i32_199 : i32 to index
    %c0_203 = arith.constant 0 : index
    %c0_204 = arith.constant 0 : index
    %561 = vector.load %arg22[%560, %c0_203, %c0_204] : memref<8x8x384xf32, #tpu.memory_space<vmem>>, vector<1x8x384xf32>
    %562 = vector.shape_cast %561 : vector<1x8x384xf32> to vector<8x384xf32>
    %563 = vector.extract_strided_slice %562 {offsets = [0, 0], sizes = [8, 128], strides = [1, 1]} : vector<8x384xf32> to vector<8x128xf32>
    %564 = vector.extract_strided_slice %559 {offsets = [0, 0], sizes = [8, 128], strides = [1, 1]} : vector<8x384xf32> to vector<8x128xf32>
    %565 = arith.addf %563, %564 : vector<8x128xf32>
    %566 = arith.negf %565 : vector<8x128xf32>
    %567 = math.exp %566 : vector<8x128xf32>
    %cst_205 = arith.constant 1.000000e+00 : f32
    %568 = vector.broadcast %cst_205 : f32 to vector<8x128xf32>
    %569 = arith.addf %568, %567 : vector<8x128xf32>
    %570 = arith.divf %568, %569 : vector<8x128xf32>
    %571 = vector.extract_strided_slice %562 {offsets = [0, 128], sizes = [8, 128], strides = [1, 1]} : vector<8x384xf32> to vector<8x128xf32>
    %572 = vector.extract_strided_slice %559 {offsets = [0, 128], sizes = [8, 128], strides = [1, 1]} : vector<8x384xf32> to vector<8x128xf32>
    %573 = arith.addf %571, %572 : vector<8x128xf32>
    %574 = arith.negf %573 : vector<8x128xf32>
    %575 = math.exp %574 : vector<8x128xf32>
    %cst_206 = arith.constant 1.000000e+00 : f32
    %576 = vector.broadcast %cst_206 : f32 to vector<8x128xf32>
    %577 = arith.addf %576, %575 : vector<8x128xf32>
    %578 = arith.divf %576, %577 : vector<8x128xf32>
    %579 = vector.extract_strided_slice %562 {offsets = [0, 256], sizes = [8, 128], strides = [1, 1]} : vector<8x384xf32> to vector<8x128xf32>
    %580 = vector.extract_strided_slice %559 {offsets = [0, 256], sizes = [8, 128], strides = [1, 1]} : vector<8x384xf32> to vector<8x128xf32>
    %c0_207 = arith.constant 0 : index
    %c0_208 = arith.constant 0 : index
    %581 = vector.load %arg10[%c0_207, %c0_208] : memref<1x128xf32, #tpu.memory_space<vmem>>, vector<1x128xf32>
    %582 = vector.broadcast %581 : vector<1x128xf32> to vector<8x128xf32>
    %583 = arith.addf %580, %582 : vector<8x128xf32>
    %584 = arith.mulf %570, %583 : vector<8x128xf32>
    %585 = arith.addf %579, %584 : vector<8x128xf32>
    %586 = math.tanh %585 : vector<8x128xf32>
    %cst_209 = arith.constant 1.000000e+00 : f32
    %587 = vector.broadcast %cst_209 : f32 to vector<8x128xf32>
    %588 = arith.subf %587, %578 : vector<8x128xf32>
    %589 = arith.mulf %588, %586 : vector<8x128xf32>
    %590 = arith.mulf %578, %552 : vector<8x128xf32>
    %591 = arith.addf %589, %590 : vector<8x128xf32>
    %592 = arith.index_cast %c6_i32_199 : i32 to index
    %c0_210 = arith.constant 0 : index
    %c0_211 = arith.constant 0 : index
    %593 = vector.load %arg18[%592, %c0_210, %c0_211] : memref<8x8x128xf32, #tpu.memory_space<vmem>>, vector<1x8x128xf32>
    %594 = vector.shape_cast %593 : vector<1x8x128xf32> to vector<8x128xf32>
    %595 = vector.shape_cast %591 : vector<8x128xf32> to vector<1x8x128xf32>
    tpu.vector_store %arg18[%592, %c0_210, %c0_211], %595 {strides = array<i32>} : memref<8x8x128xf32, #tpu.memory_space<vmem>>, vector<1x8x128xf32>,
    %c7_i32_212 = arith.constant 7 : i32
    %596 = arith.truncf %591 : vector<8x128xf32> to vector<8x128xbf16>
    %c0_213 = arith.constant 0 : index
    %c0_214 = arith.constant 0 : index
    %597 = vector.load %arg8[%c0_213, %c0_214] : memref<128x384xbf16, #tpu.memory_space<vmem>>, vector<128x384xbf16>
    %cst_215 = arith.constant dense<0.000000e+00> : vector<8x384xf32>
    %598 = tpu.matmul %596, %597, %cst_215 {dimension_numbers = #tpu.dot_dimension_numbers<[1], [0], [0], [1], [0, 0, 1, 1], [], []>} : vector<8x128xbf16>, vector<128x384xbf16>, vector<8x384xf32> -> vector<8x384xf32>
    %599 = arith.index_cast %c7_i32_212 : i32 to index
    %c0_216 = arith.constant 0 : index
    %c0_217 = arith.constant 0 : index
    %600 = vector.load %arg22[%599, %c0_216, %c0_217] : memref<8x8x384xf32, #tpu.memory_space<vmem>>, vector<1x8x384xf32>
    %601 = vector.shape_cast %600 : vector<1x8x384xf32> to vector<8x384xf32>
    %602 = vector.extract_strided_slice %601 {offsets = [0, 0], sizes = [8, 128], strides = [1, 1]} : vector<8x384xf32> to vector<8x128xf32>
    %603 = vector.extract_strided_slice %598 {offsets = [0, 0], sizes = [8, 128], strides = [1, 1]} : vector<8x384xf32> to vector<8x128xf32>
    %604 = arith.addf %602, %603 : vector<8x128xf32>
    %605 = arith.negf %604 : vector<8x128xf32>
    %606 = math.exp %605 : vector<8x128xf32>
    %cst_218 = arith.constant 1.000000e+00 : f32
    %607 = vector.broadcast %cst_218 : f32 to vector<8x128xf32>
    %608 = arith.addf %607, %606 : vector<8x128xf32>
    %609 = arith.divf %607, %608 : vector<8x128xf32>
    %610 = vector.extract_strided_slice %601 {offsets = [0, 128], sizes = [8, 128], strides = [1, 1]} : vector<8x384xf32> to vector<8x128xf32>
    %611 = vector.extract_strided_slice %598 {offsets = [0, 128], sizes = [8, 128], strides = [1, 1]} : vector<8x384xf32> to vector<8x128xf32>
    %612 = arith.addf %610, %611 : vector<8x128xf32>
    %613 = arith.negf %612 : vector<8x128xf32>
    %614 = math.exp %613 : vector<8x128xf32>
    %cst_219 = arith.constant 1.000000e+00 : f32
    %615 = vector.broadcast %cst_219 : f32 to vector<8x128xf32>
    %616 = arith.addf %615, %614 : vector<8x128xf32>
    %617 = arith.divf %615, %616 : vector<8x128xf32>
    %618 = vector.extract_strided_slice %601 {offsets = [0, 256], sizes = [8, 128], strides = [1, 1]} : vector<8x384xf32> to vector<8x128xf32>
    %619 = vector.extract_strided_slice %598 {offsets = [0, 256], sizes = [8, 128], strides = [1, 1]} : vector<8x384xf32> to vector<8x128xf32>
    %c0_220 = arith.constant 0 : index
    %c0_221 = arith.constant 0 : index
    %620 = vector.load %arg10[%c0_220, %c0_221] : memref<1x128xf32, #tpu.memory_space<vmem>>, vector<1x128xf32>
    %621 = vector.broadcast %620 : vector<1x128xf32> to vector<8x128xf32>
    %622 = arith.addf %619, %621 : vector<8x128xf32>
    %623 = arith.mulf %609, %622 : vector<8x128xf32>
    %624 = arith.addf %618, %623 : vector<8x128xf32>
    %625 = math.tanh %624 : vector<8x128xf32>
    %cst_222 = arith.constant 1.000000e+00 : f32
    %626 = vector.broadcast %cst_222 : f32 to vector<8x128xf32>
    %627 = arith.subf %626, %617 : vector<8x128xf32>
    %628 = arith.mulf %627, %625 : vector<8x128xf32>
    %629 = arith.mulf %617, %591 : vector<8x128xf32>
    %630 = arith.addf %628, %629 : vector<8x128xf32>
    %631 = arith.index_cast %c7_i32_212 : i32 to index
    %c0_223 = arith.constant 0 : index
    %c0_224 = arith.constant 0 : index
    %632 = vector.load %arg18[%631, %c0_223, %c0_224] : memref<8x8x128xf32, #tpu.memory_space<vmem>>, vector<1x8x128xf32>
    %633 = vector.shape_cast %632 : vector<1x8x128xf32> to vector<8x128xf32>
    %634 = vector.shape_cast %630 : vector<8x128xf32> to vector<1x8x128xf32>
    tpu.vector_store %arg18[%631, %c0_223, %c0_224], %634 {strides = array<i32>} : memref<8x8x128xf32, #tpu.memory_space<vmem>>, vector<1x8x128xf32>,
    %c8_i32_225 = arith.constant 8 : i32
    %c0_226 = arith.constant 0 : index
    %c0_227 = arith.constant 0 : index
    %635 = vector.load %arg19[%c0_226, %c0_227] : memref<8x128xf32, #tpu.memory_space<vmem>>, vector<8x128xf32>
    tpu.vector_store %arg19[%c0_226, %c0_227], %630 {strides = array<i32>} : memref<8x128xf32, #tpu.memory_space<vmem>>, vector<8x128xf32>,
    return
  }
  func.func @transform_0(%arg0: i32) -> (i32, i32, i32) {
    %c0_i32 = arith.constant 0 : i32
    %c0_i32_0 = arith.constant 0 : i32
    %c0_i32_1 = arith.constant 0 : i32
    return %c0_i32, %arg0, %c0_i32_0 : i32, i32, i32
  }
  func.func @transform_1(%arg0: i32) -> (i32, i32, i32) {
    %c0_i32 = arith.constant 0 : i32
    %c0_i32_0 = arith.constant 0 : i32
    %c0_i32_1 = arith.constant 0 : i32
    return %c0_i32, %arg0, %c0_i32_0 : i32, i32, i32
  }
  func.func @transform_2(%arg0: i32) -> (i32, i32) {
    %c0_i32 = arith.constant 0 : i32
    %c0_i32_0 = arith.constant 0 : i32
    %c0_i32_1 = arith.constant 0 : i32
    return %c0_i32, %c0_i32_0 : i32, i32
  }
  func.func @transform_3(%arg0: i32) -> (i32, i32) {
    %c0_i32 = arith.constant 0 : i32
    %c0_i32_0 = arith.constant 0 : i32
    %c0_i32_1 = arith.constant 0 : i32
    return %c0_i32, %c0_i32_0 : i32, i32
  }
  func.func @transform_4(%arg0: i32) -> (i32, i32) {
    %c0_i32 = arith.constant 0 : i32
    %c0_i32_0 = arith.constant 0 : i32
    %c0_i32_1 = arith.constant 0 : i32
    return %c0_i32, %c0_i32_0 : i32, i32
  }
  func.func @transform_5(%arg0: i32) -> (i32, i32) {
    %c0_i32 = arith.constant 0 : i32
    %c0_i32_0 = arith.constant 0 : i32
    %c0_i32_1 = arith.constant 0 : i32
    return %c0_i32, %c0_i32_0 : i32, i32
  }
  func.func @transform_6(%arg0: i32) -> (i32, i32) {
    %c0_i32 = arith.constant 0 : i32
    %c0_i32_0 = arith.constant 0 : i32
    %c0_i32_1 = arith.constant 0 : i32
    return %c0_i32, %c0_i32_0 : i32, i32
  }
  func.func @transform_7(%arg0: i32) -> (i32, i32) {
    %c0_i32 = arith.constant 0 : i32
    %c0_i32_0 = arith.constant 0 : i32
    %c0_i32_1 = arith.constant 0 : i32
    return %c0_i32, %c0_i32_0 : i32, i32
  }
  func.func @transform_8(%arg0: i32) -> (i32, i32) {
    %c0_i32 = arith.constant 0 : i32
    %c0_i32_0 = arith.constant 0 : i32
    %c0_i32_1 = arith.constant 0 : i32
    return %c0_i32, %c0_i32_0 : i32, i32
  }
  func.func @transform_9(%arg0: i32) -> (i32, i32) {
    %c0_i32 = arith.constant 0 : i32
    %c0_i32_0 = arith.constant 0 : i32
    %c0_i32_1 = arith.constant 0 : i32
    return %c0_i32, %c0_i32_0 : i32, i32
  }
  func.func @transform_10(%arg0: i32) -> (i32, i32) {
    %c0_i32 = arith.constant 0 : i32
    %c0_i32_0 = arith.constant 0 : i32
    %c0_i32_1 = arith.constant 0 : i32
    return %c0_i32, %c0_i32_0 : i32, i32
  }
  func.func @transform_11(%arg0: i32) -> (i32, i32) {
    %c0_i32 = arith.constant 0 : i32
    %c0_i32_0 = arith.constant 0 : i32
    %c0_i32_1 = arith.constant 0 : i32
    return %c0_i32, %c0_i32_0 : i32, i32
  }
  func.func @transform_12(%arg0: i32) -> (i32, i32) {
    %c0_i32 = arith.constant 0 : i32
    %c0_i32_0 = arith.constant 0 : i32
    %c0_i32_1 = arith.constant 0 : i32
    return %c0_i32, %c0_i32_0 : i32, i32
  }
  func.func @transform_13(%arg0: i32) -> (i32, i32) {
    %c0_i32 = arith.constant 0 : i32
    %c0_i32_0 = arith.constant 0 : i32
    %c0_i32_1 = arith.constant 0 : i32
    return %c0_i32, %c0_i32_0 : i32, i32
  }
  func.func @transform_14(%arg0: i32) -> (i32, i32) {
    %c0_i32 = arith.constant 0 : i32
    %c0_i32_0 = arith.constant 0 : i32
    %c0_i32_1 = arith.constant 0 : i32
    return %c0_i32, %c0_i32_0 : i32, i32
  }
  func.func @transform_15(%arg0: i32) -> (i32, i32) {
    %c0_i32 = arith.constant 0 : i32
    %c0_i32_0 = arith.constant 0 : i32
    %c0_i32_1 = arith.constant 0 : i32
    return %c0_i32, %c0_i32_0 : i32, i32
  }
  func.func @transform_16(%arg0: i32) -> (i32, i32) {
    %c0_i32 = arith.constant 0 : i32
    %c0_i32_0 = arith.constant 0 : i32
    return %arg0, %c0_i32 : i32, i32
  }
  func.func @transform_17(%arg0: i32) -> (i32, i32, i32) {
    %c0_i32 = arith.constant 0 : i32
    %c0_i32_0 = arith.constant 0 : i32
    %c0_i32_1 = arith.constant 0 : i32
    return %c0_i32, %arg0, %c0_i32_0 : i32, i32, i32
  }
  func.func @transform_18(%arg0: i32) -> (i32, i32) {
    %c0_i32 = arith.constant 0 : i32
    %c0_i32_0 = arith.constant 0 : i32
    return %arg0, %c0_i32 : i32, i32
  }
  func.func @transform_19(%arg0: i32) -> (i32, i32) {
    %c0_i32 = arith.constant 0 : i32
    %c0_i32_0 = arith.constant 0 : i32
    return %arg0, %c0_i32 : i32, i32
  }
}

</mosaic_0001>

<llo_original>
// kernel: seq2seq_with_predictor_forward.3
$region0: #{seq2seq_with_predictor_forward.3}
  #allocation0 [shape = 'u32[]', space=smem, size = 0x4, offset = 0x4, fixed_abs, tag = 'smem constant byte address 0x4 - core index']
  #allocation1 [shape = 'u32[144,128]{1,0:T(1,128)}', space=vmem, size = 0x12000, scoped, tag = 'internal scratch']
  %s0 = inlined_call_operand.vmem [shape: f32[8,8,128], index: 0, kind: input, shape index: {}]
  %s1 = inlined_call_operand.vmem [shape: bf16[128,128], index: 1, kind: input, shape index: {}]
  %s2 = inlined_call_operand.vmem [shape: f32[1,128], index: 2, kind: input, shape index: {}]
  %s3 = inlined_call_operand.vmem [shape: f32[8,8,128], index: 3, kind: output, shape index: {}]
  %s4 = sld [smem:[#allocation0]]
  $region22: #{seq2seq_with_predictor_forward.3} parent=0
    _
  %s6 = ssub.s32 1, %s4
  %s7 = scalar_select 0, %s6, %s4
  // Predicated region
  $region2: #{seq2seq_with_predictor_forward.3} parent=0 // pred_check
    _
  $region3: #{seq2seq_with_predictor_forward.3} parent=0 // pred_check_branch
    %9 = sbr.rel (0) target = $region5
  $region4: #{seq2seq_with_predictor_forward.3} parent=0 // pred_region
    _
  $region5: #{seq2seq_with_predictor_forward.3} parent=0 // pred_fallthru
    _
  // Predicated region
  $region6: #{seq2seq_with_predictor_forward.3} parent=0 // pred_check
    _
  $region7: #{seq2seq_with_predictor_forward.3} parent=0 // pred_check_branch
    %11 = sbr.rel (0) target = $region9
  $region8: #{seq2seq_with_predictor_forward.3} parent=0 // pred_region
    _
  $region9: #{seq2seq_with_predictor_forward.3} parent=0 // pred_fallthru
    _
  // Predicated region
  $region10: #{seq2seq_with_predictor_forward.3} parent=0 // pred_check
    _
  $region11: #{seq2seq_with_predictor_forward.3} parent=0 // pred_check_branch
    %13 = sbr.rel (0) target = $region13
  $region12: #{seq2seq_with_predictor_forward.3} parent=0 // pred_region
    _
  $region13: #{seq2seq_with_predictor_forward.3} parent=0 // pred_fallthru
    _
  %v15 = vld [vmem:[%s0] sm:$0xff]
  %v16 = vld [vmem:[%s0 + $0x8] sm:$0xff]
  %v17 = vld [vmem:[%s0 + $0x10] sm:$0xff]
  %v18 = vld [vmem:[%s0 + $0x18] sm:$0xff]
  %v19 = vld [vmem:[%s0 + $0x20] sm:$0xff]
  %v20 = vld [vmem:[%s0 + $0x28] sm:$0xff]
  %v21 = vld [vmem:[%s0 + $0x30] sm:$0xff]
  %v22 = vld [vmem:[%s0 + $0x38] sm:$0xff]
  %v23 = vpack.c.bf16 %v15, %v15
  %v24 = vpack.c.bf16 %v16, %v16
  %v25 = vpack.c.bf16 %v17, %v17
  %v26 = vpack.c.bf16 %v18, %v18
  %v27 = vpack.c.bf16 %v19, %v19
  %v28 = vpack.c.bf16 %v20, %v20
  %v29 = vpack.c.bf16 %v21, %v21
  %v30 = vpack.c.bf16 %v22, %v22
  %v31 = vld [vmem:[%s1] sm:$0xf]
  %v32 = vld [vmem:[%s1 + $0x4] sm:$0xf]
  %v33 = vld [vmem:[%s1 + $0x8] sm:$0xf]
  %v34 = vld [vmem:[%s1 + $0xc] sm:$0xf]
  %v35 = vld [vmem:[%s1 + $0x10] sm:$0xf]
  %v36 = vld [vmem:[%s1 + $0x14] sm:$0xf]
  %v37 = vld [vmem:[%s1 + $0x18] sm:$0xf]
  %v38 = vld [vmem:[%s1 + $0x1c] sm:$0xf]
  %v39 = vld [vmem:[%s1 + $0x20] sm:$0xf]
  %v40 = vld [vmem:[%s1 + $0x24] sm:$0xf]
  %v41 = vld [vmem:[%s1 + $0x28] sm:$0xf]
  %v42 = vld [vmem:[%s1 + $0x2c] sm:$0xf]
  %v43 = vld [vmem:[%s1 + $0x30] sm:$0xf]
  %v44 = vld [vmem:[%s1 + $0x34] sm:$0xf]
  %v45 = vld [vmem:[%s1 + $0x38] sm:$0xf]
  %v46 = vld [vmem:[%s1 + $0x3c] sm:$0xf]
  %v47 = vld [vmem:[%s2] sm:$0x1]
  %v49 = vlaneseq
  %v50 = vshrl.u32 %v49, 7
  %v51 = vsub.s32 0, %v50
  %v52 = vrot.slane %v47, %v51
  %v62 = vunpack.c.l.b16 %v23
  %v63 = vunpack.c.l.b16 %v24
  %v64 = vunpack.c.l.b16 %v25
  %v65 = vunpack.c.l.b16 %v26
  %v66 = vunpack.c.l.b16 %v27
  %v67 = vunpack.c.l.b16 %v28
  %v68 = vunpack.c.l.b16 %v29
  %v69 = vunpack.c.l.b16 %v30
  %v70 = vpack.c.b16 %v63, %v62
  %v71 = vpack.c.b16 %v65, %v64
  %v72 = vpack.c.b16 %v67, %v66
  %v73 = vpack.c.b16 %v69, %v68
  %v94 = vunpack.c.l.b16 %v31
  %v95 = vunpack.c.l.b16 %v32
  %v96 = vunpack.c.l.b16 %v33
  %v97 = vunpack.c.l.b16 %v34
  %v98 = vunpack.c.l.b16 %v35
  %v99 = vunpack.c.l.b16 %v36
  %v100 = vunpack.c.l.b16 %v37
  %v101 = vunpack.c.l.b16 %v38
  %v102 = vunpack.c.l.b16 %v39
  %v103 = vunpack.c.l.b16 %v40
  %v104 = vunpack.c.l.b16 %v41
  %v105 = vunpack.c.l.b16 %v42
  %v106 = vunpack.c.l.b16 %v43
  %v107 = vunpack.c.l.b16 %v44
  %v108 = vunpack.c.l.b16 %v45
  %v109 = vunpack.c.l.b16 %v46
  %v110 = vpack.c.b16 %v95, %v94
  %v111 = vpack.c.b16 %v97, %v96
  %v112 = vpack.c.b16 %v99, %v98
  %v113 = vpack.c.b16 %v101, %v100
  %v114 = vpack.c.b16 %v103, %v102
  %v115 = vpack.c.b16 %v105, %v104
  %v116 = vpack.c.b16 %v107, %v106
  %v117 = vpack.c.b16 %v109, %v108
  %126 = vmatprep.subr.bf16.mxu0 0
  %127 = vmatpush1.bf16.msra.mxu0 %v110
  %128 = vmatprep.subr.bf16.mxu0 0
  %129 = vmatpush1.bf16.msra.mxu0 %v111
  %130 = vmatprep.subr.bf16.mxu0 0
  %131 = vmatpush1.bf16.msra.mxu0 %v112
  %132 = vmatprep.subr.bf16.mxu0 0
  %133 = vmatpush1.bf16.msra.mxu0 %v113
  %134 = vmatprep.subr.bf16.mxu0 0
  %135 = vmatpush1.bf16.msra.mxu0 %v114
  %136 = vmatprep.subr.bf16.mxu0 0
  %137 = vmatpush1.bf16.msra.mxu0 %v115
  %138 = vmatprep.subr.bf16.mxu0 0
  %139 = vmatpush1.bf16.msra.mxu0 %v116
  %140 = vmatprep.subr.bf16.mxu0 0
  %141 = vmatpush1.bf16.msra.mxu0 %v117
  %142 = vmatprep.subr.bf16.mxu0 0
  %143 = vmatpush1.bf16.msra.mxu0 0
  %144 = vmatprep.subr.bf16.mxu0 0
  %145 = vmatpush1.bf16.msra.mxu0 0
  %146 = vmatprep.subr.bf16.mxu0 0
  %147 = vmatpush1.bf16.msra.mxu0 0
  %148 = vmatprep.subr.bf16.mxu0 0
  %149 = vmatpush1.bf16.msra.mxu0 0
  %150 = vmatprep.subr.bf16.mxu0 0
  %151 = vmatpush1.bf16.msra.mxu0 0
  %152 = vmatprep.subr.bf16.mxu0 0
  %153 = vmatpush1.bf16.msra.mxu0 0
  %154 = vmatprep.subr.bf16.mxu0 0
  %155 = vmatpush1.bf16.msra.mxu0 0
  %156 = vmatprep.subr.bf16.mxu0 0
  %157 = vmatpush1.bf16.msra.mxu0 0
  %158 = vmatprep.mubr.bf16.mxu0 0
  %159 = vmatmul.mubr.bf16.gmra.mrb[0].mxu0 %v70
  %v160 = vpop.f32.mrb[0].mxu0
  %v161 = vadd.f32 %v52, %v160
  %v162 = vpop.f32.mrb[0].mxu0
  %v163 = vpop.f32.mrb[0].mxu0
  %v164 = vadd.f32 %v52, %v163
  %v165 = vpop.f32.mrb[0].mxu0
  %166 = vmatprep.mubr.bf16.mxu0 0
  %167 = vmatmul.mubr.bf16.gmra.mrb[0].mxu0 %v71
  %v168 = vpop.f32.mrb[0].mxu0
  %v169 = vadd.f32 %v52, %v168
  %v170 = vpop.f32.mrb[0].mxu0
  %v171 = vpop.f32.mrb[0].mxu0
  %v172 = vadd.f32 %v52, %v171
  %v173 = vpop.f32.mrb[0].mxu0
  %174 = vmatprep.mubr.bf16.mxu0 0
  %175 = vmatmul.mubr.bf16.gmra.mrb[0].mxu0 %v72
  %v176 = vpop.f32.mrb[0].mxu0
  %v177 = vadd.f32 %v52, %v176
  %v178 = vpop.f32.mrb[0].mxu0
  %v179 = vpop.f32.mrb[0].mxu0
  %v180 = vadd.f32 %v52, %v179
  %v181 = vpop.f32.mrb[0].mxu0
  %182 = vmatprep.mubr.bf16.mxu0 0
  %183 = vmatmul.mubr.bf16.gmra.mrb[0].mxu0 %v73
  %v184 = vpop.f32.mrb[0].mxu0
  %v185 = vadd.f32 %v52, %v184
  %v186 = vpop.f32.mrb[0].mxu0
  %v187 = vpop.f32.mrb[0].mxu0
  %v188 = vadd.f32 %v52, %v187
  %v189 = vpop.f32.mrb[0].mxu0
  %190 = vdwg.mxu0
  %191 = vst [vmem:[%s3] sm:$0xff] %v161
  %192 = vst [vmem:[%s3 + $0x8] sm:$0xff] %v164
  %193 = vst [vmem:[%s3 + $0x10] sm:$0xff] %v169
  %194 = vst [vmem:[%s3 + $0x18] sm:$0xff] %v172
  %195 = vst [vmem:[%s3 + $0x20] sm:$0xff] %v177
  %196 = vst [vmem:[%s3 + $0x28] sm:$0xff] %v180
  %197 = vst [vmem:[%s3 + $0x30] sm:$0xff] %v185
  %198 = vst [vmem:[%s3 + $0x38] sm:$0xff] %v188
  // Predicated region
  $region14: #{seq2seq_with_predictor_forward.3} parent=0 // pred_check
    _
  $region15: #{seq2seq_with_predictor_forward.3} parent=0 // pred_check_branch
    %200 = sbr.rel (0) target = $region17
  $region16: #{seq2seq_with_predictor_forward.3} parent=0 // pred_region
    _
  $region17: #{seq2seq_with_predictor_forward.3} parent=0 // pred_fallthru
    _
  // Predicated region
  $region18: #{seq2seq_with_predictor_forward.3} parent=0 // pred_check
    _
  $region19: #{seq2seq_with_predictor_forward.3} parent=0 // pred_check_branch
    %202 = sbr.rel (0) target = $region21
  $region20: #{seq2seq_with_predictor_forward.3} parent=0 // pred_region
    _
  $region21: #{seq2seq_with_predictor_forward.3} parent=0 // pred_fallthru
    _

// kernel: seq2seq_with_predictor_forward.2
$region0: #{seq2seq_with_predictor_forward.2}
  #allocation0 [shape = 'u32[]', space=smem, size = 0x4, offset = 0x4, fixed_abs, tag = 'smem constant byte address 0x4 - core index']
  #allocation1 [shape = 'u32[144,128]{1,0:T(1,128)}', space=vmem, size = 0x12000, scoped, tag = 'internal scratch']
  #allocation2 [shape = 'f32[8,8,384]{2,1,0:T(8,128)}', space=vmem, size = 0x18000, scoped, tag = 'scratch operand']
  #allocation3 [shape = 'f32[8,8,384]{2,1,0:T(8,128)}', space=vmem, size = 0x18000, scoped, tag = 'scratch operand']
  #allocation4 [shape = 'f32[1,1]{1,0:T(1,128)S(1)}', space=vmem, size = 0x200, scoped, tag = 'scoped memory for seq2seq_with_predictor_forward.2']
  %s0 = inlined_call_operand.vmem [shape: f32[8,8,128], index: 0, kind: input, shape index: {}]
  %s1 = inlined_call_operand.vmem [shape: f32[8,8,128], index: 1, kind: input, shape index: {}]
  %s2 = inlined_call_operand.vmem [shape: bf16[128,384], index: 2, kind: input, shape index: {}]
  %s3 = inlined_call_operand.vmem [shape: bf16[128,384], index: 3, kind: input, shape index: {}]
  %s4 = inlined_call_operand.vmem [shape: f32[1,384], index: 4, kind: input, shape index: {}]
  %s5 = inlined_call_operand.vmem [shape: f32[1,128], index: 5, kind: input, shape index: {}]
  %s6 = inlined_call_operand.vmem [shape: bf16[128,384], index: 6, kind: input, shape index: {}]
  %s7 = inlined_call_operand.vmem [shape: bf16[128,384], index: 7, kind: input, shape index: {}]
  %s8 = inlined_call_operand.vmem [shape: f32[1,384], index: 8, kind: input, shape index: {}]
  %s9 = inlined_call_operand.vmem [shape: f32[1,128], index: 9, kind: input, shape index: {}]
  %s10 = inlined_call_operand.vmem [shape: bf16[128,128], index: 10, kind: input, shape index: {}]
  %s11 = inlined_call_operand.vmem [shape: f32[1,128], index: 11, kind: input, shape index: {}]
  %s12 = inlined_call_operand.vmem [shape: bf16[128,128], index: 12, kind: input, shape index: {}]
  %s13 = inlined_call_operand.vmem [shape: f32[1,128], index: 13, kind: input, shape index: {}]
  %s14 = inlined_call_operand.vmem [shape: f32[128,1], index: 14, kind: input, shape index: {}]
  %s15 = inlined_call_operand.<no memory space> [shape: f32[1,1], index: 15, kind: input, shape index: {}]
  %s16 = inlined_call_operand.hbm [shape: f32[8,128], index: 16, kind: output, shape index: {0}]
  %s17 = inlined_call_operand.vmem [shape: f32[8,8,128], index: 17, kind: output, shape index: {1}]
  %s18 = inlined_call_operand.hbm [shape: f32[8,128], index: 18, kind: output, shape index: {2}]
  %s19 = inlined_call_operand.vmem [shape: f32[8,1], index: 19, kind: output, shape index: {3}]
  %20 = xla_tuple %s16, %s17, %s18, %s19
  %s21 = sld [smem:[#allocation0]]
  $region98: #{seq2seq_with_predictor_forward.2} parent=0
    _
  %s23 = ssub.s32 1, %s21
  %s24 = scalar_select 0, %s23, %s21
  %v25 = vstv %s15
  %26 = vst [vmem:[#allocation4] sm:$0x1] %v25
  $region1: #{seq2seq_with_predictor_forward.2} parent=0
    #allocation5 [shape = 'u8[4096]{0}', space=vmem, size = 0x1000, scoped, tag = 'output window, operand 0, single buffered']
    #allocation6 [shape = 's32[1]{0}', space=sflag, size = 0x4, scoped, tag = 'scoped memory for seq2seq_with_predictor_forward.2']
    #allocation7 [shape = 'u8[4096]{0}', space=vmem, size = 0x1000, scoped, tag = 'output window, operand 2, single buffered']
    #allocation8 [shape = 's32[1]{0}', space=sflag, size = 0x4, scoped, tag = 'scoped memory for seq2seq_with_predictor_forward.2']
    %27 = vsyncpa [#allocation6], 0
    %28 = vsyncpa [#allocation8], 0
    // Predicated region
    $region2: #{seq2seq_with_predictor_forward.2} parent=1 // pred_check
      _
    $region3: #{seq2seq_with_predictor_forward.2} parent=1 // pred_check_branch
      %30 = sbr.rel (0) target = $region5
    $region4: #{seq2seq_with_predictor_forward.2} parent=1 // pred_region
      _
    $region5: #{seq2seq_with_predictor_forward.2} parent=1 // pred_fallthru
      _
    // Predicated region
    $region6: #{seq2seq_with_predictor_forward.2} parent=1 // pred_check
      _
    $region7: #{seq2seq_with_predictor_forward.2} parent=1 // pred_check_branch
      %32 = sbr.rel (0) target = $region9
    $region8: #{seq2seq_with_predictor_forward.2} parent=1 // pred_region
      _
    $region9: #{seq2seq_with_predictor_forward.2} parent=1 // pred_fallthru
      _
    // Predicated region
    $region10: #{seq2seq_with_predictor_forward.2} parent=1 // pred_check
      _
    $region11: #{seq2seq_with_predictor_forward.2} parent=1 // pred_check_branch
      %34 = sbr.rel (0) target = $region13
    $region12: #{seq2seq_with_predictor_forward.2} parent=1 // pred_region
      _
    $region13: #{seq2seq_with_predictor_forward.2} parent=1 // pred_fallthru
      _
    // Predicated region
    $region14: #{seq2seq_with_predictor_forward.2} parent=1 // pred_check
      _
    $region15: #{seq2seq_with_predictor_forward.2} parent=1 // pred_check_branch
      %36 = sbr.rel (0) target = $region17
    $region16: #{seq2seq_with_predictor_forward.2} parent=1 // pred_region
      _
    $region17: #{seq2seq_with_predictor_forward.2} parent=1 // pred_fallthru
      _
    // Predicated region
    $region18: #{seq2seq_with_predictor_forward.2} parent=1 // pred_check
      _
    $region19: #{seq2seq_with_predictor_forward.2} parent=1 // pred_check_branch
      %38 = sbr.rel (0) target = $region21
    $region20: #{seq2seq_with_predictor_forward.2} parent=1 // pred_region
      _
    $region21: #{seq2seq_with_predictor_forward.2} parent=1 // pred_fallthru
      _
    // Predicated region
    $region22: #{seq2seq_with_predictor_forward.2} parent=1 // pred_check
      _
    $region23: #{seq2seq_with_predictor_forward.2} parent=1 // pred_check_branch
      %40 = sbr.rel (0) target = $region25
    $region24: #{seq2seq_with_predictor_forward.2} parent=1 // pred_region
      _
    $region25: #{seq2seq_with_predictor_forward.2} parent=1 // pred_fallthru
      _
    // Predicated region
    $region26: #{seq2seq_with_predictor_forward.2} parent=1 // pred_check
      _
    $region27: #{seq2seq_with_predictor_forward.2} parent=1 // pred_check_branch
      %42 = sbr.rel (0) target = $region29
    $region28: #{seq2seq_with_predictor_forward.2} parent=1 // pred_region
      _
    $region29: #{seq2seq_with_predictor_forward.2} parent=1 // pred_fallthru
      _
    // Predicated region
    $region30: #{seq2seq_with_predictor_forward.2} parent=1 // pred_check
      _
    $region31: #{seq2seq_with_predictor_forward.2} parent=1 // pred_check_branch
      %44 = sbr.rel (0) target = $region33
    $region32: #{seq2seq_with_predictor_forward.2} parent=1 // pred_region
      _
    $region33: #{seq2seq_with_predictor_forward.2} parent=1 // pred_fallthru
      _
    // Predicated region
    $region34: #{seq2seq_with_predictor_forward.2} parent=1 // pred_check
      _
    $region35: #{seq2seq_with_predictor_forward.2} parent=1 // pred_check_branch
      %46 = sbr.rel (0) target = $region37
    $region36: #{seq2seq_with_predictor_forward.2} parent=1 // pred_region
      _
    $region37: #{seq2seq_with_predictor_forward.2} parent=1 // pred_fallthru
      _
    // Predicated region
    $region38: #{seq2seq_with_predictor_forward.2} parent=1 // pred_check
      _
    $region39: #{seq2seq_with_predictor_forward.2} parent=1 // pred_check_branch
      %48 = sbr.rel (0) target = $region41
    $region40: #{seq2seq_with_predictor_forward.2} parent=1 // pred_region
      _
    $region41: #{seq2seq_with_predictor_forward.2} parent=1 // pred_fallthru
      _
    // Predicated region
    $region42: #{seq2seq_with_predictor_forward.2} parent=1 // pred_check
      _
    $region43: #{seq2seq_with_predictor_forward.2} parent=1 // pred_check_branch
      %50 = sbr.rel (0) target = $region45
    $region44: #{seq2seq_with_predictor_forward.2} parent=1 // pred_region
      _
    $region45: #{seq2seq_with_predictor_forward.2} parent=1 // pred_fallthru
      _
    // Predicated region
    $region46: #{seq2seq_with_predictor_forward.2} parent=1 // pred_check
      _
    $region47: #{seq2seq_with_predictor_forward.2} parent=1 // pred_check_branch
      %52 = sbr.rel (0) target = $region49
    $region48: #{seq2seq_with_predictor_forward.2} parent=1 // pred_region
      _
    $region49: #{seq2seq_with_predictor_forward.2} parent=1 // pred_fallthru
      _
    // Predicated region
    $region50: #{seq2seq_with_predictor_forward.2} parent=1 // pred_check
      _
    $region51: #{seq2seq_with_predictor_forward.2} parent=1 // pred_check_branch
      %54 = sbr.rel (0) target = $region53
    $region52: #{seq2seq_with_predictor_forward.2} parent=1 // pred_region
      _
    $region53: #{seq2seq_with_predictor_forward.2} parent=1 // pred_fallthru
      _
    // Predicated region
    $region54: #{seq2seq_with_predictor_forward.2} parent=1 // pred_check
      _
    $region55: #{seq2seq_with_predictor_forward.2} parent=1 // pred_check_branch
      %56 = sbr.rel (0) target = $region57
    $region56: #{seq2seq_with_predictor_forward.2} parent=1 // pred_region
      _
    $region57: #{seq2seq_with_predictor_forward.2} parent=1 // pred_fallthru
      _
    // Predicated region
    $region58: #{seq2seq_with_predictor_forward.2} parent=1 // pred_check
      _
    $region59: #{seq2seq_with_predictor_forward.2} parent=1 // pred_check_branch
      %58 = sbr.rel (0) target = $region61
    $region60: #{seq2seq_with_predictor_forward.2} parent=1 // pred_region
      _
    $region61: #{seq2seq_with_predictor_forward.2} parent=1 // pred_fallthru
      _
    // Predicated region
    $region62: #{seq2seq_with_predictor_forward.2} parent=1 // pred_check
      _
    $region63: #{seq2seq_with_predictor_forward.2} parent=1 // pred_check_branch
      %60 = sbr.rel (0) target = $region65
    $region64: #{seq2seq_with_predictor_forward.2} parent=1 // pred_region
      _
    $region65: #{seq2seq_with_predictor_forward.2} parent=1 // pred_fallthru
      _
    %v62 = vld [vmem:[%s0] sm:$0xff]
    %v63 = vld [vmem:[%s0 + $0x8] sm:$0xff]
    %v64 = vld [vmem:[%s0 + $0x10] sm:$0xff]
    %v65 = vld [vmem:[%s0 + $0x18] sm:$0xff]
    %v66 = vld [vmem:[%s0 + $0x20] sm:$0xff]
    %v67 = vld [vmem:[%s0 + $0x28] sm:$0xff]
    %v68 = vld [vmem:[%s0 + $0x30] sm:$0xff]
    %v69 = vld [vmem:[%s0 + $0x38] sm:$0xff]
    %v70 = vpack.c.bf16 %v62, %v62
    %v71 = vpack.c.bf16 %v63, %v63
    %v72 = vpack.c.bf16 %v64, %v64
    %v73 = vpack.c.bf16 %v65, %v65
    %v74 = vpack.c.bf16 %v66, %v66
    %v75 = vpack.c.bf16 %v67, %v67
    %v76 = vpack.c.bf16 %v68, %v68
    %v77 = vpack.c.bf16 %v69, %v69
    %v78 = vld [vmem:[%s2] sm:$0xff]
    %v79 = vld [vmem:[%s2 + $0x8] sm:$0xf]
    %v80 = vld [vmem:[%s2 + $0xc] sm:$0xff]
    %v81 = vld [vmem:[%s2 + $0x14] sm:$0xf]
    %v82 = vld [vmem:[%s2 + $0x18] sm:$0xff]
    %v83 = vld [vmem:[%s2 + $0x20] sm:$0xf]
    %v84 = vld [vmem:[%s2 + $0x24] sm:$0xff]
    %v85 = vld [vmem:[%s2 + $0x2c] sm:$0xf]
    %v86 = vld [vmem:[%s2 + $0x30] sm:$0xff]
    %v87 = vld [vmem:[%s2 + $0x38] sm:$0xf]
    %v88 = vld [vmem:[%s2 + $0x3c] sm:$0xff]
    %v89 = vld [vmem:[%s2 + $0x44] sm:$0xf]
    %v90 = vld [vmem:[%s2 + $0x48] sm:$0xff]
    %v91 = vld [vmem:[%s2 + $0x50] sm:$0xf]
    %v92 = vld [vmem:[%s2 + $0x54] sm:$0xff]
    %v93 = vld [vmem:[%s2 + $0x5c] sm:$0xf]
    %v94 = vld [vmem:[%s2 + $0x60] sm:$0xff]
    %v95 = vld [vmem:[%s2 + $0x68] sm:$0xf]
    %v96 = vld [vmem:[%s2 + $0x6c] sm:$0xff]
    %v97 = vld [vmem:[%s2 + $0x74] sm:$0xf]
    %v98 = vld [vmem:[%s2 + $0x78] sm:$0xff]
    %v99 = vld [vmem:[%s2 + $0x80] sm:$0xf]
    %v100 = vld [vmem:[%s2 + $0x84] sm:$0xff]
    %v101 = vld [vmem:[%s2 + $0x8c] sm:$0xf]
    %v102 = vld [vmem:[%s2 + $0x90] sm:$0xff]
    %v103 = vld [vmem:[%s2 + $0x98] sm:$0xf]
    %v104 = vld [vmem:[%s2 + $0x9c] sm:$0xff]
    %v105 = vld [vmem:[%s2 + $0xa4] sm:$0xf]
    %v106 = vld [vmem:[%s2 + $0xa8] sm:$0xff]
    %v107 = vld [vmem:[%s2 + $0xb0] sm:$0xf]
    %v108 = vld [vmem:[%s2 + $0xb4] sm:$0xff]
    %v109 = vld [vmem:[%s2 + $0xbc] sm:$0xf]
    %v110 = vld [vmem:[%s4] sm:$0x7]
    %v112 = vlaneseq
    %v113 = vshrl.u32 %v112, 7
    %v114 = vsub.s32 0, %v113
    %v115 = vrot.slane %v110, %v114
    %v116 = vlaneseq
    %v117 = vshrl.u32 %v116, 7
    %v118 = vsub.s32 1, %v117
    %v119 = vrot.slane %v110, %v118
    %v120 = vlaneseq
    %v121 = vshrl.u32 %v120, 7
    %v122 = vsub.s32 2, %v121
    %v123 = vrot.slane %v110, %v122
    %v135 = vunpack.c.l.b16 %v70
    %v136 = vunpack.c.l.b16 %v71
    %v137 = vunpack.c.l.b16 %v72
    %v138 = vunpack.c.l.b16 %v73
    %v139 = vunpack.c.l.b16 %v74
    %v140 = vunpack.c.l.b16 %v75
    %v141 = vunpack.c.l.b16 %v76
    %v142 = vunpack.c.l.b16 %v77
    %v143 = vpack.c.b16 %v136, %v135
    %v144 = vpack.c.b16 %v138, %v137
    %v145 = vpack.c.b16 %v140, %v139
    %v146 = vpack.c.b16 %v142, %v141
    %v183 = vunpack.c.l.b16 %v78
    %v184 = vunpack.c.h.b16 %v78
    %v185 = vunpack.c.l.b16 %v79
    %v186 = vunpack.c.l.b16 %v80
    %v187 = vunpack.c.h.b16 %v80
    %v188 = vunpack.c.l.b16 %v81
    %v189 = vunpack.c.l.b16 %v82
    %v190 = vunpack.c.h.b16 %v82
    %v191 = vunpack.c.l.b16 %v83
    %v192 = vunpack.c.l.b16 %v84
    %v193 = vunpack.c.h.b16 %v84
    %v194 = vunpack.c.l.b16 %v85
    %v195 = vunpack.c.l.b16 %v86
    %v196 = vunpack.c.h.b16 %v86
    %v197 = vunpack.c.l.b16 %v87
    %v198 = vunpack.c.l.b16 %v88
    %v199 = vunpack.c.h.b16 %v88
    %v200 = vunpack.c.l.b16 %v89
    %v201 = vunpack.c.l.b16 %v90
    %v202 = vunpack.c.h.b16 %v90
    %v203 = vunpack.c.l.b16 %v91
    %v204 = vunpack.c.l.b16 %v92
    %v205 = vunpack.c.h.b16 %v92
    %v206 = vunpack.c.l.b16 %v93
    %v207 = vunpack.c.l.b16 %v94
    %v208 = vunpack.c.h.b16 %v94
    %v209 = vunpack.c.l.b16 %v95
    %v210 = vunpack.c.l.b16 %v96
    %v211 = vunpack.c.h.b16 %v96
    %v212 = vunpack.c.l.b16 %v97
    %v213 = vunpack.c.l.b16 %v98
    %v214 = vunpack.c.h.b16 %v98
    %v215 = vunpack.c.l.b16 %v99
    %v216 = vunpack.c.l.b16 %v100
    %v217 = vunpack.c.h.b16 %v100
    %v218 = vunpack.c.l.b16 %v101
    %v219 = vunpack.c.l.b16 %v102
    %v220 = vunpack.c.h.b16 %v102
    %v221 = vunpack.c.l.b16 %v103
    %v222 = vunpack.c.l.b16 %v104
    %v223 = vunpack.c.h.b16 %v104
    %v224 = vunpack.c.l.b16 %v105
    %v225 = vunpack.c.l.b16 %v106
    %v226 = vunpack.c.h.b16 %v106
    %v227 = vunpack.c.l.b16 %v107
    %v228 = vunpack.c.l.b16 %v108
    %v229 = vunpack.c.h.b16 %v108
    %v230 = vunpack.c.l.b16 %v109
    %v231 = vpack.c.b16 %v186, %v183
    %v232 = vpack.c.b16 %v187, %v184
    %v233 = vpack.c.b16 %v188, %v185
    %v234 = vpack.c.b16 %v192, %v189
    %v235 = vpack.c.b16 %v193, %v190
    %v236 = vpack.c.b16 %v194, %v191
    %v237 = vpack.c.b16 %v198, %v195
    %v238 = vpack.c.b16 %v199, %v196
    %v239 = vpack.c.b16 %v200, %v197
    %v240 = vpack.c.b16 %v204, %v201
    %v241 = vpack.c.b16 %v205, %v202
    %v242 = vpack.c.b16 %v206, %v203
    %v243 = vpack.c.b16 %v210, %v207
    %v244 = vpack.c.b16 %v211, %v208
    %v245 = vpack.c.b16 %v212, %v209
    %v246 = vpack.c.b16 %v216, %v213
    %v247 = vpack.c.b16 %v217, %v214
    %v248 = vpack.c.b16 %v218, %v215
    %v249 = vpack.c.b16 %v222, %v219
    %v250 = vpack.c.b16 %v223, %v220
    %v251 = vpack.c.b16 %v224, %v221
    %v252 = vpack.c.b16 %v228, %v225
    %v253 = vpack.c.b16 %v229, %v226
    %v254 = vpack.c.b16 %v230, %v227
    %279 = vmatprep.subr.bf16.mxu0 %v232
    %280 = vmatpush1.bf16.msra.mxu0 %v231
    %281 = vmatprep.subr.bf16.mxu0 %v235
    %282 = vmatpush1.bf16.msra.mxu0 %v234
    %283 = vmatprep.subr.bf16.mxu0 %v238
    %284 = vmatpush1.bf16.msra.mxu0 %v237
    %285 = vmatprep.subr.bf16.mxu0 %v241
    %286 = vmatpush1.bf16.msra.mxu0 %v240
    %287 = vmatprep.subr.bf16.mxu0 %v244
    %288 = vmatpush1.bf16.msra.mxu0 %v243
    %289 = vmatprep.subr.bf16.mxu0 %v247
    %290 = vmatpush1.bf16.msra.mxu0 %v246
    %291 = vmatprep.subr.bf16.mxu0 %v250
    %292 = vmatpush1.bf16.msra.mxu0 %v249
    %293 = vmatprep.subr.bf16.mxu0 %v253
    %294 = vmatpush1.bf16.msra.mxu0 %v252
    %295 = vmatprep.subr.bf16.mxu0 0
    %296 = vmatpush1.bf16.msra.mxu0 0
    %297 = vmatprep.subr.bf16.mxu0 0
    %298 = vmatpush1.bf16.msra.mxu0 0
    %299 = vmatprep.subr.bf16.mxu0 0
    %300 = vmatpush1.bf16.msra.mxu0 0
    %301 = vmatprep.subr.bf16.mxu0 0
    %302 = vmatpush1.bf16.msra.mxu0 0
    %303 = vmatprep.subr.bf16.mxu0 0
    %304 = vmatpush1.bf16.msra.mxu0 0
    %305 = vmatprep.subr.bf16.mxu0 0
    %306 = vmatpush1.bf16.msra.mxu0 0
    %307 = vmatprep.subr.bf16.mxu0 0
    %308 = vmatpush1.bf16.msra.mxu0 0
    %309 = vmatprep.subr.bf16.mxu0 0
    %310 = vmatpush1.bf16.msra.mxu0 0
    %311 = vmatprep.mubr.bf16.mxu0 0
    %312 = vmatmul.mubr.bf16.gmra.mrb[0].mxu0 %v143
    %v313 = vpop.f32.mrb[0].mxu0
    %v314 = vadd.f32 %v115, %v313
    %v315 = vpop.f32.mrb[0].mxu0
    %v316 = vadd.f32 %v119, %v315
    %v317 = vpop.f32.mrb[0].mxu0
    %v318 = vadd.f32 %v115, %v317
    %v319 = vpop.f32.mrb[0].mxu0
    %v320 = vadd.f32 %v119, %v319
    %321 = vmatprep.mubr.bf16.mxu0 0
    %322 = vmatmul.mubr.bf16.gmra.mrb[0].mxu0 %v144
    %v323 = vpop.f32.mrb[0].mxu0
    %v324 = vadd.f32 %v115, %v323
    %v325 = vpop.f32.mrb[0].mxu0
    %v326 = vadd.f32 %v119, %v325
    %v327 = vpop.f32.mrb[0].mxu0
    %v328 = vadd.f32 %v115, %v327
    %v329 = vpop.f32.mrb[0].mxu0
    %v330 = vadd.f32 %v119, %v329
    %331 = vmatprep.mubr.bf16.mxu0 0
    %332 = vmatmul.mubr.bf16.gmra.mrb[0].mxu0 %v145
    %v333 = vpop.f32.mrb[0].mxu0
    %v334 = vadd.f32 %v115, %v333
    %v335 = vpop.f32.mrb[0].mxu0
    %v336 = vadd.f32 %v119, %v335
    %v337 = vpop.f32.mrb[0].mxu0
    %v338 = vadd.f32 %v115, %v337
    %v339 = vpop.f32.mrb[0].mxu0
    %v340 = vadd.f32 %v119, %v339
    %341 = vmatprep.mubr.bf16.mxu0 0
    %342 = vmatmul.mubr.bf16.gmra.mrb[0].mxu0 %v146
    %v343 = vpop.f32.mrb[0].mxu0
    %v344 = vadd.f32 %v115, %v343
    %v345 = vpop.f32.mrb[0].mxu0
    %v346 = vadd.f32 %v119, %v345
    %v347 = vpop.f32.mrb[0].mxu0
    %v348 = vadd.f32 %v115, %v347
    %v349 = vpop.f32.mrb[0].mxu0
    %v350 = vadd.f32 %v119, %v349
    %351 = vdwg.mxu0
    %352 = vmatprep.subr.bf16.mxu0 0
    %353 = vmatpush1.bf16.msra.mxu0 %v233
    %354 = vmatprep.subr.bf16.mxu0 0
    %355 = vmatpush1.bf16.msra.mxu0 %v236
    %356 = vmatprep.subr.bf16.mxu0 0
    %357 = vmatpush1.bf16.msra.mxu0 %v239
    %358 = vmatprep.subr.bf16.mxu0 0
    %359 = vmatpush1.bf16.msra.mxu0 %v242
    %360 = vmatprep.subr.bf16.mxu0 0
    %361 = vmatpush1.bf16.msra.mxu0 %v245
    %362 = vmatprep.subr.bf16.mxu0 0
    %363 = vmatpush1.bf16.msra.mxu0 %v248
    %364 = vmatprep.subr.bf16.mxu0 0
    %365 = vmatpush1.bf16.msra.mxu0 %v251
    %366 = vmatprep.subr.bf16.mxu0 0
    %367 = vmatpush1.bf16.msra.mxu0 %v254
    %368 = vmatprep.subr.bf16.mxu0 0
    %369 = vmatpush1.bf16.msra.mxu0 0
    %370 = vmatprep.subr.bf16.mxu0 0
    %371 = vmatpush1.bf16.msra.mxu0 0
    %372 = vmatprep.subr.bf16.mxu0 0
    %373 = vmatpush1.bf16.msra.mxu0 0
    %374 = vmatprep.subr.bf16.mxu0 0
    %375 = vmatpush1.bf16.msra.mxu0 0
    %376 = vmatprep.subr.bf16.mxu0 0
    %377 = vmatpush1.bf16.msra.mxu0 0
    %378 = vmatprep.subr.bf16.mxu0 0
    %379 = vmatpush1.bf16.msra.mxu0 0
    %380 = vmatprep.subr.bf16.mxu0 0
    %381 = vmatpush1.bf16.msra.mxu0 0
    %382 = vmatprep.subr.bf16.mxu0 0
    %383 = vmatpush1.bf16.msra.mxu0 0
    %384 = vmatprep.mubr.bf16.mxu0 0
    %385 = vmatmul.mubr.bf16.gmra.mrb[0].mxu0 %v143
    %v386 = vpop.f32.mrb[0].mxu0
    %v387 = vadd.f32 %v123, %v386
    %v388 = vpop.f32.mrb[0].mxu0
    %v389 = vpop.f32.mrb[0].mxu0
    %v390 = vadd.f32 %v123, %v389
    %v391 = vpop.f32.mrb[0].mxu0
    %392 = vmatprep.mubr.bf16.mxu0 0
    %393 = vmatmul.mubr.bf16.gmra.mrb[0].mxu0 %v144
    %v394 = vpop.f32.mrb[0].mxu0
    %v395 = vadd.f32 %v123, %v394
    %v396 = vpop.f32.mrb[0].mxu0
    %v397 = vpop.f32.mrb[0].mxu0
    %v398 = vadd.f32 %v123, %v397
    %v399 = vpop.f32.mrb[0].mxu0
    %400 = vmatprep.mubr.bf16.mxu0 0
    %401 = vmatmul.mubr.bf16.gmra.mrb[0].mxu0 %v145
    %v402 = vpop.f32.mrb[0].mxu0
    %v403 = vadd.f32 %v123, %v402
    %v404 = vpop.f32.mrb[0].mxu0
    %v405 = vpop.f32.mrb[0].mxu0
    %v406 = vadd.f32 %v123, %v405
    %v407 = vpop.f32.mrb[0].mxu0
    %408 = vmatprep.mubr.bf16.mxu0 0
    %409 = vmatmul.mubr.bf16.gmra.mrb[0].mxu0 %v146
    %v410 = vpop.f32.mrb[0].mxu0
    %v411 = vadd.f32 %v123, %v410
    %v412 = vpop.f32.mrb[0].mxu0
    %v413 = vpop.f32.mrb[0].mxu0
    %v414 = vadd.f32 %v123, %v413
    %v415 = vpop.f32.mrb[0].mxu0
    %416 = vdwg.mxu0
    %417 = vst [vmem:[#allocation2] sm:$0xff] %v314
    %418 = vst [vmem:[#allocation2 + $0x8] sm:$0xff] %v316
    %419 = vst [vmem:[#allocation2 + $0x10] sm:$0xff] %v387
    %420 = vst [vmem:[#allocation2 + $0x18] sm:$0xff] %v318
    %421 = vst [vmem:[#allocation2 + $0x20] sm:$0xff] %v320
    %422 = vst [vmem:[#allocation2 + $0x28] sm:$0xff] %v390
    %423 = vst [vmem:[#allocation2 + $0x30] sm:$0xff] %v324
    %424 = vst [vmem:[#allocation2 + $0x38] sm:$0xff] %v326
    %425 = vst [vmem:[#allocation2 + $0x40] sm:$0xff] %v395
    %426 = vst [vmem:[#allocation2 + $0x48] sm:$0xff] %v328
    %427 = vst [vmem:[#allocation2 + $0x50] sm:$0xff] %v330
    %428 = vst [vmem:[#allocation2 + $0x58] sm:$0xff] %v398
    %429 = vst [vmem:[#allocation2 + $0x60] sm:$0xff] %v334
    %430 = vst [vmem:[#allocation2 + $0x68] sm:$0xff] %v336
    %431 = vst [vmem:[#allocation2 + $0x70] sm:$0xff] %v403
    %432 = vst [vmem:[#allocation2 + $0x78] sm:$0xff] %v338
    %433 = vst [vmem:[#allocation2 + $0x80] sm:$0xff] %v340
    %434 = vst [vmem:[#allocation2 + $0x88] sm:$0xff] %v406
    %435 = vst [vmem:[#allocation2 + $0x90] sm:$0xff] %v344
    %436 = vst [vmem:[#allocation2 + $0x98] sm:$0xff] %v346
    %437 = vst [vmem:[#allocation2 + $0xa0] sm:$0xff] %v411
    %438 = vst [vmem:[#allocation2 + $0xa8] sm:$0xff] %v348
    %439 = vst [vmem:[#allocation2 + $0xb0] sm:$0xff] %v350
    %440 = vst [vmem:[#allocation2 + $0xb8] sm:$0xff] %v414
    %v441 = vld [vmem:[%s1] sm:$0xff]
    %v442 = vld [vmem:[%s1 + $0x8] sm:$0xff]
    %v443 = vld [vmem:[%s1 + $0x10] sm:$0xff]
    %v444 = vld [vmem:[%s1 + $0x18] sm:$0xff]
    %v445 = vld [vmem:[%s1 + $0x20] sm:$0xff]
    %v446 = vld [vmem:[%s1 + $0x28] sm:$0xff]
    %v447 = vld [vmem:[%s1 + $0x30] sm:$0xff]
    %v448 = vld [vmem:[%s1 + $0x38] sm:$0xff]
    %v449 = vpack.c.bf16 %v441, %v441
    %v450 = vpack.c.bf16 %v442, %v442
    %v451 = vpack.c.bf16 %v443, %v443
    %v452 = vpack.c.bf16 %v444, %v444
    %v453 = vpack.c.bf16 %v445, %v445
    %v454 = vpack.c.bf16 %v446, %v446
    %v455 = vpack.c.bf16 %v447, %v447
    %v456 = vpack.c.bf16 %v448, %v448
    %v457 = vld [vmem:[%s6] sm:$0xff]
    %v458 = vld [vmem:[%s6 + $0x8] sm:$0xf]
    %v459 = vld [vmem:[%s6 + $0xc] sm:$0xff]
    %v460 = vld [vmem:[%s6 + $0x14] sm:$0xf]
    %v461 = vld [vmem:[%s6 + $0x18] sm:$0xff]
    %v462 = vld [vmem:[%s6 + $0x20] sm:$0xf]
    %v463 = vld [vmem:[%s6 + $0x24] sm:$0xff]
    %v464 = vld [vmem:[%s6 + $0x2c] sm:$0xf]
    %v465 = vld [vmem:[%s6 + $0x30] sm:$0xff]
    %v466 = vld [vmem:[%s6 + $0x38] sm:$0xf]
    %v467 = vld [vmem:[%s6 + $0x3c] sm:$0xff]
    %v468 = vld [vmem:[%s6 + $0x44] sm:$0xf]
    %v469 = vld [vmem:[%s6 + $0x48] sm:$0xff]
    %v470 = vld [vmem:[%s6 + $0x50] sm:$0xf]
    %v471 = vld [vmem:[%s6 + $0x54] sm:$0xff]
    %v472 = vld [vmem:[%s6 + $0x5c] sm:$0xf]
    %v473 = vld [vmem:[%s6 + $0x60] sm:$0xff]
    %v474 = vld [vmem:[%s6 + $0x68] sm:$0xf]
    %v475 = vld [vmem:[%s6 + $0x6c] sm:$0xff]
    %v476 = vld [vmem:[%s6 + $0x74] sm:$0xf]
    %v477 = vld [vmem:[%s6 + $0x78] sm:$0xff]
    %v478 = vld [vmem:[%s6 + $0x80] sm:$0xf]
    %v479 = vld [vmem:[%s6 + $0x84] sm:$0xff]
    %v480 = vld [vmem:[%s6 + $0x8c] sm:$0xf]
    %v481 = vld [vmem:[%s6 + $0x90] sm:$0xff]
    %v482 = vld [vmem:[%s6 + $0x98] sm:$0xf]
    %v483 = vld [vmem:[%s6 + $0x9c] sm:$0xff]
    %v484 = vld [vmem:[%s6 + $0xa4] sm:$0xf]
    %v485 = vld [vmem:[%s6 + $0xa8] sm:$0xff]
    %v486 = vld [vmem:[%s6 + $0xb0] sm:$0xf]
    %v487 = vld [vmem:[%s6 + $0xb4] sm:$0xff]
    %v488 = vld [vmem:[%s6 + $0xbc] sm:$0xf]
    %v489 = vld [vmem:[%s8] sm:$0x7]
    %v491 = vlaneseq
    %v492 = vshrl.u32 %v491, 7
    %v493 = vsub.s32 0, %v492
    %v494 = vrot.slane %v489, %v493
    %v495 = vlaneseq
    %v496 = vshrl.u32 %v495, 7
    %v497 = vsub.s32 1, %v496
    %v498 = vrot.slane %v489, %v497
    %v499 = vlaneseq
    %v500 = vshrl.u32 %v499, 7
    %v501 = vsub.s32 2, %v500
    %v502 = vrot.slane %v489, %v501
    %v514 = vunpack.c.l.b16 %v449
    %v515 = vunpack.c.l.b16 %v450
    %v516 = vunpack.c.l.b16 %v451
    %v517 = vunpack.c.l.b16 %v452
    %v518 = vunpack.c.l.b16 %v453
    %v519 = vunpack.c.l.b16 %v454
    %v520 = vunpack.c.l.b16 %v455
    %v521 = vunpack.c.l.b16 %v456
    %v522 = vpack.c.b16 %v515, %v514
    %v523 = vpack.c.b16 %v517, %v516
    %v524 = vpack.c.b16 %v519, %v518
    %v525 = vpack.c.b16 %v521, %v520
    %v562 = vunpack.c.l.b16 %v457
    %v563 = vunpack.c.h.b16 %v457
    %v564 = vunpack.c.l.b16 %v458
    %v565 = vunpack.c.l.b16 %v459
    %v566 = vunpack.c.h.b16 %v459
    %v567 = vunpack.c.l.b16 %v460
    %v568 = vunpack.c.l.b16 %v461
    %v569 = vunpack.c.h.b16 %v461
    %v570 = vunpack.c.l.b16 %v462
    %v571 = vunpack.c.l.b16 %v463
    %v572 = vunpack.c.h.b16 %v463
    %v573 = vunpack.c.l.b16 %v464
    %v574 = vunpack.c.l.b16 %v465
    %v575 = vunpack.c.h.b16 %v465
    %v576 = vunpack.c.l.b16 %v466
    %v577 = vunpack.c.l.b16 %v467
    %v578 = vunpack.c.h.b16 %v467
    %v579 = vunpack.c.l.b16 %v468
    %v580 = vunpack.c.l.b16 %v469
    %v581 = vunpack.c.h.b16 %v469
    %v582 = vunpack.c.l.b16 %v470
    %v583 = vunpack.c.l.b16 %v471
    %v584 = vunpack.c.h.b16 %v471
    %v585 = vunpack.c.l.b16 %v472
    %v586 = vunpack.c.l.b16 %v473
    %v587 = vunpack.c.h.b16 %v473
    %v588 = vunpack.c.l.b16 %v474
    %v589 = vunpack.c.l.b16 %v475
    %v590 = vunpack.c.h.b16 %v475
    %v591 = vunpack.c.l.b16 %v476
    %v592 = vunpack.c.l.b16 %v477
    %v593 = vunpack.c.h.b16 %v477
    %v594 = vunpack.c.l.b16 %v478
    %v595 = vunpack.c.l.b16 %v479
    %v596 = vunpack.c.h.b16 %v479
    %v597 = vunpack.c.l.b16 %v480
    %v598 = vunpack.c.l.b16 %v481
    %v599 = vunpack.c.h.b16 %v481
    %v600 = vunpack.c.l.b16 %v482
    %v601 = vunpack.c.l.b16 %v483
    %v602 = vunpack.c.h.b16 %v483
    %v603 = vunpack.c.l.b16 %v484
    %v604 = vunpack.c.l.b16 %v485
    %v605 = vunpack.c.h.b16 %v485
    %v606 = vunpack.c.l.b16 %v486
    %v607 = vunpack.c.l.b16 %v487
    %v608 = vunpack.c.h.b16 %v487
    %v609 = vunpack.c.l.b16 %v488
    %v610 = vpack.c.b16 %v565, %v562
    %v611 = vpack.c.b16 %v566, %v563
    %v612 = vpack.c.b16 %v567, %v564
    %v613 = vpack.c.b16 %v571, %v568
    %v614 = vpack.c.b16 %v572, %v569
    %v615 = vpack.c.b16 %v573, %v570
    %v616 = vpack.c.b16 %v577, %v574
    %v617 = vpack.c.b16 %v578, %v575
    %v618 = vpack.c.b16 %v579, %v576
    %v619 = vpack.c.b16 %v583, %v580
    %v620 = vpack.c.b16 %v584, %v581
    %v621 = vpack.c.b16 %v585, %v582
    %v622 = vpack.c.b16 %v589, %v586
    %v623 = vpack.c.b16 %v590, %v587
    %v624 = vpack.c.b16 %v591, %v588
    %v625 = vpack.c.b16 %v595, %v592
    %v626 = vpack.c.b16 %v596, %v593
    %v627 = vpack.c.b16 %v597, %v594
    %v628 = vpack.c.b16 %v601, %v598
    %v629 = vpack.c.b16 %v602, %v599
    %v630 = vpack.c.b16 %v603, %v600
    %v631 = vpack.c.b16 %v607, %v604
    %v632 = vpack.c.b16 %v608, %v605
    %v633 = vpack.c.b16 %v609, %v606
    %658 = vmatprep.subr.bf16.mxu0 %v611
    %659 = vmatpush1.bf16.msra.mxu0 %v610
    %660 = vmatprep.subr.bf16.mxu0 %v614
    %661 = vmatpush1.bf16.msra.mxu0 %v613
    %662 = vmatprep.subr.bf16.mxu0 %v617
    %663 = vmatpush1.bf16.msra.mxu0 %v616
    %664 = vmatprep.subr.bf16.mxu0 %v620
    %665 = vmatpush1.bf16.msra.mxu0 %v619
    %666 = vmatprep.subr.bf16.mxu0 %v623
    %667 = vmatpush1.bf16.msra.mxu0 %v622
    %668 = vmatprep.subr.bf16.mxu0 %v626
    %669 = vmatpush1.bf16.msra.mxu0 %v625
    %670 = vmatprep.subr.bf16.mxu0 %v629
    %671 = vmatpush1.bf16.msra.mxu0 %v628
    %672 = vmatprep.subr.bf16.mxu0 %v632
    %673 = vmatpush1.bf16.msra.mxu0 %v631
    %674 = vmatprep.subr.bf16.mxu0 0
    %675 = vmatpush1.bf16.msra.mxu0 0
    %676 = vmatprep.subr.bf16.mxu0 0
    %677 = vmatpush1.bf16.msra.mxu0 0
    %678 = vmatprep.subr.bf16.mxu0 0
    %679 = vmatpush1.bf16.msra.mxu0 0
    %680 = vmatprep.subr.bf16.mxu0 0
    %681 = vmatpush1.bf16.msra.mxu0 0
    %682 = vmatprep.subr.bf16.mxu0 0
    %683 = vmatpush1.bf16.msra.mxu0 0
    %684 = vmatprep.subr.bf16.mxu0 0
    %685 = vmatpush1.bf16.msra.mxu0 0
    %686 = vmatprep.subr.bf16.mxu0 0
    %687 = vmatpush1.bf16.msra.mxu0 0
    %688 = vmatprep.subr.bf16.mxu0 0
    %689 = vmatpush1.bf16.msra.mxu0 0
    %690 = vmatprep.mubr.bf16.mxu0 0
    %691 = vmatmul.mubr.bf16.gmra.mrb[0].mxu0 %v522
    %v692 = vpop.f32.mrb[0].mxu0
    %v693 = vadd.f32 %v494, %v692
    %v694 = vpop.f32.mrb[0].mxu0
    %v695 = vadd.f32 %v498, %v694
    %v696 = vpop.f32.mrb[0].mxu0
    %v697 = vadd.f32 %v494, %v696
    %v698 = vpop.f32.mrb[0].mxu0
    %v699 = vadd.f32 %v498, %v698
    %700 = vmatprep.mubr.bf16.mxu0 0
    %701 = vmatmul.mubr.bf16.gmra.mrb[0].mxu0 %v523
    %v702 = vpop.f32.mrb[0].mxu0
    %v703 = vadd.f32 %v494, %v702
    %v704 = vpop.f32.mrb[0].mxu0
    %v705 = vadd.f32 %v498, %v704
    %v706 = vpop.f32.mrb[0].mxu0
    %v707 = vadd.f32 %v494, %v706
    %v708 = vpop.f32.mrb[0].mxu0
    %v709 = vadd.f32 %v498, %v708
    %710 = vmatprep.mubr.bf16.mxu0 0
    %711 = vmatmul.mubr.bf16.gmra.mrb[0].mxu0 %v524
    %v712 = vpop.f32.mrb[0].mxu0
    %v713 = vadd.f32 %v494, %v712
    %v714 = vpop.f32.mrb[0].mxu0
    %v715 = vadd.f32 %v498, %v714
    %v716 = vpop.f32.mrb[0].mxu0
    %v717 = vadd.f32 %v494, %v716
    %v718 = vpop.f32.mrb[0].mxu0
    %v719 = vadd.f32 %v498, %v718
    %720 = vmatprep.mubr.bf16.mxu0 0
    %721 = vmatmul.mubr.bf16.gmra.mrb[0].mxu0 %v525
    %v722 = vpop.f32.mrb[0].mxu0
    %v723 = vadd.f32 %v494, %v722
    %v724 = vpop.f32.mrb[0].mxu0
    %v725 = vadd.f32 %v498, %v724
    %v726 = vpop.f32.mrb[0].mxu0
    %v727 = vadd.f32 %v494, %v726
    %v728 = vpop.f32.mrb[0].mxu0
    %v729 = vadd.f32 %v498, %v728
    %730 = vdwg.mxu0
    %731 = vmatprep.subr.bf16.mxu0 0
    %732 = vmatpush1.bf16.msra.mxu0 %v612
    %733 = vmatprep.subr.bf16.mxu0 0
    %734 = vmatpush1.bf16.msra.mxu0 %v615
    %735 = vmatprep.subr.bf16.mxu0 0
    %736 = vmatpush1.bf16.msra.mxu0 %v618
    %737 = vmatprep.subr.bf16.mxu0 0
    %738 = vmatpush1.bf16.msra.mxu0 %v621
    %739 = vmatprep.subr.bf16.mxu0 0
    %740 = vmatpush1.bf16.msra.mxu0 %v624
    %741 = vmatprep.subr.bf16.mxu0 0
    %742 = vmatpush1.bf16.msra.mxu0 %v627
    %743 = vmatprep.subr.bf16.mxu0 0
    %744 = vmatpush1.bf16.msra.mxu0 %v630
    %745 = vmatprep.subr.bf16.mxu0 0
    %746 = vmatpush1.bf16.msra.mxu0 %v633
    %747 = vmatprep.subr.bf16.mxu0 0
    %748 = vmatpush1.bf16.msra.mxu0 0
    %749 = vmatprep.subr.bf16.mxu0 0
    %750 = vmatpush1.bf16.msra.mxu0 0
    %751 = vmatprep.subr.bf16.mxu0 0
    %752 = vmatpush1.bf16.msra.mxu0 0
    %753 = vmatprep.subr.bf16.mxu0 0
    %754 = vmatpush1.bf16.msra.mxu0 0
    %755 = vmatprep.subr.bf16.mxu0 0
    %756 = vmatpush1.bf16.msra.mxu0 0
    %757 = vmatprep.subr.bf16.mxu0 0
    %758 = vmatpush1.bf16.msra.mxu0 0
    %759 = vmatprep.subr.bf16.mxu0 0
    %760 = vmatpush1.bf16.msra.mxu0 0
    %761 = vmatprep.subr.bf16.mxu0 0
    %762 = vmatpush1.bf16.msra.mxu0 0
    %763 = vmatprep.mubr.bf16.mxu0 0
    %764 = vmatmul.mubr.bf16.gmra.mrb[0].mxu0 %v522
    %v765 = vpop.f32.mrb[0].mxu0
    %v766 = vadd.f32 %v502, %v765
    %v767 = vpop.f32.mrb[0].mxu0
    %v768 = vpop.f32.mrb[0].mxu0
    %v769 = vadd.f32 %v502, %v768
    %v770 = vpop.f32.mrb[0].mxu0
    %771 = vmatprep.mubr.bf16.mxu0 0
    %772 = vmatmul.mubr.bf16.gmra.mrb[0].mxu0 %v523
    %v773 = vpop.f32.mrb[0].mxu0
    %v774 = vadd.f32 %v502, %v773
    %v775 = vpop.f32.mrb[0].mxu0
    %v776 = vpop.f32.mrb[0].mxu0
    %v777 = vadd.f32 %v502, %v776
    %v778 = vpop.f32.mrb[0].mxu0
    %779 = vmatprep.mubr.bf16.mxu0 0
    %780 = vmatmul.mubr.bf16.gmra.mrb[0].mxu0 %v524
    %v781 = vpop.f32.mrb[0].mxu0
    %v782 = vadd.f32 %v502, %v781
    %v783 = vpop.f32.mrb[0].mxu0
    %v784 = vpop.f32.mrb[0].mxu0
    %v785 = vadd.f32 %v502, %v784
    %v786 = vpop.f32.mrb[0].mxu0
    %787 = vmatprep.mubr.bf16.mxu0 0
    %788 = vmatmul.mubr.bf16.gmra.mrb[0].mxu0 %v525
    %v789 = vpop.f32.mrb[0].mxu0
    %v790 = vadd.f32 %v502, %v789
    %v791 = vpop.f32.mrb[0].mxu0
    %v792 = vpop.f32.mrb[0].mxu0
    %v793 = vadd.f32 %v502, %v792
    %v794 = vpop.f32.mrb[0].mxu0
    %795 = vdwg.mxu0
    %796 = vst [vmem:[#allocation3] sm:$0xff] %v693
    %797 = vst [vmem:[#allocation3 + $0x8] sm:$0xff] %v695
    %798 = vst [vmem:[#allocation3 + $0x10] sm:$0xff] %v766
    %799 = vst [vmem:[#allocation3 + $0x18] sm:$0xff] %v697
    %800 = vst [vmem:[#allocation3 + $0x20] sm:$0xff] %v699
    %801 = vst [vmem:[#allocation3 + $0x28] sm:$0xff] %v769
    %802 = vst [vmem:[#allocation3 + $0x30] sm:$0xff] %v703
    %803 = vst [vmem:[#allocation3 + $0x38] sm:$0xff] %v705
    %804 = vst [vmem:[#allocation3 + $0x40] sm:$0xff] %v774
    %805 = vst [vmem:[#allocation3 + $0x48] sm:$0xff] %v707
    %806 = vst [vmem:[#allocation3 + $0x50] sm:$0xff] %v709
    %807 = vst [vmem:[#allocation3 + $0x58] sm:$0xff] %v777
    %808 = vst [vmem:[#allocation3 + $0x60] sm:$0xff] %v713
    %809 = vst [vmem:[#allocation3 + $0x68] sm:$0xff] %v715
    %810 = vst [vmem:[#allocation3 + $0x70] sm:$0xff] %v782
    %811 = vst [vmem:[#allocation3 + $0x78] sm:$0xff] %v717
    %812 = vst [vmem:[#allocation3 + $0x80] sm:$0xff] %v719
    %813 = vst [vmem:[#allocation3 + $0x88] sm:$0xff] %v785
    %814 = vst [vmem:[#allocation3 + $0x90] sm:$0xff] %v723
    %815 = vst [vmem:[#allocation3 + $0x98] sm:$0xff] %v725
    %816 = vst [vmem:[#allocation3 + $0xa0] sm:$0xff] %v790
    %817 = vst [vmem:[#allocation3 + $0xa8] sm:$0xff] %v727
    %818 = vst [vmem:[#allocation3 + $0xb0] sm:$0xff] %v729
    %819 = vst [vmem:[#allocation3 + $0xb8] sm:$0xff] %v793
    %v820 = vld [vmem:[%s3] sm:$0xff]
    %v821 = vld [vmem:[%s3 + $0x8] sm:$0xf]
    %v822 = vld [vmem:[%s3 + $0xc] sm:$0xff]
    %v823 = vld [vmem:[%s3 + $0x14] sm:$0xf]
    %v824 = vld [vmem:[%s3 + $0x18] sm:$0xff]
    %v825 = vld [vmem:[%s3 + $0x20] sm:$0xf]
    %v826 = vld [vmem:[%s3 + $0x24] sm:$0xff]
    %v827 = vld [vmem:[%s3 + $0x2c] sm:$0xf]
    %v828 = vld [vmem:[%s3 + $0x30] sm:$0xff]
    %v829 = vld [vmem:[%s3 + $0x38] sm:$0xf]
    %v830 = vld [vmem:[%s3 + $0x3c] sm:$0xff]
    %v831 = vld [vmem:[%s3 + $0x44] sm:$0xf]
    %v832 = vld [vmem:[%s3 + $0x48] sm:$0xff]
    %v833 = vld [vmem:[%s3 + $0x50] sm:$0xf]
    %v834 = vld [vmem:[%s3 + $0x54] sm:$0xff]
    %v835 = vld [vmem:[%s3 + $0x5c] sm:$0xf]
    %v836 = vld [vmem:[%s3 + $0x60] sm:$0xff]
    %v837 = vld [vmem:[%s3 + $0x68] sm:$0xf]
    %v838 = vld [vmem:[%s3 + $0x6c] sm:$0xff]
    %v839 = vld [vmem:[%s3 + $0x74] sm:$0xf]
    %v840 = vld [vmem:[%s3 + $0x78] sm:$0xff]
    %v841 = vld [vmem:[%s3 + $0x80] sm:$0xf]
    %v842 = vld [vmem:[%s3 + $0x84] sm:$0xff]
    %v843 = vld [vmem:[%s3 + $0x8c] sm:$0xf]
    %v844 = vld [vmem:[%s3 + $0x90] sm:$0xff]
    %v845 = vld [vmem:[%s3 + $0x98] sm:$0xf]
    %v846 = vld [vmem:[%s3 + $0x9c] sm:$0xff]
    %v847 = vld [vmem:[%s3 + $0xa4] sm:$0xf]
    %v848 = vld [vmem:[%s3 + $0xa8] sm:$0xff]
    %v849 = vld [vmem:[%s3 + $0xb0] sm:$0xf]
    %v850 = vld [vmem:[%s3 + $0xb4] sm:$0xff]
    %v851 = vld [vmem:[%s3 + $0xbc] sm:$0xf]
    %v884 = vunpack.c.l.b16 %v820
    %v885 = vunpack.c.h.b16 %v820
    %v886 = vunpack.c.l.b16 %v821
    %v887 = vunpack.c.l.b16 %v822
    %v888 = vunpack.c.h.b16 %v822
    %v889 = vunpack.c.l.b16 %v823
    %v890 = vunpack.c.l.b16 %v824
    %v891 = vunpack.c.h.b16 %v824
    %v892 = vunpack.c.l.b16 %v825
    %v893 = vunpack.c.l.b16 %v826
    %v894 = vunpack.c.h.b16 %v826
    %v895 = vunpack.c.l.b16 %v827
    %v896 = vunpack.c.l.b16 %v828
    %v897 = vunpack.c.h.b16 %v828
    %v898 = vunpack.c.l.b16 %v829
    %v899 = vunpack.c.l.b16 %v830
    %v900 = vunpack.c.h.b16 %v830
    %v901 = vunpack.c.l.b16 %v831
    %v902 = vunpack.c.l.b16 %v832
    %v903 = vunpack.c.h.b16 %v832
    %v904 = vunpack.c.l.b16 %v833
    %v905 = vunpack.c.l.b16 %v834
    %v906 = vunpack.c.h.b16 %v834
    %v907 = vunpack.c.l.b16 %v835
    %v908 = vunpack.c.l.b16 %v836
    %v909 = vunpack.c.h.b16 %v836
    %v910 = vunpack.c.l.b16 %v837
    %v911 = vunpack.c.l.b16 %v838
    %v912 = vunpack.c.h.b16 %v838
    %v913 = vunpack.c.l.b16 %v839
    %v914 = vunpack.c.l.b16 %v840
    %v915 = vunpack.c.h.b16 %v840
    %v916 = vunpack.c.l.b16 %v841
    %v917 = vunpack.c.l.b16 %v842
    %v918 = vunpack.c.h.b16 %v842
    %v919 = vunpack.c.l.b16 %v843
    %v920 = vunpack.c.l.b16 %v844
    %v921 = vunpack.c.h.b16 %v844
    %v922 = vunpack.c.l.b16 %v845
    %v923 = vunpack.c.l.b16 %v846
    %v924 = vunpack.c.h.b16 %v846
    %v925 = vunpack.c.l.b16 %v847
    %v926 = vunpack.c.l.b16 %v848
    %v927 = vunpack.c.h.b16 %v848
    %v928 = vunpack.c.l.b16 %v849
    %v929 = vunpack.c.l.b16 %v850
    %v930 = vunpack.c.h.b16 %v850
    %v931 = vunpack.c.l.b16 %v851
    %v932 = vpack.c.b16 %v887, %v884
    %v933 = vpack.c.b16 %v888, %v885
    %v934 = vpack.c.b16 %v889, %v886
    %v935 = vpack.c.b16 %v893, %v890
    %v936 = vpack.c.b16 %v894, %v891
    %v937 = vpack.c.b16 %v895, %v892
    %v938 = vpack.c.b16 %v899, %v896
    %v939 = vpack.c.b16 %v900, %v897
    %v940 = vpack.c.b16 %v901, %v898
    %v941 = vpack.c.b16 %v905, %v902
    %v942 = vpack.c.b16 %v906, %v903
    %v943 = vpack.c.b16 %v907, %v904
    %v944 = vpack.c.b16 %v911, %v908
    %v945 = vpack.c.b16 %v912, %v909
    %v946 = vpack.c.b16 %v913, %v910
    %v947 = vpack.c.b16 %v917, %v914
    %v948 = vpack.c.b16 %v918, %v915
    %v949 = vpack.c.b16 %v919, %v916
    %v950 = vpack.c.b16 %v923, %v920
    %v951 = vpack.c.b16 %v924, %v921
    %v952 = vpack.c.b16 %v925, %v922
    %v953 = vpack.c.b16 %v929, %v926
    %v954 = vpack.c.b16 %v930, %v927
    %v955 = vpack.c.b16 %v931, %v928
    %980 = vmatprep.subr.bf16.mxu0 %v933
    %981 = vmatpush1.bf16.msra.mxu0 %v932
    %982 = vmatprep.subr.bf16.mxu0 %v936
    %983 = vmatpush1.bf16.msra.mxu0 %v935
    %984 = vmatprep.subr.bf16.mxu0 %v939
    %985 = vmatpush1.bf16.msra.mxu0 %v938
    %986 = vmatprep.subr.bf16.mxu0 %v942
    %987 = vmatpush1.bf16.msra.mxu0 %v941
    %988 = vmatprep.subr.bf16.mxu0 %v945
    %989 = vmatpush1.bf16.msra.mxu0 %v944
    %990 = vmatprep.subr.bf16.mxu0 %v948
    %991 = vmatpush1.bf16.msra.mxu0 %v947
    %992 = vmatprep.subr.bf16.mxu0 %v951
    %993 = vmatpush1.bf16.msra.mxu0 %v950
    %994 = vmatprep.subr.bf16.mxu0 %v954
    %995 = vmatpush1.bf16.msra.mxu0 %v953
    %996 = vmatprep.subr.bf16.mxu0 0
    %997 = vmatpush1.bf16.msra.mxu0 0
    %998 = vmatprep.subr.bf16.mxu0 0
    %999 = vmatpush1.bf16.msra.mxu0 0
    %1000 = vmatprep.subr.bf16.mxu0 0
    %1001 = vmatpush1.bf16.msra.mxu0 0
    %1002 = vmatprep.subr.bf16.mxu0 0
    %1003 = vmatpush1.bf16.msra.mxu0 0
    %1004 = vmatprep.subr.bf16.mxu0 0
    %1005 = vmatpush1.bf16.msra.mxu0 0
    %1006 = vmatprep.subr.bf16.mxu0 0
    %1007 = vmatpush1.bf16.msra.mxu0 0
    %1008 = vmatprep.subr.bf16.mxu0 0
    %1009 = vmatpush1.bf16.msra.mxu0 0
    %1010 = vmatprep.subr.bf16.mxu0 0
    %1011 = vmatpush1.bf16.msra.mxu0 0
    %1012 = vmatprep.mubr.bf16.mxu0 0
    %1013 = vmatmul.mubr.bf16.gmra.mrb[0].mxu0 0
    %v1014 = vpop.f32.mrb[0].mxu0
    %v1015 = vadd.f32 0.0, %v1014
    %v1016 = vpop.f32.mrb[0].mxu0
    %v1017 = vadd.f32 0.0, %v1016
    %v1018 = vpop.f32.mrb[0].mxu0
    %v1019 = vpop.f32.mrb[0].mxu0
    %1020 = vdwg.mxu0
    %1021 = vmatprep.subr.bf16.mxu0 0
    %1022 = vmatpush1.bf16.msra.mxu0 %v934
    %1023 = vmatprep.subr.bf16.mxu0 0
    %1024 = vmatpush1.bf16.msra.mxu0 %v937
    %1025 = vmatprep.subr.bf16.mxu0 0
    %1026 = vmatpush1.bf16.msra.mxu0 %v940
    %1027 = vmatprep.subr.bf16.mxu0 0
    %1028 = vmatpush1.bf16.msra.mxu0 %v943
    %1029 = vmatprep.subr.bf16.mxu0 0
    %1030 = vmatpush1.bf16.msra.mxu0 %v946
    %1031 = vmatprep.subr.bf16.mxu0 0
    %1032 = vmatpush1.bf16.msra.mxu0 %v949
    %1033 = vmatprep.subr.bf16.mxu0 0
    %1034 = vmatpush1.bf16.msra.mxu0 %v952
    %1035 = vmatprep.subr.bf16.mxu0 0
    %1036 = vmatpush1.bf16.msra.mxu0 %v955
    %1037 = vmatprep.subr.bf16.mxu0 0
    %1038 = vmatpush1.bf16.msra.mxu0 0
    %1039 = vmatprep.subr.bf16.mxu0 0
    %1040 = vmatpush1.bf16.msra.mxu0 0
    %1041 = vmatprep.subr.bf16.mxu0 0
    %1042 = vmatpush1.bf16.msra.mxu0 0
    %1043 = vmatprep.subr.bf16.mxu0 0
    %1044 = vmatpush1.bf16.msra.mxu0 0
    %1045 = vmatprep.subr.bf16.mxu0 0
    %1046 = vmatpush1.bf16.msra.mxu0 0
    %1047 = vmatprep.subr.bf16.mxu0 0
    %1048 = vmatpush1.bf16.msra.mxu0 0
    %1049 = vmatprep.subr.bf16.mxu0 0
    %1050 = vmatpush1.bf16.msra.mxu0 0
    %1051 = vmatprep.subr.bf16.mxu0 0
    %1052 = vmatpush1.bf16.msra.mxu0 0
    %1053 = vmatprep.mubr.bf16.mxu0 0
    %1054 = vmatmul.mubr.bf16.gmra.mrb[0].mxu0 0
    %v1055 = vpop.f32.mrb[0].mxu0
    %v1056 = vadd.f32 0.0, %v1055
    %v1057 = vpop.f32.mrb[0].mxu0
    %v1058 = vpop.f32.mrb[0].mxu0
    %v1059 = vpop.f32.mrb[0].mxu0
    %1060 = vdwg.mxu0
    %v1061 = vld [vmem:[#allocation2] sm:$0xff]
    %v1062 = vld [vmem:[#allocation2 + $0x8] sm:$0xff]
    %v1063 = vld [vmem:[#allocation2 + $0x10] sm:$0xff]
    %v1064 = vadd.f32 %v1061, %v1015
    %v1065 = vxor.u32 %v1064, 2147483648
    %v1066 = vmul.f32 %v1065, 1.442695
    %v1067 = vpow.pop %v1066
    %v1068 = vadd.f32 %v1067, 1.0
    %v1069 = vrcp.pop %v1068
    %v1070 = vmul.f32 1.0, %v1069
    %v1071 = vadd.f32 %v1062, %v1017
    %v1072 = vxor.u32 %v1071, 2147483648
    %v1073 = vmul.f32 %v1072, 1.442695
    %v1074 = vpow.pop %v1073
    %v1075 = vadd.f32 %v1074, 1.0
    %v1076 = vrcp.pop %v1075
    %v1077 = vmul.f32 1.0, %v1076
    %v1078 = vld [vmem:[%s5] sm:$0x1]
    %v1080 = vlaneseq
    %v1081 = vshrl.u32 %v1080, 7
    %v1082 = vsub.s32 0, %v1081
    %v1083 = vrot.slane %v1078, %v1082
    %v1085 = vadd.f32 %v1056, %v1083
    %v1086 = vmul.f32 %v1070, %v1085
    %v1087 = vadd.f32 %v1063, %v1086
    %v1088 = vtanh.pop %v1087
    %v1089 = vsub.f32 1.0, %v1077
    %v1090 = vmul.f32 %v1089, %v1088
    %v1091 = vmul.f32 %v1077, 0.0
    %v1092 = vadd.f32 %v1090, %v1091
    %v1093 = vpack.c.bf16 %v1092, %v1092
    %1094 = vmatprep.subr.bf16.mxu0 %v933
    %1095 = vmatpush1.bf16.msra.mxu0 %v932
    %1096 = vmatprep.subr.bf16.mxu0 %v936
    %1097 = vmatpush1.bf16.msra.mxu0 %v935
    %1098 = vmatprep.subr.bf16.mxu0 %v939
    %1099 = vmatpush1.bf16.msra.mxu0 %v938
    %1100 = vmatprep.subr.bf16.mxu0 %v942
    %1101 = vmatpush1.bf16.msra.mxu0 %v941
    %1102 = vmatprep.subr.bf16.mxu0 %v945
    %1103 = vmatpush1.bf16.msra.mxu0 %v944
    %1104 = vmatprep.subr.bf16.mxu0 %v948
    %1105 = vmatpush1.bf16.msra.mxu0 %v947
    %1106 = vmatprep.subr.bf16.mxu0 %v951
    %1107 = vmatpush1.bf16.msra.mxu0 %v950
    %1108 = vmatprep.subr.bf16.mxu0 %v954
    %1109 = vmatpush1.bf16.msra.mxu0 %v953
    %1110 = vmatprep.subr.bf16.mxu0 0
    %1111 = vmatpush1.bf16.msra.mxu0 0
    %1112 = vmatprep.subr.bf16.mxu0 0
    %1113 = vmatpush1.bf16.msra.mxu0 0
    %1114 = vmatprep.subr.bf16.mxu0 0
    %1115 = vmatpush1.bf16.msra.mxu0 0
    %1116 = vmatprep.subr.bf16.mxu0 0
    %1117 = vmatpush1.bf16.msra.mxu0 0
    %1118 = vmatprep.subr.bf16.mxu0 0
    %1119 = vmatpush1.bf16.msra.mxu0 0
    %1120 = vmatprep.subr.bf16.mxu0 0
    %1121 = vmatpush1.bf16.msra.mxu0 0
    %1122 = vmatprep.subr.bf16.mxu0 0
    %1123 = vmatpush1.bf16.msra.mxu0 0
    %1124 = vmatprep.subr.bf16.mxu0 0
    %1125 = vmatpush1.bf16.msra.mxu0 0
    %1126 = vmatprep.mubr.bf16.mxu0 0
    %1127 = vmatmul.mubr.bf16.gmra.mrb[0].mxu0 %v1093
    %v1128 = vpop.f32.mrb[0].mxu0
    %v1129 = vadd.f32 0.0, %v1128
    %v1130 = vpop.f32.mrb[0].mxu0
    %v1131 = vadd.f32 0.0, %v1130
    %v1132 = vpop.f32.mrb[0].mxu0
    %v1133 = vpop.f32.mrb[0].mxu0
    %1134 = vdwg.mxu0
    %1135 = vmatprep.subr.bf16.mxu0 0
    %1136 = vmatpush1.bf16.msra.mxu0 %v934
    %1137 = vmatprep.subr.bf16.mxu0 0
    %1138 = vmatpush1.bf16.msra.mxu0 %v937
    %1139 = vmatprep.subr.bf16.mxu0 0
    %1140 = vmatpush1.bf16.msra.mxu0 %v940
    %1141 = vmatprep.subr.bf16.mxu0 0
    %1142 = vmatpush1.bf16.msra.mxu0 %v943
    %1143 = vmatprep.subr.bf16.mxu0 0
    %1144 = vmatpush1.bf16.msra.mxu0 %v946
    %1145 = vmatprep.subr.bf16.mxu0 0
    %1146 = vmatpush1.bf16.msra.mxu0 %v949
    %1147 = vmatprep.subr.bf16.mxu0 0
    %1148 = vmatpush1.bf16.msra.mxu0 %v952
    %1149 = vmatprep.subr.bf16.mxu0 0
    %1150 = vmatpush1.bf16.msra.mxu0 %v955
    %1151 = vmatprep.subr.bf16.mxu0 0
    %1152 = vmatpush1.bf16.msra.mxu0 0
    %1153 = vmatprep.subr.bf16.mxu0 0
    %1154 = vmatpush1.bf16.msra.mxu0 0
    %1155 = vmatprep.subr.bf16.mxu0 0
    %1156 = vmatpush1.bf16.msra.mxu0 0
    %1157 = vmatprep.subr.bf16.mxu0 0
    %1158 = vmatpush1.bf16.msra.mxu0 0
    %1159 = vmatprep.subr.bf16.mxu0 0
    %1160 = vmatpush1.bf16.msra.mxu0 0
    %1161 = vmatprep.subr.bf16.mxu0 0
    %1162 = vmatpush1.bf16.msra.mxu0 0
    %1163 = vmatprep.subr.bf16.mxu0 0
    %1164 = vmatpush1.bf16.msra.mxu0 0
    %1165 = vmatprep.subr.bf16.mxu0 0
    %1166 = vmatpush1.bf16.msra.mxu0 0
    %1167 = vmatprep.mubr.bf16.mxu0 0
    %1168 = vmatmul.mubr.bf16.gmra.mrb[0].mxu0 %v1093
    %v1169 = vpop.f32.mrb[0].mxu0
    %v1170 = vadd.f32 0.0, %v1169
    %v1171 = vpop.f32.mrb[0].mxu0
    %v1172 = vpop.f32.mrb[0].mxu0
    %v1173 = vpop.f32.mrb[0].mxu0
    %1174 = vdwg.mxu0
    %s1175 = scalar_lea.vmem [#allocation2], 24
    %v1176 = vld [vmem:[%s1175] sm:$0xff]
    %v1177 = vld [vmem:[%s1175 + $0x8] sm:$0xff]
    %v1178 = vld [vmem:[%s1175 + $0x10] sm:$0xff]
    %v1179 = vadd.f32 %v1176, %v1129
    %v1180 = vxor.u32 %v1179, 2147483648
    %v1181 = vmul.f32 %v1180, 1.442695
    %v1182 = vpow.pop %v1181
    %v1183 = vadd.f32 %v1182, 1.0
    %v1184 = vrcp.pop %v1183
    %v1185 = vmul.f32 1.0, %v1184
    %v1186 = vadd.f32 %v1177, %v1131
    %v1187 = vxor.u32 %v1186, 2147483648
    %v1188 = vmul.f32 %v1187, 1.442695
    %v1189 = vpow.pop %v1188
    %v1190 = vadd.f32 %v1189, 1.0
    %v1191 = vrcp.pop %v1190
    %v1192 = vmul.f32 1.0, %v1191
    %v1193 = vadd.f32 %v1170, %v1083
    %v1194 = vmul.f32 %v1185, %v1193
    %v1195 = vadd.f32 %v1178, %v1194
    %v1196 = vtanh.pop %v1195
    %v1197 = vsub.f32 1.0, %v1192
    %v1198 = vmul.f32 %v1197, %v1196
    %v1199 = vmul.f32 %v1192, %v1092
    %v1200 = vadd.f32 %v1198, %v1199
    %v1201 = vpack.c.bf16 %v1200, %v1200
    %1202 = vmatprep.subr.bf16.mxu0 %v933
    %1203 = vmatpush1.bf16.msra.mxu0 %v932
    %1204 = vmatprep.subr.bf16.mxu0 %v936
    %1205 = vmatpush1.bf16.msra.mxu0 %v935
    %1206 = vmatprep.subr.bf16.mxu0 %v939
    %1207 = vmatpush1.bf16.msra.mxu0 %v938
    %1208 = vmatprep.subr.bf16.mxu0 %v942
    %1209 = vmatpush1.bf16.msra.mxu0 %v941
    %1210 = vmatprep.subr.bf16.mxu0 %v945
    %1211 = vmatpush1.bf16.msra.mxu0 %v944
    %1212 = vmatprep.subr.bf16.mxu0 %v948
    %1213 = vmatpush1.bf16.msra.mxu0 %v947
    %1214 = vmatprep.subr.bf16.mxu0 %v951
    %1215 = vmatpush1.bf16.msra.mxu0 %v950
    %1216 = vmatprep.subr.bf16.mxu0 %v954
    %1217 = vmatpush1.bf16.msra.mxu0 %v953
    %1218 = vmatprep.subr.bf16.mxu0 0
    %1219 = vmatpush1.bf16.msra.mxu0 0
    %1220 = vmatprep.subr.bf16.mxu0 0
    %1221 = vmatpush1.bf16.msra.mxu0 0
    %1222 = vmatprep.subr.bf16.mxu0 0
    %1223 = vmatpush1.bf16.msra.mxu0 0
    %1224 = vmatprep.subr.bf16.mxu0 0
    %1225 = vmatpush1.bf16.msra.mxu0 0
    %1226 = vmatprep.subr.bf16.mxu0 0
    %1227 = vmatpush1.bf16.msra.mxu0 0
    %1228 = vmatprep.subr.bf16.mxu0 0
    %1229 = vmatpush1.bf16.msra.mxu0 0
    %1230 = vmatprep.subr.bf16.mxu0 0
    %1231 = vmatpush1.bf16.msra.mxu0 0
    %1232 = vmatprep.subr.bf16.mxu0 0
    %1233 = vmatpush1.bf16.msra.mxu0 0
    %1234 = vmatprep.mubr.bf16.mxu0 0
    %1235 = vmatmul.mubr.bf16.gmra.mrb[0].mxu0 %v1201
    %v1236 = vpop.f32.mrb[0].mxu0
    %v1237 = vadd.f32 0.0, %v1236
    %v1238 = vpop.f32.mrb[0].mxu0
    %v1239 = vadd.f32 0.0, %v1238
    %v1240 = vpop.f32.mrb[0].mxu0
    %v1241 = vpop.f32.mrb[0].mxu0
    %1242 = vdwg.mxu0
    %1243 = vmatprep.subr.bf16.mxu0 0
    %1244 = vmatpush1.bf16.msra.mxu0 %v934
    %1245 = vmatprep.subr.bf16.mxu0 0
    %1246 = vmatpush1.bf16.msra.mxu0 %v937
    %1247 = vmatprep.subr.bf16.mxu0 0
    %1248 = vmatpush1.bf16.msra.mxu0 %v940
    %1249 = vmatprep.subr.bf16.mxu0 0
    %1250 = vmatpush1.bf16.msra.mxu0 %v943
    %1251 = vmatprep.subr.bf16.mxu0 0
    %1252 = vmatpush1.bf16.msra.mxu0 %v946
    %1253 = vmatprep.subr.bf16.mxu0 0
    %1254 = vmatpush1.bf16.msra.mxu0 %v949
    %1255 = vmatprep.subr.bf16.mxu0 0
    %1256 = vmatpush1.bf16.msra.mxu0 %v952
    %1257 = vmatprep.subr.bf16.mxu0 0
    %1258 = vmatpush1.bf16.msra.mxu0 %v955
    %1259 = vmatprep.subr.bf16.mxu0 0
    %1260 = vmatpush1.bf16.msra.mxu0 0
    %1261 = vmatprep.subr.bf16.mxu0 0
    %1262 = vmatpush1.bf16.msra.mxu0 0
    %1263 = vmatprep.subr.bf16.mxu0 0
    %1264 = vmatpush1.bf16.msra.mxu0 0
    %1265 = vmatprep.subr.bf16.mxu0 0
    %1266 = vmatpush1.bf16.msra.mxu0 0
    %1267 = vmatprep.subr.bf16.mxu0 0
    %1268 = vmatpush1.bf16.msra.mxu0 0
    %1269 = vmatprep.subr.bf16.mxu0 0
    %1270 = vmatpush1.bf16.msra.mxu0 0
    %1271 = vmatprep.subr.bf16.mxu0 0
    %1272 = vmatpush1.bf16.msra.mxu0 0
    %1273 = vmatprep.subr.bf16.mxu0 0
    %1274 = vmatpush1.bf16.msra.mxu0 0
    %1275 = vmatprep.mubr.bf16.mxu0 0
    %1276 = vmatmul.mubr.bf16.gmra.mrb[0].mxu0 %v1201
    %v1277 = vpop.f32.mrb[0].mxu0
    %v1278 = vadd.f32 0.0, %v1277
    %v1279 = vpop.f32.mrb[0].mxu0
    %v1280 = vpop.f32.mrb[0].mxu0
    %v1281 = vpop.f32.mrb[0].mxu0
    %1282 = vdwg.mxu0
    %s1283 = scalar_lea.vmem [#allocation2], 48
    %v1284 = vld [vmem:[%s1283] sm:$0xff]
    %v1285 = vld [vmem:[%s1283 + $0x8] sm:$0xff]
    %v1286 = vld [vmem:[%s1283 + $0x10] sm:$0xff]
    %v1287 = vadd.f32 %v1284, %v1237
    %v1288 = vxor.u32 %v1287, 2147483648
    %v1289 = vmul.f32 %v1288, 1.442695
    %v1290 = vpow.pop %v1289
    %v1291 = vadd.f32 %v1290, 1.0
    %v1292 = vrcp.pop %v1291
    %v1293 = vmul.f32 1.0, %v1292
    %v1294 = vadd.f32 %v1285, %v1239
    %v1295 = vxor.u32 %v1294, 2147483648
    %v1296 = vmul.f32 %v1295, 1.442695
    %v1297 = vpow.pop %v1296
    %v1298 = vadd.f32 %v1297, 1.0
    %v1299 = vrcp.pop %v1298
    %v1300 = vmul.f32 1.0, %v1299
    %v1301 = vadd.f32 %v1278, %v1083
    %v1302 = vmul.f32 %v1293, %v1301
    %v1303 = vadd.f32 %v1286, %v1302
    %v1304 = vtanh.pop %v1303
    %v1305 = vsub.f32 1.0, %v1300
    %v1306 = vmul.f32 %v1305, %v1304
    %v1307 = vmul.f32 %v1300, %v1200
    %v1308 = vadd.f32 %v1306, %v1307
    %v1309 = vpack.c.bf16 %v1308, %v1308
    %1310 = vmatprep.subr.bf16.mxu0 %v933
    %1311 = vmatpush1.bf16.msra.mxu0 %v932
    %1312 = vmatprep.subr.bf16.mxu0 %v936
    %1313 = vmatpush1.bf16.msra.mxu0 %v935
    %1314 = vmatprep.subr.bf16.mxu0 %v939
    %1315 = vmatpush1.bf16.msra.mxu0 %v938
    %1316 = vmatprep.subr.bf16.mxu0 %v942
    %1317 = vmatpush1.bf16.msra.mxu0 %v941
    %1318 = vmatprep.subr.bf16.mxu0 %v945
    %1319 = vmatpush1.bf16.msra.mxu0 %v944
    %1320 = vmatprep.subr.bf16.mxu0 %v948
    %1321 = vmatpush1.bf16.msra.mxu0 %v947
    %1322 = vmatprep.subr.bf16.mxu0 %v951
    %1323 = vmatpush1.bf16.msra.mxu0 %v950
    %1324 = vmatprep.subr.bf16.mxu0 %v954
    %1325 = vmatpush1.bf16.msra.mxu0 %v953
    %1326 = vmatprep.subr.bf16.mxu0 0
    %1327 = vmatpush1.bf16.msra.mxu0 0
    %1328 = vmatprep.subr.bf16.mxu0 0
    %1329 = vmatpush1.bf16.msra.mxu0 0
    %1330 = vmatprep.subr.bf16.mxu0 0
    %1331 = vmatpush1.bf16.msra.mxu0 0
    %1332 = vmatprep.subr.bf16.mxu0 0
    %1333 = vmatpush1.bf16.msra.mxu0 0
    %1334 = vmatprep.subr.bf16.mxu0 0
    %1335 = vmatpush1.bf16.msra.mxu0 0
    %1336 = vmatprep.subr.bf16.mxu0 0
    %1337 = vmatpush1.bf16.msra.mxu0 0
    %1338 = vmatprep.subr.bf16.mxu0 0
    %1339 = vmatpush1.bf16.msra.mxu0 0
    %1340 = vmatprep.subr.bf16.mxu0 0
    %1341 = vmatpush1.bf16.msra.mxu0 0
    %1342 = vmatprep.mubr.bf16.mxu0 0
    %1343 = vmatmul.mubr.bf16.gmra.mrb[0].mxu0 %v1309
    %v1344 = vpop.f32.mrb[0].mxu0
    %v1345 = vadd.f32 0.0, %v1344
    %v1346 = vpop.f32.mrb[0].mxu0
    %v1347 = vadd.f32 0.0, %v1346
    %v1348 = vpop.f32.mrb[0].mxu0
    %v1349 = vpop.f32.mrb[0].mxu0
    %1350 = vdwg.mxu0
    %1351 = vmatprep.subr.bf16.mxu0 0
    %1352 = vmatpush1.bf16.msra.mxu0 %v934
    %1353 = vmatprep.subr.bf16.mxu0 0
    %1354 = vmatpush1.bf16.msra.mxu0 %v937
    %1355 = vmatprep.subr.bf16.mxu0 0
    %1356 = vmatpush1.bf16.msra.mxu0 %v940
    %1357 = vmatprep.subr.bf16.mxu0 0
    %1358 = vmatpush1.bf16.msra.mxu0 %v943
    %1359 = vmatprep.subr.bf16.mxu0 0
    %1360 = vmatpush1.bf16.msra.mxu0 %v946
    %1361 = vmatprep.subr.bf16.mxu0 0
    %1362 = vmatpush1.bf16.msra.mxu0 %v949
    %1363 = vmatprep.subr.bf16.mxu0 0
    %1364 = vmatpush1.bf16.msra.mxu0 %v952
    %1365 = vmatprep.subr.bf16.mxu0 0
    %1366 = vmatpush1.bf16.msra.mxu0 %v955
    %1367 = vmatprep.subr.bf16.mxu0 0
    %1368 = vmatpush1.bf16.msra.mxu0 0
    %1369 = vmatprep.subr.bf16.mxu0 0
    %1370 = vmatpush1.bf16.msra.mxu0 0
    %1371 = vmatprep.subr.bf16.mxu0 0
    %1372 = vmatpush1.bf16.msra.mxu0 0
    %1373 = vmatprep.subr.bf16.mxu0 0
    %1374 = vmatpush1.bf16.msra.mxu0 0
    %1375 = vmatprep.subr.bf16.mxu0 0
    %1376 = vmatpush1.bf16.msra.mxu0 0
    %1377 = vmatprep.subr.bf16.mxu0 0
    %1378 = vmatpush1.bf16.msra.mxu0 0
    %1379 = vmatprep.subr.bf16.mxu0 0
    %1380 = vmatpush1.bf16.msra.mxu0 0
    %1381 = vmatprep.subr.bf16.mxu0 0
    %1382 = vmatpush1.bf16.msra.mxu0 0
    %1383 = vmatprep.mubr.bf16.mxu0 0
    %1384 = vmatmul.mubr.bf16.gmra.mrb[0].mxu0 %v1309
    %v1385 = vpop.f32.mrb[0].mxu0
    %v1386 = vadd.f32 0.0, %v1385
    %v1387 = vpop.f32.mrb[0].mxu0
    %v1388 = vpop.f32.mrb[0].mxu0
    %v1389 = vpop.f32.mrb[0].mxu0
    %1390 = vdwg.mxu0
    %s1391 = scalar_lea.vmem [#allocation2], 72
    %v1392 = vld [vmem:[%s1391] sm:$0xff]
    %v1393 = vld [vmem:[%s1391 + $0x8] sm:$0xff]
    %v1394 = vld [vmem:[%s1391 + $0x10] sm:$0xff]
    %v1395 = vadd.f32 %v1392, %v1345
    %v1396 = vxor.u32 %v1395, 2147483648
    %v1397 = vmul.f32 %v1396, 1.442695
    %v1398 = vpow.pop %v1397
    %v1399 = vadd.f32 %v1398, 1.0
    %v1400 = vrcp.pop %v1399
    %v1401 = vmul.f32 1.0, %v1400
    %v1402 = vadd.f32 %v1393, %v1347
    %v1403 = vxor.u32 %v1402, 2147483648
    %v1404 = vmul.f32 %v1403, 1.442695
    %v1405 = vpow.pop %v1404
    %v1406 = vadd.f32 %v1405, 1.0
    %v1407 = vrcp.pop %v1406
    %v1408 = vmul.f32 1.0, %v1407
    %v1409 = vadd.f32 %v1386, %v1083
    %v1410 = vmul.f32 %v1401, %v1409
    %v1411 = vadd.f32 %v1394, %v1410
    %v1412 = vtanh.pop %v1411
    %v1413 = vsub.f32 1.0, %v1408
    %v1414 = vmul.f32 %v1413, %v1412
    %v1415 = vmul.f32 %v1408, %v1308
    %v1416 = vadd.f32 %v1414, %v1415
    %v1417 = vpack.c.bf16 %v1416, %v1416
    %1418 = vmatprep.subr.bf16.mxu0 %v933
    %1419 = vmatpush1.bf16.msra.mxu0 %v932
    %1420 = vmatprep.subr.bf16.mxu0 %v936
    %1421 = vmatpush1.bf16.msra.mxu0 %v935
    %1422 = vmatprep.subr.bf16.mxu0 %v939
    %1423 = vmatpush1.bf16.msra.mxu0 %v938
    %1424 = vmatprep.subr.bf16.mxu0 %v942
    %1425 = vmatpush1.bf16.msra.mxu0 %v941
    %1426 = vmatprep.subr.bf16.mxu0 %v945
    %1427 = vmatpush1.bf16.msra.mxu0 %v944
    %1428 = vmatprep.subr.bf16.mxu0 %v948
    %1429 = vmatpush1.bf16.msra.mxu0 %v947
    %1430 = vmatprep.subr.bf16.mxu0 %v951
    %1431 = vmatpush1.bf16.msra.mxu0 %v950
    %1432 = vmatprep.subr.bf16.mxu0 %v954
    %1433 = vmatpush1.bf16.msra.mxu0 %v953
    %1434 = vmatprep.subr.bf16.mxu0 0
    %1435 = vmatpush1.bf16.msra.mxu0 0
    %1436 = vmatprep.subr.bf16.mxu0 0
    %1437 = vmatpush1.bf16.msra.mxu0 0
    %1438 = vmatprep.subr.bf16.mxu0 0
    %1439 = vmatpush1.bf16.msra.mxu0 0
    %1440 = vmatprep.subr.bf16.mxu0 0
    %1441 = vmatpush1.bf16.msra.mxu0 0
    %1442 = vmatprep.subr.bf16.mxu0 0
    %1443 = vmatpush1.bf16.msra.mxu0 0
    %1444 = vmatprep.subr.bf16.mxu0 0
    %1445 = vmatpush1.bf16.msra.mxu0 0
    %1446 = vmatprep.subr.bf16.mxu0 0
    %1447 = vmatpush1.bf16.msra.mxu0 0
    %1448 = vmatprep.subr.bf16.mxu0 0
    %1449 = vmatpush1.bf16.msra.mxu0 0
    %1450 = vmatprep.mubr.bf16.mxu0 0
    %1451 = vmatmul.mubr.bf16.gmra.mrb[0].mxu0 %v1417
    %v1452 = vpop.f32.mrb[0].mxu0
    %v1453 = vadd.f32 0.0, %v1452
    %v1454 = vpop.f32.mrb[0].mxu0
    %v1455 = vadd.f32 0.0, %v1454
    %v1456 = vpop.f32.mrb[0].mxu0
    %v1457 = vpop.f32.mrb[0].mxu0
    %1458 = vdwg.mxu0
    %1459 = vmatprep.subr.bf16.mxu0 0
    %1460 = vmatpush1.bf16.msra.mxu0 %v934
    %1461 = vmatprep.subr.bf16.mxu0 0
    %1462 = vmatpush1.bf16.msra.mxu0 %v937
    %1463 = vmatprep.subr.bf16.mxu0 0
    %1464 = vmatpush1.bf16.msra.mxu0 %v940
    %1465 = vmatprep.subr.bf16.mxu0 0
    %1466 = vmatpush1.bf16.msra.mxu0 %v943
    %1467 = vmatprep.subr.bf16.mxu0 0
    %1468 = vmatpush1.bf16.msra.mxu0 %v946
    %1469 = vmatprep.subr.bf16.mxu0 0
    %1470 = vmatpush1.bf16.msra.mxu0 %v949
    %1471 = vmatprep.subr.bf16.mxu0 0
    %1472 = vmatpush1.bf16.msra.mxu0 %v952
    %1473 = vmatprep.subr.bf16.mxu0 0
    %1474 = vmatpush1.bf16.msra.mxu0 %v955
    %1475 = vmatprep.subr.bf16.mxu0 0
    %1476 = vmatpush1.bf16.msra.mxu0 0
    %1477 = vmatprep.subr.bf16.mxu0 0
    %1478 = vmatpush1.bf16.msra.mxu0 0
    %1479 = vmatprep.subr.bf16.mxu0 0
    %1480 = vmatpush1.bf16.msra.mxu0 0
    %1481 = vmatprep.subr.bf16.mxu0 0
    %1482 = vmatpush1.bf16.msra.mxu0 0
    %1483 = vmatprep.subr.bf16.mxu0 0
    %1484 = vmatpush1.bf16.msra.mxu0 0
    %1485 = vmatprep.subr.bf16.mxu0 0
    %1486 = vmatpush1.bf16.msra.mxu0 0
    %1487 = vmatprep.subr.bf16.mxu0 0
    %1488 = vmatpush1.bf16.msra.mxu0 0
    %1489 = vmatprep.subr.bf16.mxu0 0
    %1490 = vmatpush1.bf16.msra.mxu0 0
    %1491 = vmatprep.mubr.bf16.mxu0 0
    %1492 = vmatmul.mubr.bf16.gmra.mrb[0].mxu0 %v1417
    %v1493 = vpop.f32.mrb[0].mxu0
    %v1494 = vadd.f32 0.0, %v1493
    %v1495 = vpop.f32.mrb[0].mxu0
    %v1496 = vpop.f32.mrb[0].mxu0
    %v1497 = vpop.f32.mrb[0].mxu0
    %1498 = vdwg.mxu0
    %s1499 = scalar_lea.vmem [#allocation2], 96
    %v1500 = vld [vmem:[%s1499] sm:$0xff]
    %v1501 = vld [vmem:[%s1499 + $0x8] sm:$0xff]
    %v1502 = vld [vmem:[%s1499 + $0x10] sm:$0xff]
    %v1503 = vadd.f32 %v1500, %v1453
    %v1504 = vxor.u32 %v1503, 2147483648
    %v1505 = vmul.f32 %v1504, 1.442695
    %v1506 = vpow.pop %v1505
    %v1507 = vadd.f32 %v1506, 1.0
    %v1508 = vrcp.pop %v1507
    %v1509 = vmul.f32 1.0, %v1508
    %v1510 = vadd.f32 %v1501, %v1455
    %v1511 = vxor.u32 %v1510, 2147483648
    %v1512 = vmul.f32 %v1511, 1.442695
    %v1513 = vpow.pop %v1512
    %v1514 = vadd.f32 %v1513, 1.0
    %v1515 = vrcp.pop %v1514
    %v1516 = vmul.f32 1.0, %v1515
    %v1517 = vadd.f32 %v1494, %v1083
    %v1518 = vmul.f32 %v1509, %v1517
    %v1519 = vadd.f32 %v1502, %v1518
    %v1520 = vtanh.pop %v1519
    %v1521 = vsub.f32 1.0, %v1516
    %v1522 = vmul.f32 %v1521, %v1520
    %v1523 = vmul.f32 %v1516, %v1416
    %v1524 = vadd.f32 %v1522, %v1523
    %v1525 = vpack.c.bf16 %v1524, %v1524
    %1526 = vmatprep.subr.bf16.mxu0 %v933
    %1527 = vmatpush1.bf16.msra.mxu0 %v932
    %1528 = vmatprep.subr.bf16.mxu0 %v936
    %1529 = vmatpush1.bf16.msra.mxu0 %v935
    %1530 = vmatprep.subr.bf16.mxu0 %v939
    %1531 = vmatpush1.bf16.msra.mxu0 %v938
    %1532 = vmatprep.subr.bf16.mxu0 %v942
    %1533 = vmatpush1.bf16.msra.mxu0 %v941
    %1534 = vmatprep.subr.bf16.mxu0 %v945
    %1535 = vmatpush1.bf16.msra.mxu0 %v944
    %1536 = vmatprep.subr.bf16.mxu0 %v948
    %1537 = vmatpush1.bf16.msra.mxu0 %v947
    %1538 = vmatprep.subr.bf16.mxu0 %v951
    %1539 = vmatpush1.bf16.msra.mxu0 %v950
    %1540 = vmatprep.subr.bf16.mxu0 %v954
    %1541 = vmatpush1.bf16.msra.mxu0 %v953
    %1542 = vmatprep.subr.bf16.mxu0 0
    %1543 = vmatpush1.bf16.msra.mxu0 0
    %1544 = vmatprep.subr.bf16.mxu0 0
    %1545 = vmatpush1.bf16.msra.mxu0 0
    %1546 = vmatprep.subr.bf16.mxu0 0
    %1547 = vmatpush1.bf16.msra.mxu0 0
    %1548 = vmatprep.subr.bf16.mxu0 0
    %1549 = vmatpush1.bf16.msra.mxu0 0
    %1550 = vmatprep.subr.bf16.mxu0 0
    %1551 = vmatpush1.bf16.msra.mxu0 0
    %1552 = vmatprep.subr.bf16.mxu0 0
    %1553 = vmatpush1.bf16.msra.mxu0 0
    %1554 = vmatprep.subr.bf16.mxu0 0
    %1555 = vmatpush1.bf16.msra.mxu0 0
    %1556 = vmatprep.subr.bf16.mxu0 0
    %1557 = vmatpush1.bf16.msra.mxu0 0
    %1558 = vmatprep.mubr.bf16.mxu0 0
    %1559 = vmatmul.mubr.bf16.gmra.mrb[0].mxu0 %v1525
    %v1560 = vpop.f32.mrb[0].mxu0
    %v1561 = vadd.f32 0.0, %v1560
    %v1562 = vpop.f32.mrb[0].mxu0
    %v1563 = vadd.f32 0.0, %v1562
    %v1564 = vpop.f32.mrb[0].mxu0
    %v1565 = vpop.f32.mrb[0].mxu0
    %1566 = vdwg.mxu0
    %1567 = vmatprep.subr.bf16.mxu0 0
    %1568 = vmatpush1.bf16.msra.mxu0 %v934
    %1569 = vmatprep.subr.bf16.mxu0 0
    %1570 = vmatpush1.bf16.msra.mxu0 %v937
    %1571 = vmatprep.subr.bf16.mxu0 0
    %1572 = vmatpush1.bf16.msra.mxu0 %v940
    %1573 = vmatprep.subr.bf16.mxu0 0
    %1574 = vmatpush1.bf16.msra.mxu0 %v943
    %1575 = vmatprep.subr.bf16.mxu0 0
    %1576 = vmatpush1.bf16.msra.mxu0 %v946
    %1577 = vmatprep.subr.bf16.mxu0 0
    %1578 = vmatpush1.bf16.msra.mxu0 %v949
    %1579 = vmatprep.subr.bf16.mxu0 0
    %1580 = vmatpush1.bf16.msra.mxu0 %v952
    %1581 = vmatprep.subr.bf16.mxu0 0
    %1582 = vmatpush1.bf16.msra.mxu0 %v955
    %1583 = vmatprep.subr.bf16.mxu0 0
    %1584 = vmatpush1.bf16.msra.mxu0 0
    %1585 = vmatprep.subr.bf16.mxu0 0
    %1586 = vmatpush1.bf16.msra.mxu0 0
    %1587 = vmatprep.subr.bf16.mxu0 0
    %1588 = vmatpush1.bf16.msra.mxu0 0
    %1589 = vmatprep.subr.bf16.mxu0 0
    %1590 = vmatpush1.bf16.msra.mxu0 0
    %1591 = vmatprep.subr.bf16.mxu0 0
    %1592 = vmatpush1.bf16.msra.mxu0 0
    %1593 = vmatprep.subr.bf16.mxu0 0
    %1594 = vmatpush1.bf16.msra.mxu0 0
    %1595 = vmatprep.subr.bf16.mxu0 0
    %1596 = vmatpush1.bf16.msra.mxu0 0
    %1597 = vmatprep.subr.bf16.mxu0 0
    %1598 = vmatpush1.bf16.msra.mxu0 0
    %1599 = vmatprep.mubr.bf16.mxu0 0
    %1600 = vmatmul.mubr.bf16.gmra.mrb[0].mxu0 %v1525
    %v1601 = vpop.f32.mrb[0].mxu0
    %v1602 = vadd.f32 0.0, %v1601
    %v1603 = vpop.f32.mrb[0].mxu0
    %v1604 = vpop.f32.mrb[0].mxu0
    %v1605 = vpop.f32.mrb[0].mxu0
    %1606 = vdwg.mxu0
    %s1607 = scalar_lea.vmem [#allocation2], 120
    %v1608 = vld [vmem:[%s1607] sm:$0xff]
    %v1609 = vld [vmem:[%s1607 + $0x8] sm:$0xff]
    %v1610 = vld [vmem:[%s1607 + $0x10] sm:$0xff]
    %v1611 = vadd.f32 %v1608, %v1561
    %v1612 = vxor.u32 %v1611, 2147483648
    %v1613 = vmul.f32 %v1612, 1.442695
    %v1614 = vpow.pop %v1613
    %v1615 = vadd.f32 %v1614, 1.0
    %v1616 = vrcp.pop %v1615
    %v1617 = vmul.f32 1.0, %v1616
    %v1618 = vadd.f32 %v1609, %v1563
    %v1619 = vxor.u32 %v1618, 2147483648
    %v1620 = vmul.f32 %v1619, 1.442695
    %v1621 = vpow.pop %v1620
    %v1622 = vadd.f32 %v1621, 1.0
    %v1623 = vrcp.pop %v1622
    %v1624 = vmul.f32 1.0, %v1623
    %v1625 = vadd.f32 %v1602, %v1083
    %v1626 = vmul.f32 %v1617, %v1625
    %v1627 = vadd.f32 %v1610, %v1626
    %v1628 = vtanh.pop %v1627
    %v1629 = vsub.f32 1.0, %v1624
    %v1630 = vmul.f32 %v1629, %v1628
    %v1631 = vmul.f32 %v1624, %v1524
    %v1632 = vadd.f32 %v1630, %v1631
    %v1633 = vpack.c.bf16 %v1632, %v1632
    %1634 = vmatprep.subr.bf16.mxu0 %v933
    %1635 = vmatpush1.bf16.msra.mxu0 %v932
    %1636 = vmatprep.subr.bf16.mxu0 %v936
    %1637 = vmatpush1.bf16.msra.mxu0 %v935
    %1638 = vmatprep.subr.bf16.mxu0 %v939
    %1639 = vmatpush1.bf16.msra.mxu0 %v938
    %1640 = vmatprep.subr.bf16.mxu0 %v942
    %1641 = vmatpush1.bf16.msra.mxu0 %v941
    %1642 = vmatprep.subr.bf16.mxu0 %v945
    %1643 = vmatpush1.bf16.msra.mxu0 %v944
    %1644 = vmatprep.subr.bf16.mxu0 %v948
    %1645 = vmatpush1.bf16.msra.mxu0 %v947
    %1646 = vmatprep.subr.bf16.mxu0 %v951
    %1647 = vmatpush1.bf16.msra.mxu0 %v950
    %1648 = vmatprep.subr.bf16.mxu0 %v954
    %1649 = vmatpush1.bf16.msra.mxu0 %v953
    %1650 = vmatprep.subr.bf16.mxu0 0
    %1651 = vmatpush1.bf16.msra.mxu0 0
    %1652 = vmatprep.subr.bf16.mxu0 0
    %1653 = vmatpush1.bf16.msra.mxu0 0
    %1654 = vmatprep.subr.bf16.mxu0 0
    %1655 = vmatpush1.bf16.msra.mxu0 0
    %1656 = vmatprep.subr.bf16.mxu0 0
    %1657 = vmatpush1.bf16.msra.mxu0 0
    %1658 = vmatprep.subr.bf16.mxu0 0
    %1659 = vmatpush1.bf16.msra.mxu0 0
    %1660 = vmatprep.subr.bf16.mxu0 0
    %1661 = vmatpush1.bf16.msra.mxu0 0
    %1662 = vmatprep.subr.bf16.mxu0 0
    %1663 = vmatpush1.bf16.msra.mxu0 0
    %1664 = vmatprep.subr.bf16.mxu0 0
    %1665 = vmatpush1.bf16.msra.mxu0 0
    %1666 = vmatprep.mubr.bf16.mxu0 0
    %1667 = vmatmul.mubr.bf16.gmra.mrb[0].mxu0 %v1633
    %v1668 = vpop.f32.mrb[0].mxu0
    %v1669 = vadd.f32 0.0, %v1668
    %v1670 = vpop.f32.mrb[0].mxu0
    %v1671 = vadd.f32 0.0, %v1670
    %v1672 = vpop.f32.mrb[0].mxu0
    %v1673 = vpop.f32.mrb[0].mxu0
    %1674 = vdwg.mxu0
    %1675 = vmatprep.subr.bf16.mxu0 0
    %1676 = vmatpush1.bf16.msra.mxu0 %v934
    %1677 = vmatprep.subr.bf16.mxu0 0
    %1678 = vmatpush1.bf16.msra.mxu0 %v937
    %1679 = vmatprep.subr.bf16.mxu0 0
    %1680 = vmatpush1.bf16.msra.mxu0 %v940
    %1681 = vmatprep.subr.bf16.mxu0 0
    %1682 = vmatpush1.bf16.msra.mxu0 %v943
    %1683 = vmatprep.subr.bf16.mxu0 0
    %1684 = vmatpush1.bf16.msra.mxu0 %v946
    %1685 = vmatprep.subr.bf16.mxu0 0
    %1686 = vmatpush1.bf16.msra.mxu0 %v949
    %1687 = vmatprep.subr.bf16.mxu0 0
    %1688 = vmatpush1.bf16.msra.mxu0 %v952
    %1689 = vmatprep.subr.bf16.mxu0 0
    %1690 = vmatpush1.bf16.msra.mxu0 %v955
    %1691 = vmatprep.subr.bf16.mxu0 0
    %1692 = vmatpush1.bf16.msra.mxu0 0
    %1693 = vmatprep.subr.bf16.mxu0 0
    %1694 = vmatpush1.bf16.msra.mxu0 0
    %1695 = vmatprep.subr.bf16.mxu0 0
    %1696 = vmatpush1.bf16.msra.mxu0 0
    %1697 = vmatprep.subr.bf16.mxu0 0
    %1698 = vmatpush1.bf16.msra.mxu0 0
    %1699 = vmatprep.subr.bf16.mxu0 0
    %1700 = vmatpush1.bf16.msra.mxu0 0
    %1701 = vmatprep.subr.bf16.mxu0 0
    %1702 = vmatpush1.bf16.msra.mxu0 0
    %1703 = vmatprep.subr.bf16.mxu0 0
    %1704 = vmatpush1.bf16.msra.mxu0 0
    %1705 = vmatprep.subr.bf16.mxu0 0
    %1706 = vmatpush1.bf16.msra.mxu0 0
    %1707 = vmatprep.mubr.bf16.mxu0 0
    %1708 = vmatmul.mubr.bf16.gmra.mrb[0].mxu0 %v1633
    %v1709 = vpop.f32.mrb[0].mxu0
    %v1710 = vadd.f32 0.0, %v1709
    %v1711 = vpop.f32.mrb[0].mxu0
    %v1712 = vpop.f32.mrb[0].mxu0
    %v1713 = vpop.f32.mrb[0].mxu0
    %1714 = vdwg.mxu0
    %s1715 = scalar_lea.vmem [#allocation2], 144
    %v1716 = vld [vmem:[%s1715] sm:$0xff]
    %v1717 = vld [vmem:[%s1715 + $0x8] sm:$0xff]
    %v1718 = vld [vmem:[%s1715 + $0x10] sm:$0xff]
    %v1719 = vadd.f32 %v1716, %v1669
    %v1720 = vxor.u32 %v1719, 2147483648
    %v1721 = vmul.f32 %v1720, 1.442695
    %v1722 = vpow.pop %v1721
    %v1723 = vadd.f32 %v1722, 1.0
    %v1724 = vrcp.pop %v1723
    %v1725 = vmul.f32 1.0, %v1724
    %v1726 = vadd.f32 %v1717, %v1671
    %v1727 = vxor.u32 %v1726, 2147483648
    %v1728 = vmul.f32 %v1727, 1.442695
    %v1729 = vpow.pop %v1728
    %v1730 = vadd.f32 %v1729, 1.0
    %v1731 = vrcp.pop %v1730
    %v1732 = vmul.f32 1.0, %v1731
    %v1733 = vadd.f32 %v1710, %v1083
    %v1734 = vmul.f32 %v1725, %v1733
    %v1735 = vadd.f32 %v1718, %v1734
    %v1736 = vtanh.pop %v1735
    %v1737 = vsub.f32 1.0, %v1732
    %v1738 = vmul.f32 %v1737, %v1736
    %v1739 = vmul.f32 %v1732, %v1632
    %v1740 = vadd.f32 %v1738, %v1739
    %v1741 = vpack.c.bf16 %v1740, %v1740
    %1742 = vmatprep.subr.bf16.mxu0 %v933
    %1743 = vmatpush1.bf16.msra.mxu0 %v932
    %1744 = vmatprep.subr.bf16.mxu0 %v936
    %1745 = vmatpush1.bf16.msra.mxu0 %v935
    %1746 = vmatprep.subr.bf16.mxu0 %v939
    %1747 = vmatpush1.bf16.msra.mxu0 %v938
    %1748 = vmatprep.subr.bf16.mxu0 %v942
    %1749 = vmatpush1.bf16.msra.mxu0 %v941
    %1750 = vmatprep.subr.bf16.mxu0 %v945
    %1751 = vmatpush1.bf16.msra.mxu0 %v944
    %1752 = vmatprep.subr.bf16.mxu0 %v948
    %1753 = vmatpush1.bf16.msra.mxu0 %v947
    %1754 = vmatprep.subr.bf16.mxu0 %v951
    %1755 = vmatpush1.bf16.msra.mxu0 %v950
    %1756 = vmatprep.subr.bf16.mxu0 %v954
    %1757 = vmatpush1.bf16.msra.mxu0 %v953
    %1758 = vmatprep.subr.bf16.mxu0 0
    %1759 = vmatpush1.bf16.msra.mxu0 0
    %1760 = vmatprep.subr.bf16.mxu0 0
    %1761 = vmatpush1.bf16.msra.mxu0 0
    %1762 = vmatprep.subr.bf16.mxu0 0
    %1763 = vmatpush1.bf16.msra.mxu0 0
    %1764 = vmatprep.subr.bf16.mxu0 0
    %1765 = vmatpush1.bf16.msra.mxu0 0
    %1766 = vmatprep.subr.bf16.mxu0 0
    %1767 = vmatpush1.bf16.msra.mxu0 0
    %1768 = vmatprep.subr.bf16.mxu0 0
    %1769 = vmatpush1.bf16.msra.mxu0 0
    %1770 = vmatprep.subr.bf16.mxu0 0
    %1771 = vmatpush1.bf16.msra.mxu0 0
    %1772 = vmatprep.subr.bf16.mxu0 0
    %1773 = vmatpush1.bf16.msra.mxu0 0
    %1774 = vmatprep.mubr.bf16.mxu0 0
    %1775 = vmatmul.mubr.bf16.gmra.mrb[0].mxu0 %v1741
    %v1776 = vpop.f32.mrb[0].mxu0
    %v1777 = vadd.f32 0.0, %v1776
    %v1778 = vpop.f32.mrb[0].mxu0
    %v1779 = vadd.f32 0.0, %v1778
    %v1780 = vpop.f32.mrb[0].mxu0
    %v1781 = vpop.f32.mrb[0].mxu0
    %1782 = vdwg.mxu0
    %1783 = vmatprep.subr.bf16.mxu0 0
    %1784 = vmatpush1.bf16.msra.mxu0 %v934
    %1785 = vmatprep.subr.bf16.mxu0 0
    %1786 = vmatpush1.bf16.msra.mxu0 %v937
    %1787 = vmatprep.subr.bf16.mxu0 0
    %1788 = vmatpush1.bf16.msra.mxu0 %v940
    %1789 = vmatprep.subr.bf16.mxu0 0
    %1790 = vmatpush1.bf16.msra.mxu0 %v943
    %1791 = vmatprep.subr.bf16.mxu0 0
    %1792 = vmatpush1.bf16.msra.mxu0 %v946
    %1793 = vmatprep.subr.bf16.mxu0 0
    %1794 = vmatpush1.bf16.msra.mxu0 %v949
    %1795 = vmatprep.subr.bf16.mxu0 0
    %1796 = vmatpush1.bf16.msra.mxu0 %v952
    %1797 = vmatprep.subr.bf16.mxu0 0
    %1798 = vmatpush1.bf16.msra.mxu0 %v955
    %1799 = vmatprep.subr.bf16.mxu0 0
    %1800 = vmatpush1.bf16.msra.mxu0 0
    %1801 = vmatprep.subr.bf16.mxu0 0
    %1802 = vmatpush1.bf16.msra.mxu0 0
    %1803 = vmatprep.subr.bf16.mxu0 0
    %1804 = vmatpush1.bf16.msra.mxu0 0
    %1805 = vmatprep.subr.bf16.mxu0 0
    %1806 = vmatpush1.bf16.msra.mxu0 0
    %1807 = vmatprep.subr.bf16.mxu0 0
    %1808 = vmatpush1.bf16.msra.mxu0 0
    %1809 = vmatprep.subr.bf16.mxu0 0
    %1810 = vmatpush1.bf16.msra.mxu0 0
    %1811 = vmatprep.subr.bf16.mxu0 0
    %1812 = vmatpush1.bf16.msra.mxu0 0
    %1813 = vmatprep.subr.bf16.mxu0 0
    %1814 = vmatpush1.bf16.msra.mxu0 0
    %1815 = vmatprep.mubr.bf16.mxu0 0
    %1816 = vmatmul.mubr.bf16.gmra.mrb[0].mxu0 %v1741
    %v1817 = vpop.f32.mrb[0].mxu0
    %v1818 = vadd.f32 0.0, %v1817
    %v1819 = vpop.f32.mrb[0].mxu0
    %v1820 = vpop.f32.mrb[0].mxu0
    %v1821 = vpop.f32.mrb[0].mxu0
    %1822 = vdwg.mxu0
    %s1823 = scalar_lea.vmem [#allocation2], 168
    %v1824 = vld [vmem:[%s1823] sm:$0xff]
    %v1825 = vld [vmem:[%s1823 + $0x8] sm:$0xff]
    %v1826 = vld [vmem:[%s1823 + $0x10] sm:$0xff]
    %v1827 = vadd.f32 %v1824, %v1777
    %v1828 = vxor.u32 %v1827, 2147483648
    %v1829 = vmul.f32 %v1828, 1.442695
    %v1830 = vpow.pop %v1829
    %v1831 = vadd.f32 %v1830, 1.0
    %v1832 = vrcp.pop %v1831
    %v1833 = vmul.f32 1.0, %v1832
    %v1834 = vadd.f32 %v1825, %v1779
    %v1835 = vxor.u32 %v1834, 2147483648
    %v1836 = vmul.f32 %v1835, 1.442695
    %v1837 = vpow.pop %v1836
    %v1838 = vadd.f32 %v1837, 1.0
    %v1839 = vrcp.pop %v1838
    %v1840 = vmul.f32 1.0, %v1839
    %v1841 = vadd.f32 %v1818, %v1083
    %v1842 = vmul.f32 %v1833, %v1841
    %v1843 = vadd.f32 %v1826, %v1842
    %v1844 = vtanh.pop %v1843
    %v1845 = vsub.f32 1.0, %v1840
    %v1846 = vmul.f32 %v1845, %v1844
    %v1847 = vmul.f32 %v1840, %v1740
    %v1848 = vadd.f32 %v1846, %v1847
    %v1849 = vpack.c.bf16 %v1848, %v1848
    %v1850 = vld [vmem:[%s10] sm:$0xf]
    %v1851 = vld [vmem:[%s10 + $0x4] sm:$0xf]
    %v1852 = vld [vmem:[%s10 + $0x8] sm:$0xf]
    %v1853 = vld [vmem:[%s10 + $0xc] sm:$0xf]
    %v1854 = vld [vmem:[%s10 + $0x10] sm:$0xf]
    %v1855 = vld [vmem:[%s10 + $0x14] sm:$0xf]
    %v1856 = vld [vmem:[%s10 + $0x18] sm:$0xf]
    %v1857 = vld [vmem:[%s10 + $0x1c] sm:$0xf]
    %v1858 = vld [vmem:[%s10 + $0x20] sm:$0xf]
    %v1859 = vld [vmem:[%s10 + $0x24] sm:$0xf]
    %v1860 = vld [vmem:[%s10 + $0x28] sm:$0xf]
    %v1861 = vld [vmem:[%s10 + $0x2c] sm:$0xf]
    %v1862 = vld [vmem:[%s10 + $0x30] sm:$0xf]
    %v1863 = vld [vmem:[%s10 + $0x34] sm:$0xf]
    %v1864 = vld [vmem:[%s10 + $0x38] sm:$0xf]
    %v1865 = vld [vmem:[%s10 + $0x3c] sm:$0xf]
    %v1866 = vld [vmem:[%s11] sm:$0x1]
    %v1868 = vlaneseq
    %v1869 = vshrl.u32 %v1868, 7
    %v1870 = vsub.s32 0, %v1869
    %v1871 = vrot.slane %v1866, %v1870
    %v1889 = vunpack.c.l.b16 %v1850
    %v1890 = vunpack.c.l.b16 %v1851
    %v1891 = vunpack.c.l.b16 %v1852
    %v1892 = vunpack.c.l.b16 %v1853
    %v1893 = vunpack.c.l.b16 %v1854
    %v1894 = vunpack.c.l.b16 %v1855
    %v1895 = vunpack.c.l.b16 %v1856
    %v1896 = vunpack.c.l.b16 %v1857
    %v1897 = vunpack.c.l.b16 %v1858
    %v1898 = vunpack.c.l.b16 %v1859
    %v1899 = vunpack.c.l.b16 %v1860
    %v1900 = vunpack.c.l.b16 %v1861
    %v1901 = vunpack.c.l.b16 %v1862
    %v1902 = vunpack.c.l.b16 %v1863
    %v1903 = vunpack.c.l.b16 %v1864
    %v1904 = vunpack.c.l.b16 %v1865
    %v1905 = vpack.c.b16 %v1890, %v1889
    %v1906 = vpack.c.b16 %v1892, %v1891
    %v1907 = vpack.c.b16 %v1894, %v1893
    %v1908 = vpack.c.b16 %v1896, %v1895
    %v1909 = vpack.c.b16 %v1898, %v1897
    %v1910 = vpack.c.b16 %v1900, %v1899
    %v1911 = vpack.c.b16 %v1902, %v1901
    %v1912 = vpack.c.b16 %v1904, %v1903
    %1921 = vmatprep.subr.bf16.mxu0 0
    %1922 = vmatpush1.bf16.msra.mxu0 %v1905
    %1923 = vmatprep.subr.bf16.mxu0 0
    %1924 = vmatpush1.bf16.msra.mxu0 %v1906
    %1925 = vmatprep.subr.bf16.mxu0 0
    %1926 = vmatpush1.bf16.msra.mxu0 %v1907
    %1927 = vmatprep.subr.bf16.mxu0 0
    %1928 = vmatpush1.bf16.msra.mxu0 %v1908
    %1929 = vmatprep.subr.bf16.mxu0 0
    %1930 = vmatpush1.bf16.msra.mxu0 %v1909
    %1931 = vmatprep.subr.bf16.mxu0 0
    %1932 = vmatpush1.bf16.msra.mxu0 %v1910
    %1933 = vmatprep.subr.bf16.mxu0 0
    %1934 = vmatpush1.bf16.msra.mxu0 %v1911
    %1935 = vmatprep.subr.bf16.mxu0 0
    %1936 = vmatpush1.bf16.msra.mxu0 %v1912
    %1937 = vmatprep.subr.bf16.mxu0 0
    %1938 = vmatpush1.bf16.msra.mxu0 0
    %1939 = vmatprep.subr.bf16.mxu0 0
    %1940 = vmatpush1.bf16.msra.mxu0 0
    %1941 = vmatprep.subr.bf16.mxu0 0
    %1942 = vmatpush1.bf16.msra.mxu0 0
    %1943 = vmatprep.subr.bf16.mxu0 0
    %1944 = vmatpush1.bf16.msra.mxu0 0
    %1945 = vmatprep.subr.bf16.mxu0 0
    %1946 = vmatpush1.bf16.msra.mxu0 0
    %1947 = vmatprep.subr.bf16.mxu0 0
    %1948 = vmatpush1.bf16.msra.mxu0 0
    %1949 = vmatprep.subr.bf16.mxu0 0
    %1950 = vmatpush1.bf16.msra.mxu0 0
    %1951 = vmatprep.subr.bf16.mxu0 0
    %1952 = vmatpush1.bf16.msra.mxu0 0
    %1953 = vmatprep.mubr.bf16.mxu0 0
    %1954 = vmatmul.mubr.bf16.gmra.mrb[0].mxu0 %v1849
    %v1955 = vpop.f32.mrb[0].mxu0
    %v1956 = vadd.f32 %v1871, %v1955
    %v1957 = vpop.f32.mrb[0].mxu0
    %v1958 = vpop.f32.mrb[0].mxu0
    %v1959 = vpop.f32.mrb[0].mxu0
    %1960 = vdwg.mxu0
    %v1961 = vtanh.pop %v1956
    %1962 = vst [vmem:[#allocation5] sm:$0xff] %v1961
    %v1963 = vpack.c.bf16 %v1961, %v1961
    %v1964 = vld [vmem:[%s12] sm:$0xf]
    %v1965 = vld [vmem:[%s12 + $0x4] sm:$0xf]
    %v1966 = vld [vmem:[%s12 + $0x8] sm:$0xf]
    %v1967 = vld [vmem:[%s12 + $0xc] sm:$0xf]
    %v1968 = vld [vmem:[%s12 + $0x10] sm:$0xf]
    %v1969 = vld [vmem:[%s12 + $0x14] sm:$0xf]
    %v1970 = vld [vmem:[%s12 + $0x18] sm:$0xf]
    %v1971 = vld [vmem:[%s12 + $0x1c] sm:$0xf]
    %v1972 = vld [vmem:[%s12 + $0x20] sm:$0xf]
    %v1973 = vld [vmem:[%s12 + $0x24] sm:$0xf]
    %v1974 = vld [vmem:[%s12 + $0x28] sm:$0xf]
    %v1975 = vld [vmem:[%s12 + $0x2c] sm:$0xf]
    %v1976 = vld [vmem:[%s12 + $0x30] sm:$0xf]
    %v1977 = vld [vmem:[%s12 + $0x34] sm:$0xf]
    %v1978 = vld [vmem:[%s12 + $0x38] sm:$0xf]
    %v1979 = vld [vmem:[%s12 + $0x3c] sm:$0xf]
    %v1980 = vld [vmem:[%s13] sm:$0x1]
    %v1982 = vlaneseq
    %v1983 = vshrl.u32 %v1982, 7
    %v1984 = vsub.s32 0, %v1983
    %v1985 = vrot.slane %v1980, %v1984
    %v2003 = vunpack.c.l.b16 %v1964
    %v2004 = vunpack.c.l.b16 %v1965
    %v2005 = vunpack.c.l.b16 %v1966
    %v2006 = vunpack.c.l.b16 %v1967
    %v2007 = vunpack.c.l.b16 %v1968
    %v2008 = vunpack.c.l.b16 %v1969
    %v2009 = vunpack.c.l.b16 %v1970
    %v2010 = vunpack.c.l.b16 %v1971
    %v2011 = vunpack.c.l.b16 %v1972
    %v2012 = vunpack.c.l.b16 %v1973
    %v2013 = vunpack.c.l.b16 %v1974
    %v2014 = vunpack.c.l.b16 %v1975
    %v2015 = vunpack.c.l.b16 %v1976
    %v2016 = vunpack.c.l.b16 %v1977
    %v2017 = vunpack.c.l.b16 %v1978
    %v2018 = vunpack.c.l.b16 %v1979
    %v2019 = vpack.c.b16 %v2004, %v2003
    %v2020 = vpack.c.b16 %v2006, %v2005
    %v2021 = vpack.c.b16 %v2008, %v2007
    %v2022 = vpack.c.b16 %v2010, %v2009
    %v2023 = vpack.c.b16 %v2012, %v2011
    %v2024 = vpack.c.b16 %v2014, %v2013
    %v2025 = vpack.c.b16 %v2016, %v2015
    %v2026 = vpack.c.b16 %v2018, %v2017
    %2035 = vmatprep.subr.bf16.mxu0 0
    %2036 = vmatpush1.bf16.msra.mxu0 %v2019
    %2037 = vmatprep.subr.bf16.mxu0 0
    %2038 = vmatpush1.bf16.msra.mxu0 %v2020
    %2039 = vmatprep.subr.bf16.mxu0 0
    %2040 = vmatpush1.bf16.msra.mxu0 %v2021
    %2041 = vmatprep.subr.bf16.mxu0 0
    %2042 = vmatpush1.bf16.msra.mxu0 %v2022
    %2043 = vmatprep.subr.bf16.mxu0 0
    %2044 = vmatpush1.bf16.msra.mxu0 %v2023
    %2045 = vmatprep.subr.bf16.mxu0 0
    %2046 = vmatpush1.bf16.msra.mxu0 %v2024
    %2047 = vmatprep.subr.bf16.mxu0 0
    %2048 = vmatpush1.bf16.msra.mxu0 %v2025
    %2049 = vmatprep.subr.bf16.mxu0 0
    %2050 = vmatpush1.bf16.msra.mxu0 %v2026
    %2051 = vmatprep.subr.bf16.mxu0 0
    %2052 = vmatpush1.bf16.msra.mxu0 0
    %2053 = vmatprep.subr.bf16.mxu0 0
    %2054 = vmatpush1.bf16.msra.mxu0 0
    %2055 = vmatprep.subr.bf16.mxu0 0
    %2056 = vmatpush1.bf16.msra.mxu0 0
    %2057 = vmatprep.subr.bf16.mxu0 0
    %2058 = vmatpush1.bf16.msra.mxu0 0
    %2059 = vmatprep.subr.bf16.mxu0 0
    %2060 = vmatpush1.bf16.msra.mxu0 0
    %2061 = vmatprep.subr.bf16.mxu0 0
    %2062 = vmatpush1.bf16.msra.mxu0 0
    %2063 = vmatprep.subr.bf16.mxu0 0
    %2064 = vmatpush1.bf16.msra.mxu0 0
    %2065 = vmatprep.subr.bf16.mxu0 0
    %2066 = vmatpush1.bf16.msra.mxu0 0
    %2067 = vmatprep.mubr.bf16.mxu0 0
    %2068 = vmatmul.mubr.bf16.gmra.mrb[0].mxu0 %v1963
    %v2069 = vpop.f32.mrb[0].mxu0
    %v2070 = vadd.f32 %v1985, %v2069
    %v2071 = vpop.f32.mrb[0].mxu0
    %v2072 = vpop.f32.mrb[0].mxu0
    %v2073 = vpop.f32.mrb[0].mxu0
    %2074 = vdwg.mxu0
    %v2075 = vmax.f32 %v2070, 0.0
    %v2076 = vld [vmem:[%s14] sm:$0xff]
    %v2077 = vld [vmem:[%s14 + $0x8] sm:$0xff]
    %v2078 = vld [vmem:[%s14 + $0x10] sm:$0xff]
    %v2079 = vld [vmem:[%s14 + $0x18] sm:$0xff]
    %v2080 = vld [vmem:[%s14 + $0x20] sm:$0xff]
    %v2081 = vld [vmem:[%s14 + $0x28] sm:$0xff]
    %v2082 = vld [vmem:[%s14 + $0x30] sm:$0xff]
    %v2083 = vld [vmem:[%s14 + $0x38] sm:$0xff]
    %v2084 = vld [vmem:[%s14 + $0x40] sm:$0xff]
    %v2085 = vld [vmem:[%s14 + $0x48] sm:$0xff]
    %v2086 = vld [vmem:[%s14 + $0x50] sm:$0xff]
    %v2087 = vld [vmem:[%s14 + $0x58] sm:$0xff]
    %v2088 = vld [vmem:[%s14 + $0x60] sm:$0xff]
    %v2089 = vld [vmem:[%s14 + $0x68] sm:$0xff]
    %v2090 = vld [vmem:[%s14 + $0x70] sm:$0xff]
    %v2091 = vld [vmem:[%s14 + $0x78] sm:$0xff]
    %v2092 = vld [vmem:[#allocation4] sm:$0x1]
    %v2094 = vlaneseq
    %v2095 = vshrl.u32 %v2094, 7
    %v2096 = vsub.s32 0, %v2095
    %v2097 = vrot.slane %v2092, %v2096
    %2099 = vmatprep.subr.mxu0 0.0
    %2100 = vmatpush1.msra.mxu0 %v2076
    %2101 = vmatprep.subr.mxu0 0.0
    %2102 = vmatpush1.msra.mxu0 %v2077
    %2103 = vmatprep.subr.mxu0 0.0
    %2104 = vmatpush1.msra.mxu0 %v2078
    %2105 = vmatprep.subr.mxu0 0.0
    %2106 = vmatpush1.msra.mxu0 %v2079
    %2107 = vmatprep.subr.mxu0 0.0
    %2108 = vmatpush1.msra.mxu0 %v2080
    %2109 = vmatprep.subr.mxu0 0.0
    %2110 = vmatpush1.msra.mxu0 %v2081
    %2111 = vmatprep.subr.mxu0 0.0
    %2112 = vmatpush1.msra.mxu0 %v2082
    %2113 = vmatprep.subr.mxu0 0.0
    %2114 = vmatpush1.msra.mxu0 %v2083
    %2115 = vmatprep.subr.mxu0 0.0
    %2116 = vmatpush1.msra.mxu0 %v2084
    %2117 = vmatprep.subr.mxu0 0.0
    %2118 = vmatpush1.msra.mxu0 %v2085
    %2119 = vmatprep.subr.mxu0 0.0
    %2120 = vmatpush1.msra.mxu0 %v2086
    %2121 = vmatprep.subr.mxu0 0.0
    %2122 = vmatpush1.msra.mxu0 %v2087
    %2123 = vmatprep.subr.mxu0 0.0
    %2124 = vmatpush1.msra.mxu0 %v2088
    %2125 = vmatprep.subr.mxu0 0.0
    %2126 = vmatpush1.msra.mxu0 %v2089
    %2127 = vmatprep.subr.mxu0 0.0
    %2128 = vmatpush1.msra.mxu0 %v2090
    %2129 = vmatprep.subr.mxu0 0.0
    %2130 = vmatpush1.msra.mxu0 %v2091
    %2131 = vmatprep.subr.mxu0 0.0
    %2132 = vmatpush1.msra.mxu0 0.0
    %2133 = vmatprep.subr.mxu0 0.0
    %2134 = vmatpush1.msra.mxu0 0.0
    %2135 = vmatprep.subr.mxu0 0.0
    %2136 = vmatpush1.msra.mxu0 0.0
    %2137 = vmatprep.subr.mxu0 0.0
    %2138 = vmatpush1.msra.mxu0 0.0
    %2139 = vmatprep.subr.mxu0 0.0
    %2140 = vmatpush1.msra.mxu0 0.0
    %2141 = vmatprep.subr.mxu0 0.0
    %2142 = vmatpush1.msra.mxu0 0.0
    %2143 = vmatprep.subr.mxu0 0.0
    %2144 = vmatpush1.msra.mxu0 0.0
    %2145 = vmatprep.subr.mxu0 0.0
    %2146 = vmatpush1.msra.mxu0 0.0
    %2147 = vmatprep.subr.mxu0 0.0
    %2148 = vmatpush1.msra.mxu0 0.0
    %2149 = vmatprep.subr.mxu0 0.0
    %2150 = vmatpush1.msra.mxu0 0.0
    %2151 = vmatprep.subr.mxu0 0.0
    %2152 = vmatpush1.msra.mxu0 0.0
    %2153 = vmatprep.subr.mxu0 0.0
    %2154 = vmatpush1.msra.mxu0 0.0
    %2155 = vmatprep.subr.mxu0 0.0
    %2156 = vmatpush1.msra.mxu0 0.0
    %2157 = vmatprep.subr.mxu0 0.0
    %2158 = vmatpush1.msra.mxu0 0.0
    %2159 = vmatprep.subr.mxu0 0.0
    %2160 = vmatpush1.msra.mxu0 0.0
    %2161 = vmatprep.subr.mxu0 0.0
    %2162 = vmatpush1.msra.mxu0 0.0
    %2163 = vmatprep.mubr.f32.mxu0 0.0
    %2164 = vmatmul.mubr.f32.gmra.mrb[0].mxu0 %v2075
    %v2165 = vpop.f32.mrb[0].mxu0
    %v2166 = vadd.f32 %v2097, %v2165
    %v2167 = vpop.f32.mrb[0].mxu0
    %2168 = vdwg.mxu0
    %vm2169 = vcmask 7168
    %2170 = vst.msk [vmem:[%s19] sm:$0xff] %vm2169, %v2166
    %v2171 = vld [vmem:[%s7] sm:$0xff]
    %v2172 = vld [vmem:[%s7 + $0x8] sm:$0xf]
    %v2173 = vld [vmem:[%s7 + $0xc] sm:$0xff]
    %v2174 = vld [vmem:[%s7 + $0x14] sm:$0xf]
    %v2175 = vld [vmem:[%s7 + $0x18] sm:$0xff]
    %v2176 = vld [vmem:[%s7 + $0x20] sm:$0xf]
    %v2177 = vld [vmem:[%s7 + $0x24] sm:$0xff]
    %v2178 = vld [vmem:[%s7 + $0x2c] sm:$0xf]
    %v2179 = vld [vmem:[%s7 + $0x30] sm:$0xff]
    %v2180 = vld [vmem:[%s7 + $0x38] sm:$0xf]
    %v2181 = vld [vmem:[%s7 + $0x3c] sm:$0xff]
    %v2182 = vld [vmem:[%s7 + $0x44] sm:$0xf]
    %v2183 = vld [vmem:[%s7 + $0x48] sm:$0xff]
    %v2184 = vld [vmem:[%s7 + $0x50] sm:$0xf]
    %v2185 = vld [vmem:[%s7 + $0x54] sm:$0xff]
    %v2186 = vld [vmem:[%s7 + $0x5c] sm:$0xf]
    %v2187 = vld [vmem:[%s7 + $0x60] sm:$0xff]
    %v2188 = vld [vmem:[%s7 + $0x68] sm:$0xf]
    %v2189 = vld [vmem:[%s7 + $0x6c] sm:$0xff]
    %v2190 = vld [vmem:[%s7 + $0x74] sm:$0xf]
    %v2191 = vld [vmem:[%s7 + $0x78] sm:$0xff]
    %v2192 = vld [vmem:[%s7 + $0x80] sm:$0xf]
    %v2193 = vld [vmem:[%s7 + $0x84] sm:$0xff]
    %v2194 = vld [vmem:[%s7 + $0x8c] sm:$0xf]
    %v2195 = vld [vmem:[%s7 + $0x90] sm:$0xff]
    %v2196 = vld [vmem:[%s7 + $0x98] sm:$0xf]
    %v2197 = vld [vmem:[%s7 + $0x9c] sm:$0xff]
    %v2198 = vld [vmem:[%s7 + $0xa4] sm:$0xf]
    %v2199 = vld [vmem:[%s7 + $0xa8] sm:$0xff]
    %v2200 = vld [vmem:[%s7 + $0xb0] sm:$0xf]
    %v2201 = vld [vmem:[%s7 + $0xb4] sm:$0xff]
    %v2202 = vld [vmem:[%s7 + $0xbc] sm:$0xf]
    %v2235 = vunpack.c.l.b16 %v2171
    %v2236 = vunpack.c.h.b16 %v2171
    %v2237 = vunpack.c.l.b16 %v2172
    %v2238 = vunpack.c.l.b16 %v2173
    %v2239 = vunpack.c.h.b16 %v2173
    %v2240 = vunpack.c.l.b16 %v2174
    %v2241 = vunpack.c.l.b16 %v2175
    %v2242 = vunpack.c.h.b16 %v2175
    %v2243 = vunpack.c.l.b16 %v2176
    %v2244 = vunpack.c.l.b16 %v2177
    %v2245 = vunpack.c.h.b16 %v2177
    %v2246 = vunpack.c.l.b16 %v2178
    %v2247 = vunpack.c.l.b16 %v2179
    %v2248 = vunpack.c.h.b16 %v2179
    %v2249 = vunpack.c.l.b16 %v2180
    %v2250 = vunpack.c.l.b16 %v2181
    %v2251 = vunpack.c.h.b16 %v2181
    %v2252 = vunpack.c.l.b16 %v2182
    %v2253 = vunpack.c.l.b16 %v2183
    %v2254 = vunpack.c.h.b16 %v2183
    %v2255 = vunpack.c.l.b16 %v2184
    %v2256 = vunpack.c.l.b16 %v2185
    %v2257 = vunpack.c.h.b16 %v2185
    %v2258 = vunpack.c.l.b16 %v2186
    %v2259 = vunpack.c.l.b16 %v2187
    %v2260 = vunpack.c.h.b16 %v2187
    %v2261 = vunpack.c.l.b16 %v2188
    %v2262 = vunpack.c.l.b16 %v2189
    %v2263 = vunpack.c.h.b16 %v2189
    %v2264 = vunpack.c.l.b16 %v2190
    %v2265 = vunpack.c.l.b16 %v2191
    %v2266 = vunpack.c.h.b16 %v2191
    %v2267 = vunpack.c.l.b16 %v2192
    %v2268 = vunpack.c.l.b16 %v2193
    %v2269 = vunpack.c.h.b16 %v2193
    %v2270 = vunpack.c.l.b16 %v2194
    %v2271 = vunpack.c.l.b16 %v2195
    %v2272 = vunpack.c.h.b16 %v2195
    %v2273 = vunpack.c.l.b16 %v2196
    %v2274 = vunpack.c.l.b16 %v2197
    %v2275 = vunpack.c.h.b16 %v2197
    %v2276 = vunpack.c.l.b16 %v2198
    %v2277 = vunpack.c.l.b16 %v2199
    %v2278 = vunpack.c.h.b16 %v2199
    %v2279 = vunpack.c.l.b16 %v2200
    %v2280 = vunpack.c.l.b16 %v2201
    %v2281 = vunpack.c.h.b16 %v2201
    %v2282 = vunpack.c.l.b16 %v2202
    %v2283 = vpack.c.b16 %v2238, %v2235
    %v2284 = vpack.c.b16 %v2239, %v2236
    %v2285 = vpack.c.b16 %v2240, %v2237
    %v2286 = vpack.c.b16 %v2244, %v2241
    %v2287 = vpack.c.b16 %v2245, %v2242
    %v2288 = vpack.c.b16 %v2246, %v2243
    %v2289 = vpack.c.b16 %v2250, %v2247
    %v2290 = vpack.c.b16 %v2251, %v2248
    %v2291 = vpack.c.b16 %v2252, %v2249
    %v2292 = vpack.c.b16 %v2256, %v2253
    %v2293 = vpack.c.b16 %v2257, %v2254
    %v2294 = vpack.c.b16 %v2258, %v2255
    %v2295 = vpack.c.b16 %v2262, %v2259
    %v2296 = vpack.c.b16 %v2263, %v2260
    %v2297 = vpack.c.b16 %v2264, %v2261
    %v2298 = vpack.c.b16 %v2268, %v2265
    %v2299 = vpack.c.b16 %v2269, %v2266
    %v2300 = vpack.c.b16 %v2270, %v2267
    %v2301 = vpack.c.b16 %v2274, %v2271
    %v2302 = vpack.c.b16 %v2275, %v2272
    %v2303 = vpack.c.b16 %v2276, %v2273
    %v2304 = vpack.c.b16 %v2280, %v2277
    %v2305 = vpack.c.b16 %v2281, %v2278
    %v2306 = vpack.c.b16 %v2282, %v2279
    %2331 = vmatprep.subr.bf16.mxu0 %v2284
    %2332 = vmatpush1.bf16.msra.mxu0 %v2283
    %2333 = vmatprep.subr.bf16.mxu0 %v2287
    %2334 = vmatpush1.bf16.msra.mxu0 %v2286
    %2335 = vmatprep.subr.bf16.mxu0 %v2290
    %2336 = vmatpush1.bf16.msra.mxu0 %v2289
    %2337 = vmatprep.subr.bf16.mxu0 %v2293
    %2338 = vmatpush1.bf16.msra.mxu0 %v2292
    %2339 = vmatprep.subr.bf16.mxu0 %v2296
    %2340 = vmatpush1.bf16.msra.mxu0 %v2295
    %2341 = vmatprep.subr.bf16.mxu0 %v2299
    %2342 = vmatpush1.bf16.msra.mxu0 %v2298
    %2343 = vmatprep.subr.bf16.mxu0 %v2302
    %2344 = vmatpush1.bf16.msra.mxu0 %v2301
    %2345 = vmatprep.subr.bf16.mxu0 %v2305
    %2346 = vmatpush1.bf16.msra.mxu0 %v2304
    %2347 = vmatprep.subr.bf16.mxu0 0
    %2348 = vmatpush1.bf16.msra.mxu0 0
    %2349 = vmatprep.subr.bf16.mxu0 0
    %2350 = vmatpush1.bf16.msra.mxu0 0
    %2351 = vmatprep.subr.bf16.mxu0 0
    %2352 = vmatpush1.bf16.msra.mxu0 0
    %2353 = vmatprep.subr.bf16.mxu0 0
    %2354 = vmatpush1.bf16.msra.mxu0 0
    %2355 = vmatprep.subr.bf16.mxu0 0
    %2356 = vmatpush1.bf16.msra.mxu0 0
    %2357 = vmatprep.subr.bf16.mxu0 0
    %2358 = vmatpush1.bf16.msra.mxu0 0
    %2359 = vmatprep.subr.bf16.mxu0 0
    %2360 = vmatpush1.bf16.msra.mxu0 0
    %2361 = vmatprep.subr.bf16.mxu0 0
    %2362 = vmatpush1.bf16.msra.mxu0 0
    %2363 = vmatprep.mubr.bf16.mxu0 0
    %2364 = vmatmul.mubr.bf16.gmra.mrb[0].mxu0 %v1849
    %v2365 = vpop.f32.mrb[0].mxu0
    %v2366 = vadd.f32 0.0, %v2365
    %v2367 = vpop.f32.mrb[0].mxu0
    %v2368 = vadd.f32 0.0, %v2367
    %v2369 = vpop.f32.mrb[0].mxu0
    %v2370 = vpop.f32.mrb[0].mxu0
    %2371 = vdwg.mxu0
    %2372 = vmatprep.subr.bf16.mxu0 0
    %2373 = vmatpush1.bf16.msra.mxu0 %v2285
    %2374 = vmatprep.subr.bf16.mxu0 0
    %2375 = vmatpush1.bf16.msra.mxu0 %v2288
    %2376 = vmatprep.subr.bf16.mxu0 0
    %2377 = vmatpush1.bf16.msra.mxu0 %v2291
    %2378 = vmatprep.subr.bf16.mxu0 0
    %2379 = vmatpush1.bf16.msra.mxu0 %v2294
    %2380 = vmatprep.subr.bf16.mxu0 0
    %2381 = vmatpush1.bf16.msra.mxu0 %v2297
    %2382 = vmatprep.subr.bf16.mxu0 0
    %2383 = vmatpush1.bf16.msra.mxu0 %v2300
    %2384 = vmatprep.subr.bf16.mxu0 0
    %2385 = vmatpush1.bf16.msra.mxu0 %v2303
    %2386 = vmatprep.subr.bf16.mxu0 0
    %2387 = vmatpush1.bf16.msra.mxu0 %v2306
    %2388 = vmatprep.subr.bf16.mxu0 0
    %2389 = vmatpush1.bf16.msra.mxu0 0
    %2390 = vmatprep.subr.bf16.mxu0 0
    %2391 = vmatpush1.bf16.msra.mxu0 0
    %2392 = vmatprep.subr.bf16.mxu0 0
    %2393 = vmatpush1.bf16.msra.mxu0 0
    %2394 = vmatprep.subr.bf16.mxu0 0
    %2395 = vmatpush1.bf16.msra.mxu0 0
    %2396 = vmatprep.subr.bf16.mxu0 0
    %2397 = vmatpush1.bf16.msra.mxu0 0
    %2398 = vmatprep.subr.bf16.mxu0 0
    %2399 = vmatpush1.bf16.msra.mxu0 0
    %2400 = vmatprep.subr.bf16.mxu0 0
    %2401 = vmatpush1.bf16.msra.mxu0 0
    %2402 = vmatprep.subr.bf16.mxu0 0
    %2403 = vmatpush1.bf16.msra.mxu0 0
    %2404 = vmatprep.mubr.bf16.mxu0 0
    %2405 = vmatmul.mubr.bf16.gmra.mrb[0].mxu0 %v1849
    %v2406 = vpop.f32.mrb[0].mxu0
    %v2407 = vadd.f32 0.0, %v2406
    %v2408 = vpop.f32.mrb[0].mxu0
    %v2409 = vpop.f32.mrb[0].mxu0
    %v2410 = vpop.f32.mrb[0].mxu0
    %2411 = vdwg.mxu0
    %v2412 = vld [vmem:[#allocation3] sm:$0xff]
    %v2413 = vld [vmem:[#allocation3 + $0x8] sm:$0xff]
    %v2414 = vld [vmem:[#allocation3 + $0x10] sm:$0xff]
    %v2415 = vadd.f32 %v2412, %v2366
    %v2416 = vxor.u32 %v2415, 2147483648
    %v2417 = vmul.f32 %v2416, 1.442695
    %v2418 = vpow.pop %v2417
    %v2419 = vadd.f32 %v2418, 1.0
    %v2420 = vrcp.pop %v2419
    %v2421 = vmul.f32 1.0, %v2420
    %v2422 = vadd.f32 %v2413, %v2368
    %v2423 = vxor.u32 %v2422, 2147483648
    %v2424 = vmul.f32 %v2423, 1.442695
    %v2425 = vpow.pop %v2424
    %v2426 = vadd.f32 %v2425, 1.0
    %v2427 = vrcp.pop %v2426
    %v2428 = vmul.f32 1.0, %v2427
    %v2429 = vld [vmem:[%s9] sm:$0x1]
    %v2431 = vlaneseq
    %v2432 = vshrl.u32 %v2431, 7
    %v2433 = vsub.s32 0, %v2432
    %v2434 = vrot.slane %v2429, %v2433
    %v2436 = vadd.f32 %v2407, %v2434
    %v2437 = vmul.f32 %v2421, %v2436
    %v2438 = vadd.f32 %v2414, %v2437
    %v2439 = vtanh.pop %v2438
    %v2440 = vsub.f32 1.0, %v2428
    %v2441 = vmul.f32 %v2440, %v2439
    %v2442 = vmul.f32 %v2428, %v1848
    %v2443 = vadd.f32 %v2441, %v2442
    %2444 = vst [vmem:[%s17] sm:$0xff] %v2443
    %v2445 = vpack.c.bf16 %v2443, %v2443
    %v2446 = vld [vmem:[%s7] sm:$0xff]
    %v2447 = vld [vmem:[%s7 + $0x8] sm:$0xf]
    %v2448 = vld [vmem:[%s7 + $0xc] sm:$0xff]
    %v2449 = vld [vmem:[%s7 + $0x14] sm:$0xf]
    %v2450 = vld [vmem:[%s7 + $0x18] sm:$0xff]
    %v2451 = vld [vmem:[%s7 + $0x20] sm:$0xf]
    %v2452 = vld [vmem:[%s7 + $0x24] sm:$0xff]
    %v2453 = vld [vmem:[%s7 + $0x2c] sm:$0xf]
    %v2454 = vld [vmem:[%s7 + $0x30] sm:$0xff]
    %v2455 = vld [vmem:[%s7 + $0x38] sm:$0xf]
    %v2456 = vld [vmem:[%s7 + $0x3c] sm:$0xff]
    %v2457 = vld [vmem:[%s7 + $0x44] sm:$0xf]
    %v2458 = vld [vmem:[%s7 + $0x48] sm:$0xff]
    %v2459 = vld [vmem:[%s7 + $0x50] sm:$0xf]
    %v2460 = vld [vmem:[%s7 + $0x54] sm:$0xff]
    %v2461 = vld [vmem:[%s7 + $0x5c] sm:$0xf]
    %v2462 = vld [vmem:[%s7 + $0x60] sm:$0xff]
    %v2463 = vld [vmem:[%s7 + $0x68] sm:$0xf]
    %v2464 = vld [vmem:[%s7 + $0x6c] sm:$0xff]
    %v2465 = vld [vmem:[%s7 + $0x74] sm:$0xf]
    %v2466 = vld [vmem:[%s7 + $0x78] sm:$0xff]
    %v2467 = vld [vmem:[%s7 + $0x80] sm:$0xf]
    %v2468 = vld [vmem:[%s7 + $0x84] sm:$0xff]
    %v2469 = vld [vmem:[%s7 + $0x8c] sm:$0xf]
    %v2470 = vld [vmem:[%s7 + $0x90] sm:$0xff]
    %v2471 = vld [vmem:[%s7 + $0x98] sm:$0xf]
    %v2472 = vld [vmem:[%s7 + $0x9c] sm:$0xff]
    %v2473 = vld [vmem:[%s7 + $0xa4] sm:$0xf]
    %v2474 = vld [vmem:[%s7 + $0xa8] sm:$0xff]
    %v2475 = vld [vmem:[%s7 + $0xb0] sm:$0xf]
    %v2476 = vld [vmem:[%s7 + $0xb4] sm:$0xff]
    %v2477 = vld [vmem:[%s7 + $0xbc] sm:$0xf]
    %v2510 = vunpack.c.l.b16 %v2446
    %v2511 = vunpack.c.h.b16 %v2446
    %v2512 = vunpack.c.l.b16 %v2447
    %v2513 = vunpack.c.l.b16 %v2448
    %v2514 = vunpack.c.h.b16 %v2448
    %v2515 = vunpack.c.l.b16 %v2449
    %v2516 = vunpack.c.l.b16 %v2450
    %v2517 = vunpack.c.h.b16 %v2450
    %v2518 = vunpack.c.l.b16 %v2451
    %v2519 = vunpack.c.l.b16 %v2452
    %v2520 = vunpack.c.h.b16 %v2452
    %v2521 = vunpack.c.l.b16 %v2453
    %v2522 = vunpack.c.l.b16 %v2454
    %v2523 = vunpack.c.h.b16 %v2454
    %v2524 = vunpack.c.l.b16 %v2455
    %v2525 = vunpack.c.l.b16 %v2456
    %v2526 = vunpack.c.h.b16 %v2456
    %v2527 = vunpack.c.l.b16 %v2457
    %v2528 = vunpack.c.l.b16 %v2458
    %v2529 = vunpack.c.h.b16 %v2458
    %v2530 = vunpack.c.l.b16 %v2459
    %v2531 = vunpack.c.l.b16 %v2460
    %v2532 = vunpack.c.h.b16 %v2460
    %v2533 = vunpack.c.l.b16 %v2461
    %v2534 = vunpack.c.l.b16 %v2462
    %v2535 = vunpack.c.h.b16 %v2462
    %v2536 = vunpack.c.l.b16 %v2463
    %v2537 = vunpack.c.l.b16 %v2464
    %v2538 = vunpack.c.h.b16 %v2464
    %v2539 = vunpack.c.l.b16 %v2465
    %v2540 = vunpack.c.l.b16 %v2466
    %v2541 = vunpack.c.h.b16 %v2466
    %v2542 = vunpack.c.l.b16 %v2467
    %v2543 = vunpack.c.l.b16 %v2468
    %v2544 = vunpack.c.h.b16 %v2468
    %v2545 = vunpack.c.l.b16 %v2469
    %v2546 = vunpack.c.l.b16 %v2470
    %v2547 = vunpack.c.h.b16 %v2470
    %v2548 = vunpack.c.l.b16 %v2471
    %v2549 = vunpack.c.l.b16 %v2472
    %v2550 = vunpack.c.h.b16 %v2472
    %v2551 = vunpack.c.l.b16 %v2473
    %v2552 = vunpack.c.l.b16 %v2474
    %v2553 = vunpack.c.h.b16 %v2474
    %v2554 = vunpack.c.l.b16 %v2475
    %v2555 = vunpack.c.l.b16 %v2476
    %v2556 = vunpack.c.h.b16 %v2476
    %v2557 = vunpack.c.l.b16 %v2477
    %v2558 = vpack.c.b16 %v2513, %v2510
    %v2559 = vpack.c.b16 %v2514, %v2511
    %v2560 = vpack.c.b16 %v2515, %v2512
    %v2561 = vpack.c.b16 %v2519, %v2516
    %v2562 = vpack.c.b16 %v2520, %v2517
    %v2563 = vpack.c.b16 %v2521, %v2518
    %v2564 = vpack.c.b16 %v2525, %v2522
    %v2565 = vpack.c.b16 %v2526, %v2523
    %v2566 = vpack.c.b16 %v2527, %v2524
    %v2567 = vpack.c.b16 %v2531, %v2528
    %v2568 = vpack.c.b16 %v2532, %v2529
    %v2569 = vpack.c.b16 %v2533, %v2530
    %v2570 = vpack.c.b16 %v2537, %v2534
    %v2571 = vpack.c.b16 %v2538, %v2535
    %v2572 = vpack.c.b16 %v2539, %v2536
    %v2573 = vpack.c.b16 %v2543, %v2540
    %v2574 = vpack.c.b16 %v2544, %v2541
    %v2575 = vpack.c.b16 %v2545, %v2542
    %v2576 = vpack.c.b16 %v2549, %v2546
    %v2577 = vpack.c.b16 %v2550, %v2547
    %v2578 = vpack.c.b16 %v2551, %v2548
    %v2579 = vpack.c.b16 %v2555, %v2552
    %v2580 = vpack.c.b16 %v2556, %v2553
    %v2581 = vpack.c.b16 %v2557, %v2554
    %2606 = vmatprep.subr.bf16.mxu0 %v2559
    %2607 = vmatpush1.bf16.msra.mxu0 %v2558
    %2608 = vmatprep.subr.bf16.mxu0 %v2562
    %2609 = vmatpush1.bf16.msra.mxu0 %v2561
    %2610 = vmatprep.subr.bf16.mxu0 %v2565
    %2611 = vmatpush1.bf16.msra.mxu0 %v2564
    %2612 = vmatprep.subr.bf16.mxu0 %v2568
    %2613 = vmatpush1.bf16.msra.mxu0 %v2567
    %2614 = vmatprep.subr.bf16.mxu0 %v2571
    %2615 = vmatpush1.bf16.msra.mxu0 %v2570
    %2616 = vmatprep.subr.bf16.mxu0 %v2574
    %2617 = vmatpush1.bf16.msra.mxu0 %v2573
    %2618 = vmatprep.subr.bf16.mxu0 %v2577
    %2619 = vmatpush1.bf16.msra.mxu0 %v2576
    %2620 = vmatprep.subr.bf16.mxu0 %v2580
    %2621 = vmatpush1.bf16.msra.mxu0 %v2579
    %2622 = vmatprep.subr.bf16.mxu0 0
    %2623 = vmatpush1.bf16.msra.mxu0 0
    %2624 = vmatprep.subr.bf16.mxu0 0
    %2625 = vmatpush1.bf16.msra.mxu0 0
    %2626 = vmatprep.subr.bf16.mxu0 0
    %2627 = vmatpush1.bf16.msra.mxu0 0
    %2628 = vmatprep.subr.bf16.mxu0 0
    %2629 = vmatpush1.bf16.msra.mxu0 0
    %2630 = vmatprep.subr.bf16.mxu0 0
    %2631 = vmatpush1.bf16.msra.mxu0 0
    %2632 = vmatprep.subr.bf16.mxu0 0
    %2633 = vmatpush1.bf16.msra.mxu0 0
    %2634 = vmatprep.subr.bf16.mxu0 0
    %2635 = vmatpush1.bf16.msra.mxu0 0
    %2636 = vmatprep.subr.bf16.mxu0 0
    %2637 = vmatpush1.bf16.msra.mxu0 0
    %2638 = vmatprep.mubr.bf16.mxu0 0
    %2639 = vmatmul.mubr.bf16.gmra.mrb[0].mxu0 %v2445
    %v2640 = vpop.f32.mrb[0].mxu0
    %v2641 = vadd.f32 0.0, %v2640
    %v2642 = vpop.f32.mrb[0].mxu0
    %v2643 = vadd.f32 0.0, %v2642
    %v2644 = vpop.f32.mrb[0].mxu0
    %v2645 = vpop.f32.mrb[0].mxu0
    %2646 = vdwg.mxu0
    %2647 = vmatprep.subr.bf16.mxu0 0
    %2648 = vmatpush1.bf16.msra.mxu0 %v2560
    %2649 = vmatprep.subr.bf16.mxu0 0
    %2650 = vmatpush1.bf16.msra.mxu0 %v2563
    %2651 = vmatprep.subr.bf16.mxu0 0
    %2652 = vmatpush1.bf16.msra.mxu0 %v2566
    %2653 = vmatprep.subr.bf16.mxu0 0
    %2654 = vmatpush1.bf16.msra.mxu0 %v2569
    %2655 = vmatprep.subr.bf16.mxu0 0
    %2656 = vmatpush1.bf16.msra.mxu0 %v2572
    %2657 = vmatprep.subr.bf16.mxu0 0
    %2658 = vmatpush1.bf16.msra.mxu0 %v2575
    %2659 = vmatprep.subr.bf16.mxu0 0
    %2660 = vmatpush1.bf16.msra.mxu0 %v2578
    %2661 = vmatprep.subr.bf16.mxu0 0
    %2662 = vmatpush1.bf16.msra.mxu0 %v2581
    %2663 = vmatprep.subr.bf16.mxu0 0
    %2664 = vmatpush1.bf16.msra.mxu0 0
    %2665 = vmatprep.subr.bf16.mxu0 0
    %2666 = vmatpush1.bf16.msra.mxu0 0
    %2667 = vmatprep.subr.bf16.mxu0 0
    %2668 = vmatpush1.bf16.msra.mxu0 0
    %2669 = vmatprep.subr.bf16.mxu0 0
    %2670 = vmatpush1.bf16.msra.mxu0 0
    %2671 = vmatprep.subr.bf16.mxu0 0
    %2672 = vmatpush1.bf16.msra.mxu0 0
    %2673 = vmatprep.subr.bf16.mxu0 0
    %2674 = vmatpush1.bf16.msra.mxu0 0
    %2675 = vmatprep.subr.bf16.mxu0 0
    %2676 = vmatpush1.bf16.msra.mxu0 0
    %2677 = vmatprep.subr.bf16.mxu0 0
    %2678 = vmatpush1.bf16.msra.mxu0 0
    %2679 = vmatprep.mubr.bf16.mxu0 0
    %2680 = vmatmul.mubr.bf16.gmra.mrb[0].mxu0 %v2445
    %v2681 = vpop.f32.mrb[0].mxu0
    %v2682 = vadd.f32 0.0, %v2681
    %v2683 = vpop.f32.mrb[0].mxu0
    %v2684 = vpop.f32.mrb[0].mxu0
    %v2685 = vpop.f32.mrb[0].mxu0
    %2686 = vdwg.mxu0
    %s2687 = scalar_lea.vmem [#allocation3], 24
    %v2688 = vld [vmem:[%s2687] sm:$0xff]
    %v2689 = vld [vmem:[%s2687 + $0x8] sm:$0xff]
    %v2690 = vld [vmem:[%s2687 + $0x10] sm:$0xff]
    %v2691 = vadd.f32 %v2688, %v2641
    %v2692 = vxor.u32 %v2691, 2147483648
    %v2693 = vmul.f32 %v2692, 1.442695
    %v2694 = vpow.pop %v2693
    %v2695 = vadd.f32 %v2694, 1.0
    %v2696 = vrcp.pop %v2695
    %v2697 = vmul.f32 1.0, %v2696
    %v2698 = vadd.f32 %v2689, %v2643
    %v2699 = vxor.u32 %v2698, 2147483648
    %v2700 = vmul.f32 %v2699, 1.442695
    %v2701 = vpow.pop %v2700
    %v2702 = vadd.f32 %v2701, 1.0
    %v2703 = vrcp.pop %v2702
    %v2704 = vmul.f32 1.0, %v2703
    %v2705 = vld [vmem:[%s9] sm:$0x1]
    %v2707 = vlaneseq
    %v2708 = vshrl.u32 %v2707, 7
    %v2709 = vsub.s32 0, %v2708
    %v2710 = vrot.slane %v2705, %v2709
    %v2712 = vadd.f32 %v2682, %v2710
    %v2713 = vmul.f32 %v2697, %v2712
    %v2714 = vadd.f32 %v2690, %v2713
    %v2715 = vtanh.pop %v2714
    %v2716 = vsub.f32 1.0, %v2704
    %v2717 = vmul.f32 %v2716, %v2715
    %v2718 = vmul.f32 %v2704, %v2443
    %v2719 = vadd.f32 %v2717, %v2718
    %s2720 = scalar_lea.vmem %s17, 8
    %2721 = vst [vmem:[%s2720] sm:$0xff] %v2719
    %v2722 = vpack.c.bf16 %v2719, %v2719
    %v2723 = vld [vmem:[%s7] sm:$0xff]
    %v2724 = vld [vmem:[%s7 + $0x8] sm:$0xf]
    %v2725 = vld [vmem:[%s7 + $0xc] sm:$0xff]
    %v2726 = vld [vmem:[%s7 + $0x14] sm:$0xf]
    %v2727 = vld [vmem:[%s7 + $0x18] sm:$0xff]
    %v2728 = vld [vmem:[%s7 + $0x20] sm:$0xf]
    %v2729 = vld [vmem:[%s7 + $0x24] sm:$0xff]
    %v2730 = vld [vmem:[%s7 + $0x2c] sm:$0xf]
    %v2731 = vld [vmem:[%s7 + $0x30] sm:$0xff]
    %v2732 = vld [vmem:[%s7 + $0x38] sm:$0xf]
    %v2733 = vld [vmem:[%s7 + $0x3c] sm:$0xff]
    %v2734 = vld [vmem:[%s7 + $0x44] sm:$0xf]
    %v2735 = vld [vmem:[%s7 + $0x48] sm:$0xff]
    %v2736 = vld [vmem:[%s7 + $0x50] sm:$0xf]
    %v2737 = vld [vmem:[%s7 + $0x54] sm:$0xff]
    %v2738 = vld [vmem:[%s7 + $0x5c] sm:$0xf]
    %v2739 = vld [vmem:[%s7 + $0x60] sm:$0xff]
    %v2740 = vld [vmem:[%s7 + $0x68] sm:$0xf]
    %v2741 = vld [vmem:[%s7 + $0x6c] sm:$0xff]
    %v2742 = vld [vmem:[%s7 + $0x74] sm:$0xf]
    %v2743 = vld [vmem:[%s7 + $0x78] sm:$0xff]
    %v2744 = vld [vmem:[%s7 + $0x80] sm:$0xf]
    %v2745 = vld [vmem:[%s7 + $0x84] sm:$0xff]
    %v2746 = vld [vmem:[%s7 + $0x8c] sm:$0xf]
    %v2747 = vld [vmem:[%s7 + $0x90] sm:$0xff]
    %v2748 = vld [vmem:[%s7 + $0x98] sm:$0xf]
    %v2749 = vld [vmem:[%s7 + $0x9c] sm:$0xff]
    %v2750 = vld [vmem:[%s7 + $0xa4] sm:$0xf]
    %v2751 = vld [vmem:[%s7 + $0xa8] sm:$0xff]
    %v2752 = vld [vmem:[%s7 + $0xb0] sm:$0xf]
    %v2753 = vld [vmem:[%s7 + $0xb4] sm:$0xff]
    %v2754 = vld [vmem:[%s7 + $0xbc] sm:$0xf]
    %v2787 = vunpack.c.l.b16 %v2723
    %v2788 = vunpack.c.h.b16 %v2723
    %v2789 = vunpack.c.l.b16 %v2724
    %v2790 = vunpack.c.l.b16 %v2725
    %v2791 = vunpack.c.h.b16 %v2725
    %v2792 = vunpack.c.l.b16 %v2726
    %v2793 = vunpack.c.l.b16 %v2727
    %v2794 = vunpack.c.h.b16 %v2727
    %v2795 = vunpack.c.l.b16 %v2728
    %v2796 = vunpack.c.l.b16 %v2729
    %v2797 = vunpack.c.h.b16 %v2729
    %v2798 = vunpack.c.l.b16 %v2730
    %v2799 = vunpack.c.l.b16 %v2731
    %v2800 = vunpack.c.h.b16 %v2731
    %v2801 = vunpack.c.l.b16 %v2732
    %v2802 = vunpack.c.l.b16 %v2733
    %v2803 = vunpack.c.h.b16 %v2733
    %v2804 = vunpack.c.l.b16 %v2734
    %v2805 = vunpack.c.l.b16 %v2735
    %v2806 = vunpack.c.h.b16 %v2735
    %v2807 = vunpack.c.l.b16 %v2736
    %v2808 = vunpack.c.l.b16 %v2737
    %v2809 = vunpack.c.h.b16 %v2737
    %v2810 = vunpack.c.l.b16 %v2738
    %v2811 = vunpack.c.l.b16 %v2739
    %v2812 = vunpack.c.h.b16 %v2739
    %v2813 = vunpack.c.l.b16 %v2740
    %v2814 = vunpack.c.l.b16 %v2741
    %v2815 = vunpack.c.h.b16 %v2741
    %v2816 = vunpack.c.l.b16 %v2742
    %v2817 = vunpack.c.l.b16 %v2743
    %v2818 = vunpack.c.h.b16 %v2743
    %v2819 = vunpack.c.l.b16 %v2744
    %v2820 = vunpack.c.l.b16 %v2745
    %v2821 = vunpack.c.h.b16 %v2745
    %v2822 = vunpack.c.l.b16 %v2746
    %v2823 = vunpack.c.l.b16 %v2747
    %v2824 = vunpack.c.h.b16 %v2747
    %v2825 = vunpack.c.l.b16 %v2748
    %v2826 = vunpack.c.l.b16 %v2749
    %v2827 = vunpack.c.h.b16 %v2749
    %v2828 = vunpack.c.l.b16 %v2750
    %v2829 = vunpack.c.l.b16 %v2751
    %v2830 = vunpack.c.h.b16 %v2751
    %v2831 = vunpack.c.l.b16 %v2752
    %v2832 = vunpack.c.l.b16 %v2753
    %v2833 = vunpack.c.h.b16 %v2753
    %v2834 = vunpack.c.l.b16 %v2754
    %v2835 = vpack.c.b16 %v2790, %v2787
    %v2836 = vpack.c.b16 %v2791, %v2788
    %v2837 = vpack.c.b16 %v2792, %v2789
    %v2838 = vpack.c.b16 %v2796, %v2793
    %v2839 = vpack.c.b16 %v2797, %v2794
    %v2840 = vpack.c.b16 %v2798, %v2795
    %v2841 = vpack.c.b16 %v2802, %v2799
    %v2842 = vpack.c.b16 %v2803, %v2800
    %v2843 = vpack.c.b16 %v2804, %v2801
    %v2844 = vpack.c.b16 %v2808, %v2805
    %v2845 = vpack.c.b16 %v2809, %v2806
    %v2846 = vpack.c.b16 %v2810, %v2807
    %v2847 = vpack.c.b16 %v2814, %v2811
    %v2848 = vpack.c.b16 %v2815, %v2812
    %v2849 = vpack.c.b16 %v2816, %v2813
    %v2850 = vpack.c.b16 %v2820, %v2817
    %v2851 = vpack.c.b16 %v2821, %v2818
    %v2852 = vpack.c.b16 %v2822, %v2819
    %v2853 = vpack.c.b16 %v2826, %v2823
    %v2854 = vpack.c.b16 %v2827, %v2824
    %v2855 = vpack.c.b16 %v2828, %v2825
    %v2856 = vpack.c.b16 %v2832, %v2829
    %v2857 = vpack.c.b16 %v2833, %v2830
    %v2858 = vpack.c.b16 %v2834, %v2831
    %2883 = vmatprep.subr.bf16.mxu0 %v2836
    %2884 = vmatpush1.bf16.msra.mxu0 %v2835
    %2885 = vmatprep.subr.bf16.mxu0 %v2839
    %2886 = vmatpush1.bf16.msra.mxu0 %v2838
    %2887 = vmatprep.subr.bf16.mxu0 %v2842
    %2888 = vmatpush1.bf16.msra.mxu0 %v2841
    %2889 = vmatprep.subr.bf16.mxu0 %v2845
    %2890 = vmatpush1.bf16.msra.mxu0 %v2844
    %2891 = vmatprep.subr.bf16.mxu0 %v2848
    %2892 = vmatpush1.bf16.msra.mxu0 %v2847
    %2893 = vmatprep.subr.bf16.mxu0 %v2851
    %2894 = vmatpush1.bf16.msra.mxu0 %v2850
    %2895 = vmatprep.subr.bf16.mxu0 %v2854
    %2896 = vmatpush1.bf16.msra.mxu0 %v2853
    %2897 = vmatprep.subr.bf16.mxu0 %v2857
    %2898 = vmatpush1.bf16.msra.mxu0 %v2856
    %2899 = vmatprep.subr.bf16.mxu0 0
    %2900 = vmatpush1.bf16.msra.mxu0 0
    %2901 = vmatprep.subr.bf16.mxu0 0
    %2902 = vmatpush1.bf16.msra.mxu0 0
    %2903 = vmatprep.subr.bf16.mxu0 0
    %2904 = vmatpush1.bf16.msra.mxu0 0
    %2905 = vmatprep.subr.bf16.mxu0 0
    %2906 = vmatpush1.bf16.msra.mxu0 0
    %2907 = vmatprep.subr.bf16.mxu0 0
    %2908 = vmatpush1.bf16.msra.mxu0 0
    %2909 = vmatprep.subr.bf16.mxu0 0
    %2910 = vmatpush1.bf16.msra.mxu0 0
    %2911 = vmatprep.subr.bf16.mxu0 0
    %2912 = vmatpush1.bf16.msra.mxu0 0
    %2913 = vmatprep.subr.bf16.mxu0 0
    %2914 = vmatpush1.bf16.msra.mxu0 0
    %2915 = vmatprep.mubr.bf16.mxu0 0
    %2916 = vmatmul.mubr.bf16.gmra.mrb[0].mxu0 %v2722
    %v2917 = vpop.f32.mrb[0].mxu0
    %v2918 = vadd.f32 0.0, %v2917
    %v2919 = vpop.f32.mrb[0].mxu0
    %v2920 = vadd.f32 0.0, %v2919
    %v2921 = vpop.f32.mrb[0].mxu0
    %v2922 = vpop.f32.mrb[0].mxu0
    %2923 = vdwg.mxu0
    %2924 = vmatprep.subr.bf16.mxu0 0
    %2925 = vmatpush1.bf16.msra.mxu0 %v2837
    %2926 = vmatprep.subr.bf16.mxu0 0
    %2927 = vmatpush1.bf16.msra.mxu0 %v2840
    %2928 = vmatprep.subr.bf16.mxu0 0
    %2929 = vmatpush1.bf16.msra.mxu0 %v2843
    %2930 = vmatprep.subr.bf16.mxu0 0
    %2931 = vmatpush1.bf16.msra.mxu0 %v2846
    %2932 = vmatprep.subr.bf16.mxu0 0
    %2933 = vmatpush1.bf16.msra.mxu0 %v2849
    %2934 = vmatprep.subr.bf16.mxu0 0
    %2935 = vmatpush1.bf16.msra.mxu0 %v2852
    %2936 = vmatprep.subr.bf16.mxu0 0
    %2937 = vmatpush1.bf16.msra.mxu0 %v2855
    %2938 = vmatprep.subr.bf16.mxu0 0
    %2939 = vmatpush1.bf16.msra.mxu0 %v2858
    %2940 = vmatprep.subr.bf16.mxu0 0
    %2941 = vmatpush1.bf16.msra.mxu0 0
    %2942 = vmatprep.subr.bf16.mxu0 0
    %2943 = vmatpush1.bf16.msra.mxu0 0
    %2944 = vmatprep.subr.bf16.mxu0 0
    %2945 = vmatpush1.bf16.msra.mxu0 0
    %2946 = vmatprep.subr.bf16.mxu0 0
    %2947 = vmatpush1.bf16.msra.mxu0 0
    %2948 = vmatprep.subr.bf16.mxu0 0
    %2949 = vmatpush1.bf16.msra.mxu0 0
    %2950 = vmatprep.subr.bf16.mxu0 0
    %2951 = vmatpush1.bf16.msra.mxu0 0
    %2952 = vmatprep.subr.bf16.mxu0 0
    %2953 = vmatpush1.bf16.msra.mxu0 0
    %2954 = vmatprep.subr.bf16.mxu0 0
    %2955 = vmatpush1.bf16.msra.mxu0 0
    %2956 = vmatprep.mubr.bf16.mxu0 0
    %2957 = vmatmul.mubr.bf16.gmra.mrb[0].mxu0 %v2722
    %v2958 = vpop.f32.mrb[0].mxu0
    %v2959 = vadd.f32 0.0, %v2958
    %v2960 = vpop.f32.mrb[0].mxu0
    %v2961 = vpop.f32.mrb[0].mxu0
    %v2962 = vpop.f32.mrb[0].mxu0
    %2963 = vdwg.mxu0
    %s2964 = scalar_lea.vmem [#allocation3], 48
    %v2965 = vld [vmem:[%s2964] sm:$0xff]
    %v2966 = vld [vmem:[%s2964 + $0x8] sm:$0xff]
    %v2967 = vld [vmem:[%s2964 + $0x10] sm:$0xff]
    %v2968 = vadd.f32 %v2965, %v2918
    %v2969 = vxor.u32 %v2968, 2147483648
    %v2970 = vmul.f32 %v2969, 1.442695
    %v2971 = vpow.pop %v2970
    %v2972 = vadd.f32 %v2971, 1.0
    %v2973 = vrcp.pop %v2972
    %v2974 = vmul.f32 1.0, %v2973
    %v2975 = vadd.f32 %v2966, %v2920
    %v2976 = vxor.u32 %v2975, 2147483648
    %v2977 = vmul.f32 %v2976, 1.442695
    %v2978 = vpow.pop %v2977
    %v2979 = vadd.f32 %v2978, 1.0
    %v2980 = vrcp.pop %v2979
    %v2981 = vmul.f32 1.0, %v2980
    %v2982 = vld [vmem:[%s9] sm:$0x1]
    %v2984 = vlaneseq
    %v2985 = vshrl.u32 %v2984, 7
    %v2986 = vsub.s32 0, %v2985
    %v2987 = vrot.slane %v2982, %v2986
    %v2989 = vadd.f32 %v2959, %v2987
    %v2990 = vmul.f32 %v2974, %v2989
    %v2991 = vadd.f32 %v2967, %v2990
    %v2992 = vtanh.pop %v2991
    %v2993 = vsub.f32 1.0, %v2981
    %v2994 = vmul.f32 %v2993, %v2992
    %v2995 = vmul.f32 %v2981, %v2719
    %v2996 = vadd.f32 %v2994, %v2995
    %s2997 = scalar_lea.vmem %s17, 16
    %2998 = vst [vmem:[%s2997] sm:$0xff] %v2996
    %v2999 = vpack.c.bf16 %v2996, %v2996
    %v3000 = vld [vmem:[%s7] sm:$0xff]
    %v3001 = vld [vmem:[%s7 + $0x8] sm:$0xf]
    %v3002 = vld [vmem:[%s7 + $0xc] sm:$0xff]
    %v3003 = vld [vmem:[%s7 + $0x14] sm:$0xf]
    %v3004 = vld [vmem:[%s7 + $0x18] sm:$0xff]
    %v3005 = vld [vmem:[%s7 + $0x20] sm:$0xf]
    %v3006 = vld [vmem:[%s7 + $0x24] sm:$0xff]
    %v3007 = vld [vmem:[%s7 + $0x2c] sm:$0xf]
    %v3008 = vld [vmem:[%s7 + $0x30] sm:$0xff]
    %v3009 = vld [vmem:[%s7 + $0x38] sm:$0xf]
    %v3010 = vld [vmem:[%s7 + $0x3c] sm:$0xff]
    %v3011 = vld [vmem:[%s7 + $0x44] sm:$0xf]
    %v3012 = vld [vmem:[%s7 + $0x48] sm:$0xff]
    %v3013 = vld [vmem:[%s7 + $0x50] sm:$0xf]
    %v3014 = vld [vmem:[%s7 + $0x54] sm:$0xff]
    %v3015 = vld [vmem:[%s7 + $0x5c] sm:$0xf]
    %v3016 = vld [vmem:[%s7 + $0x60] sm:$0xff]
    %v3017 = vld [vmem:[%s7 + $0x68] sm:$0xf]
    %v3018 = vld [vmem:[%s7 + $0x6c] sm:$0xff]
    %v3019 = vld [vmem:[%s7 + $0x74] sm:$0xf]
    %v3020 = vld [vmem:[%s7 + $0x78] sm:$0xff]
    %v3021 = vld [vmem:[%s7 + $0x80] sm:$0xf]
    %v3022 = vld [vmem:[%s7 + $0x84] sm:$0xff]
    %v3023 = vld [vmem:[%s7 + $0x8c] sm:$0xf]
    %v3024 = vld [vmem:[%s7 + $0x90] sm:$0xff]
    %v3025 = vld [vmem:[%s7 + $0x98] sm:$0xf]
    %v3026 = vld [vmem:[%s7 + $0x9c] sm:$0xff]
    %v3027 = vld [vmem:[%s7 + $0xa4] sm:$0xf]
    %v3028 = vld [vmem:[%s7 + $0xa8] sm:$0xff]
    %v3029 = vld [vmem:[%s7 + $0xb0] sm:$0xf]
    %v3030 = vld [vmem:[%s7 + $0xb4] sm:$0xff]
    %v3031 = vld [vmem:[%s7 + $0xbc] sm:$0xf]
    %v3064 = vunpack.c.l.b16 %v3000
    %v3065 = vunpack.c.h.b16 %v3000
    %v3066 = vunpack.c.l.b16 %v3001
    %v3067 = vunpack.c.l.b16 %v3002
    %v3068 = vunpack.c.h.b16 %v3002
    %v3069 = vunpack.c.l.b16 %v3003
    %v3070 = vunpack.c.l.b16 %v3004
    %v3071 = vunpack.c.h.b16 %v3004
    %v3072 = vunpack.c.l.b16 %v3005
    %v3073 = vunpack.c.l.b16 %v3006
    %v3074 = vunpack.c.h.b16 %v3006
    %v3075 = vunpack.c.l.b16 %v3007
    %v3076 = vunpack.c.l.b16 %v3008
    %v3077 = vunpack.c.h.b16 %v3008
    %v3078 = vunpack.c.l.b16 %v3009
    %v3079 = vunpack.c.l.b16 %v3010
    %v3080 = vunpack.c.h.b16 %v3010
    %v3081 = vunpack.c.l.b16 %v3011
    %v3082 = vunpack.c.l.b16 %v3012
    %v3083 = vunpack.c.h.b16 %v3012
    %v3084 = vunpack.c.l.b16 %v3013
    %v3085 = vunpack.c.l.b16 %v3014
    %v3086 = vunpack.c.h.b16 %v3014
    %v3087 = vunpack.c.l.b16 %v3015
    %v3088 = vunpack.c.l.b16 %v3016
    %v3089 = vunpack.c.h.b16 %v3016
    %v3090 = vunpack.c.l.b16 %v3017
    %v3091 = vunpack.c.l.b16 %v3018
    %v3092 = vunpack.c.h.b16 %v3018
    %v3093 = vunpack.c.l.b16 %v3019
    %v3094 = vunpack.c.l.b16 %v3020
    %v3095 = vunpack.c.h.b16 %v3020
    %v3096 = vunpack.c.l.b16 %v3021
    %v3097 = vunpack.c.l.b16 %v3022
    %v3098 = vunpack.c.h.b16 %v3022
    %v3099 = vunpack.c.l.b16 %v3023
    %v3100 = vunpack.c.l.b16 %v3024
    %v3101 = vunpack.c.h.b16 %v3024
    %v3102 = vunpack.c.l.b16 %v3025
    %v3103 = vunpack.c.l.b16 %v3026
    %v3104 = vunpack.c.h.b16 %v3026
    %v3105 = vunpack.c.l.b16 %v3027
    %v3106 = vunpack.c.l.b16 %v3028
    %v3107 = vunpack.c.h.b16 %v3028
    %v3108 = vunpack.c.l.b16 %v3029
    %v3109 = vunpack.c.l.b16 %v3030
    %v3110 = vunpack.c.h.b16 %v3030
    %v3111 = vunpack.c.l.b16 %v3031
    %v3112 = vpack.c.b16 %v3067, %v3064
    %v3113 = vpack.c.b16 %v3068, %v3065
    %v3114 = vpack.c.b16 %v3069, %v3066
    %v3115 = vpack.c.b16 %v3073, %v3070
    %v3116 = vpack.c.b16 %v3074, %v3071
    %v3117 = vpack.c.b16 %v3075, %v3072
    %v3118 = vpack.c.b16 %v3079, %v3076
    %v3119 = vpack.c.b16 %v3080, %v3077
    %v3120 = vpack.c.b16 %v3081, %v3078
    %v3121 = vpack.c.b16 %v3085, %v3082
    %v3122 = vpack.c.b16 %v3086, %v3083
    %v3123 = vpack.c.b16 %v3087, %v3084
    %v3124 = vpack.c.b16 %v3091, %v3088
    %v3125 = vpack.c.b16 %v3092, %v3089
    %v3126 = vpack.c.b16 %v3093, %v3090
    %v3127 = vpack.c.b16 %v3097, %v3094
    %v3128 = vpack.c.b16 %v3098, %v3095
    %v3129 = vpack.c.b16 %v3099, %v3096
    %v3130 = vpack.c.b16 %v3103, %v3100
    %v3131 = vpack.c.b16 %v3104, %v3101
    %v3132 = vpack.c.b16 %v3105, %v3102
    %v3133 = vpack.c.b16 %v3109, %v3106
    %v3134 = vpack.c.b16 %v3110, %v3107
    %v3135 = vpack.c.b16 %v3111, %v3108
    %3160 = vmatprep.subr.bf16.mxu0 %v3113
    %3161 = vmatpush1.bf16.msra.mxu0 %v3112
    %3162 = vmatprep.subr.bf16.mxu0 %v3116
    %3163 = vmatpush1.bf16.msra.mxu0 %v3115
    %3164 = vmatprep.subr.bf16.mxu0 %v3119
    %3165 = vmatpush1.bf16.msra.mxu0 %v3118
    %3166 = vmatprep.subr.bf16.mxu0 %v3122
    %3167 = vmatpush1.bf16.msra.mxu0 %v3121
    %3168 = vmatprep.subr.bf16.mxu0 %v3125
    %3169 = vmatpush1.bf16.msra.mxu0 %v3124
    %3170 = vmatprep.subr.bf16.mxu0 %v3128
    %3171 = vmatpush1.bf16.msra.mxu0 %v3127
    %3172 = vmatprep.subr.bf16.mxu0 %v3131
    %3173 = vmatpush1.bf16.msra.mxu0 %v3130
    %3174 = vmatprep.subr.bf16.mxu0 %v3134
    %3175 = vmatpush1.bf16.msra.mxu0 %v3133
    %3176 = vmatprep.subr.bf16.mxu0 0
    %3177 = vmatpush1.bf16.msra.mxu0 0
    %3178 = vmatprep.subr.bf16.mxu0 0
    %3179 = vmatpush1.bf16.msra.mxu0 0
    %3180 = vmatprep.subr.bf16.mxu0 0
    %3181 = vmatpush1.bf16.msra.mxu0 0
    %3182 = vmatprep.subr.bf16.mxu0 0
    %3183 = vmatpush1.bf16.msra.mxu0 0
    %3184 = vmatprep.subr.bf16.mxu0 0
    %3185 = vmatpush1.bf16.msra.mxu0 0
    %3186 = vmatprep.subr.bf16.mxu0 0
    %3187 = vmatpush1.bf16.msra.mxu0 0
    %3188 = vmatprep.subr.bf16.mxu0 0
    %3189 = vmatpush1.bf16.msra.mxu0 0
    %3190 = vmatprep.subr.bf16.mxu0 0
    %3191 = vmatpush1.bf16.msra.mxu0 0
    %3192 = vmatprep.mubr.bf16.mxu0 0
    %3193 = vmatmul.mubr.bf16.gmra.mrb[0].mxu0 %v2999
    %v3194 = vpop.f32.mrb[0].mxu0
    %v3195 = vadd.f32 0.0, %v3194
    %v3196 = vpop.f32.mrb[0].mxu0
    %v3197 = vadd.f32 0.0, %v3196
    %v3198 = vpop.f32.mrb[0].mxu0
    %v3199 = vpop.f32.mrb[0].mxu0
    %3200 = vdwg.mxu0
    %3201 = vmatprep.subr.bf16.mxu0 0
    %3202 = vmatpush1.bf16.msra.mxu0 %v3114
    %3203 = vmatprep.subr.bf16.mxu0 0
    %3204 = vmatpush1.bf16.msra.mxu0 %v3117
    %3205 = vmatprep.subr.bf16.mxu0 0
    %3206 = vmatpush1.bf16.msra.mxu0 %v3120
    %3207 = vmatprep.subr.bf16.mxu0 0
    %3208 = vmatpush1.bf16.msra.mxu0 %v3123
    %3209 = vmatprep.subr.bf16.mxu0 0
    %3210 = vmatpush1.bf16.msra.mxu0 %v3126
    %3211 = vmatprep.subr.bf16.mxu0 0
    %3212 = vmatpush1.bf16.msra.mxu0 %v3129
    %3213 = vmatprep.subr.bf16.mxu0 0
    %3214 = vmatpush1.bf16.msra.mxu0 %v3132
    %3215 = vmatprep.subr.bf16.mxu0 0
    %3216 = vmatpush1.bf16.msra.mxu0 %v3135
    %3217 = vmatprep.subr.bf16.mxu0 0
    %3218 = vmatpush1.bf16.msra.mxu0 0
    %3219 = vmatprep.subr.bf16.mxu0 0
    %3220 = vmatpush1.bf16.msra.mxu0 0
    %3221 = vmatprep.subr.bf16.mxu0 0
    %3222 = vmatpush1.bf16.msra.mxu0 0
    %3223 = vmatprep.subr.bf16.mxu0 0
    %3224 = vmatpush1.bf16.msra.mxu0 0
    %3225 = vmatprep.subr.bf16.mxu0 0
    %3226 = vmatpush1.bf16.msra.mxu0 0
    %3227 = vmatprep.subr.bf16.mxu0 0
    %3228 = vmatpush1.bf16.msra.mxu0 0
    %3229 = vmatprep.subr.bf16.mxu0 0
    %3230 = vmatpush1.bf16.msra.mxu0 0
    %3231 = vmatprep.subr.bf16.mxu0 0
    %3232 = vmatpush1.bf16.msra.mxu0 0
    %3233 = vmatprep.mubr.bf16.mxu0 0
    %3234 = vmatmul.mubr.bf16.gmra.mrb[0].mxu0 %v2999
    %v3235 = vpop.f32.mrb[0].mxu0
    %v3236 = vadd.f32 0.0, %v3235
    %v3237 = vpop.f32.mrb[0].mxu0
    %v3238 = vpop.f32.mrb[0].mxu0
    %v3239 = vpop.f32.mrb[0].mxu0
    %3240 = vdwg.mxu0
    %s3241 = scalar_lea.vmem [#allocation3], 72
    %v3242 = vld [vmem:[%s3241] sm:$0xff]
    %v3243 = vld [vmem:[%s3241 + $0x8] sm:$0xff]
    %v3244 = vld [vmem:[%s3241 + $0x10] sm:$0xff]
    %v3245 = vadd.f32 %v3242, %v3195
    %v3246 = vxor.u32 %v3245, 2147483648
    %v3247 = vmul.f32 %v3246, 1.442695
    %v3248 = vpow.pop %v3247
    %v3249 = vadd.f32 %v3248, 1.0
    %v3250 = vrcp.pop %v3249
    %v3251 = vmul.f32 1.0, %v3250
    %v3252 = vadd.f32 %v3243, %v3197
    %v3253 = vxor.u32 %v3252, 2147483648
    %v3254 = vmul.f32 %v3253, 1.442695
    %v3255 = vpow.pop %v3254
    %v3256 = vadd.f32 %v3255, 1.0
    %v3257 = vrcp.pop %v3256
    %v3258 = vmul.f32 1.0, %v3257
    %v3259 = vld [vmem:[%s9] sm:$0x1]
    %v3261 = vlaneseq
    %v3262 = vshrl.u32 %v3261, 7
    %v3263 = vsub.s32 0, %v3262
    %v3264 = vrot.slane %v3259, %v3263
    %v3266 = vadd.f32 %v3236, %v3264
    %v3267 = vmul.f32 %v3251, %v3266
    %v3268 = vadd.f32 %v3244, %v3267
    %v3269 = vtanh.pop %v3268
    %v3270 = vsub.f32 1.0, %v3258
    %v3271 = vmul.f32 %v3270, %v3269
    %v3272 = vmul.f32 %v3258, %v2996
    %v3273 = vadd.f32 %v3271, %v3272
    %s3274 = scalar_lea.vmem %s17, 24
    %3275 = vst [vmem:[%s3274] sm:$0xff] %v3273
    %v3276 = vpack.c.bf16 %v3273, %v3273
    %v3277 = vld [vmem:[%s7] sm:$0xff]
    %v3278 = vld [vmem:[%s7 + $0x8] sm:$0xf]
    %v3279 = vld [vmem:[%s7 + $0xc] sm:$0xff]
    %v3280 = vld [vmem:[%s7 + $0x14] sm:$0xf]
    %v3281 = vld [vmem:[%s7 + $0x18] sm:$0xff]
    %v3282 = vld [vmem:[%s7 + $0x20] sm:$0xf]
    %v3283 = vld [vmem:[%s7 + $0x24] sm:$0xff]
    %v3284 = vld [vmem:[%s7 + $0x2c] sm:$0xf]
    %v3285 = vld [vmem:[%s7 + $0x30] sm:$0xff]
    %v3286 = vld [vmem:[%s7 + $0x38] sm:$0xf]
    %v3287 = vld [vmem:[%s7 + $0x3c] sm:$0xff]
    %v3288 = vld [vmem:[%s7 + $0x44] sm:$0xf]
    %v3289 = vld [vmem:[%s7 + $0x48] sm:$0xff]
    %v3290 = vld [vmem:[%s7 + $0x50] sm:$0xf]
    %v3291 = vld [vmem:[%s7 + $0x54] sm:$0xff]
    %v3292 = vld [vmem:[%s7 + $0x5c] sm:$0xf]
    %v3293 = vld [vmem:[%s7 + $0x60] sm:$0xff]
    %v3294 = vld [vmem:[%s7 + $0x68] sm:$0xf]
    %v3295 = vld [vmem:[%s7 + $0x6c] sm:$0xff]
    %v3296 = vld [vmem:[%s7 + $0x74] sm:$0xf]
    %v3297 = vld [vmem:[%s7 + $0x78] sm:$0xff]
    %v3298 = vld [vmem:[%s7 + $0x80] sm:$0xf]
    %v3299 = vld [vmem:[%s7 + $0x84] sm:$0xff]
    %v3300 = vld [vmem:[%s7 + $0x8c] sm:$0xf]
    %v3301 = vld [vmem:[%s7 + $0x90] sm:$0xff]
    %v3302 = vld [vmem:[%s7 + $0x98] sm:$0xf]
    %v3303 = vld [vmem:[%s7 + $0x9c] sm:$0xff]
    %v3304 = vld [vmem:[%s7 + $0xa4] sm:$0xf]
    %v3305 = vld [vmem:[%s7 + $0xa8] sm:$0xff]
    %v3306 = vld [vmem:[%s7 + $0xb0] sm:$0xf]
    %v3307 = vld [vmem:[%s7 + $0xb4] sm:$0xff]
    %v3308 = vld [vmem:[%s7 + $0xbc] sm:$0xf]
    %v3341 = vunpack.c.l.b16 %v3277
    %v3342 = vunpack.c.h.b16 %v3277
    %v3343 = vunpack.c.l.b16 %v3278
    %v3344 = vunpack.c.l.b16 %v3279
    %v3345 = vunpack.c.h.b16 %v3279
    %v3346 = vunpack.c.l.b16 %v3280
    %v3347 = vunpack.c.l.b16 %v3281
    %v3348 = vunpack.c.h.b16 %v3281
    %v3349 = vunpack.c.l.b16 %v3282
    %v3350 = vunpack.c.l.b16 %v3283
    %v3351 = vunpack.c.h.b16 %v3283
    %v3352 = vunpack.c.l.b16 %v3284
    %v3353 = vunpack.c.l.b16 %v3285
    %v3354 = vunpack.c.h.b16 %v3285
    %v3355 = vunpack.c.l.b16 %v3286
    %v3356 = vunpack.c.l.b16 %v3287
    %v3357 = vunpack.c.h.b16 %v3287
    %v3358 = vunpack.c.l.b16 %v3288
    %v3359 = vunpack.c.l.b16 %v3289
    %v3360 = vunpack.c.h.b16 %v3289
    %v3361 = vunpack.c.l.b16 %v3290
    %v3362 = vunpack.c.l.b16 %v3291
    %v3363 = vunpack.c.h.b16 %v3291
    %v3364 = vunpack.c.l.b16 %v3292
    %v3365 = vunpack.c.l.b16 %v3293
    %v3366 = vunpack.c.h.b16 %v3293
    %v3367 = vunpack.c.l.b16 %v3294
    %v3368 = vunpack.c.l.b16 %v3295
    %v3369 = vunpack.c.h.b16 %v3295
    %v3370 = vunpack.c.l.b16 %v3296
    %v3371 = vunpack.c.l.b16 %v3297
    %v3372 = vunpack.c.h.b16 %v3297
    %v3373 = vunpack.c.l.b16 %v3298
    %v3374 = vunpack.c.l.b16 %v3299
    %v3375 = vunpack.c.h.b16 %v3299
    %v3376 = vunpack.c.l.b16 %v3300
    %v3377 = vunpack.c.l.b16 %v3301
    %v3378 = vunpack.c.h.b16 %v3301
    %v3379 = vunpack.c.l.b16 %v3302
    %v3380 = vunpack.c.l.b16 %v3303
    %v3381 = vunpack.c.h.b16 %v3303
    %v3382 = vunpack.c.l.b16 %v3304
    %v3383 = vunpack.c.l.b16 %v3305
    %v3384 = vunpack.c.h.b16 %v3305
    %v3385 = vunpack.c.l.b16 %v3306
    %v3386 = vunpack.c.l.b16 %v3307
    %v3387 = vunpack.c.h.b16 %v3307
    %v3388 = vunpack.c.l.b16 %v3308
    %v3389 = vpack.c.b16 %v3344, %v3341
    %v3390 = vpack.c.b16 %v3345, %v3342
    %v3391 = vpack.c.b16 %v3346, %v3343
    %v3392 = vpack.c.b16 %v3350, %v3347
    %v3393 = vpack.c.b16 %v3351, %v3348
    %v3394 = vpack.c.b16 %v3352, %v3349
    %v3395 = vpack.c.b16 %v3356, %v3353
    %v3396 = vpack.c.b16 %v3357, %v3354
    %v3397 = vpack.c.b16 %v3358, %v3355
    %v3398 = vpack.c.b16 %v3362, %v3359
    %v3399 = vpack.c.b16 %v3363, %v3360
    %v3400 = vpack.c.b16 %v3364, %v3361
    %v3401 = vpack.c.b16 %v3368, %v3365
    %v3402 = vpack.c.b16 %v3369, %v3366
    %v3403 = vpack.c.b16 %v3370, %v3367
    %v3404 = vpack.c.b16 %v3374, %v3371
    %v3405 = vpack.c.b16 %v3375, %v3372
    %v3406 = vpack.c.b16 %v3376, %v3373
    %v3407 = vpack.c.b16 %v3380, %v3377
    %v3408 = vpack.c.b16 %v3381, %v3378
    %v3409 = vpack.c.b16 %v3382, %v3379
    %v3410 = vpack.c.b16 %v3386, %v3383
    %v3411 = vpack.c.b16 %v3387, %v3384
    %v3412 = vpack.c.b16 %v3388, %v3385
    %3437 = vmatprep.subr.bf16.mxu0 %v3390
    %3438 = vmatpush1.bf16.msra.mxu0 %v3389
    %3439 = vmatprep.subr.bf16.mxu0 %v3393
    %3440 = vmatpush1.bf16.msra.mxu0 %v3392
    %3441 = vmatprep.subr.bf16.mxu0 %v3396
    %3442 = vmatpush1.bf16.msra.mxu0 %v3395
    %3443 = vmatprep.subr.bf16.mxu0 %v3399
    %3444 = vmatpush1.bf16.msra.mxu0 %v3398
    %3445 = vmatprep.subr.bf16.mxu0 %v3402
    %3446 = vmatpush1.bf16.msra.mxu0 %v3401
    %3447 = vmatprep.subr.bf16.mxu0 %v3405
    %3448 = vmatpush1.bf16.msra.mxu0 %v3404
    %3449 = vmatprep.subr.bf16.mxu0 %v3408
    %3450 = vmatpush1.bf16.msra.mxu0 %v3407
    %3451 = vmatprep.subr.bf16.mxu0 %v3411
    %3452 = vmatpush1.bf16.msra.mxu0 %v3410
    %3453 = vmatprep.subr.bf16.mxu0 0
    %3454 = vmatpush1.bf16.msra.mxu0 0
    %3455 = vmatprep.subr.bf16.mxu0 0
    %3456 = vmatpush1.bf16.msra.mxu0 0
    %3457 = vmatprep.subr.bf16.mxu0 0
    %3458 = vmatpush1.bf16.msra.mxu0 0
    %3459 = vmatprep.subr.bf16.mxu0 0
    %3460 = vmatpush1.bf16.msra.mxu0 0
    %3461 = vmatprep.subr.bf16.mxu0 0
    %3462 = vmatpush1.bf16.msra.mxu0 0
    %3463 = vmatprep.subr.bf16.mxu0 0
    %3464 = vmatpush1.bf16.msra.mxu0 0
    %3465 = vmatprep.subr.bf16.mxu0 0
    %3466 = vmatpush1.bf16.msra.mxu0 0
    %3467 = vmatprep.subr.bf16.mxu0 0
    %3468 = vmatpush1.bf16.msra.mxu0 0
    %3469 = vmatprep.mubr.bf16.mxu0 0
    %3470 = vmatmul.mubr.bf16.gmra.mrb[0].mxu0 %v3276
    %v3471 = vpop.f32.mrb[0].mxu0
    %v3472 = vadd.f32 0.0, %v3471
    %v3473 = vpop.f32.mrb[0].mxu0
    %v3474 = vadd.f32 0.0, %v3473
    %v3475 = vpop.f32.mrb[0].mxu0
    %v3476 = vpop.f32.mrb[0].mxu0
    %3477 = vdwg.mxu0
    %3478 = vmatprep.subr.bf16.mxu0 0
    %3479 = vmatpush1.bf16.msra.mxu0 %v3391
    %3480 = vmatprep.subr.bf16.mxu0 0
    %3481 = vmatpush1.bf16.msra.mxu0 %v3394
    %3482 = vmatprep.subr.bf16.mxu0 0
    %3483 = vmatpush1.bf16.msra.mxu0 %v3397
    %3484 = vmatprep.subr.bf16.mxu0 0
    %3485 = vmatpush1.bf16.msra.mxu0 %v3400
    %3486 = vmatprep.subr.bf16.mxu0 0
    %3487 = vmatpush1.bf16.msra.mxu0 %v3403
    %3488 = vmatprep.subr.bf16.mxu0 0
    %3489 = vmatpush1.bf16.msra.mxu0 %v3406
    %3490 = vmatprep.subr.bf16.mxu0 0
    %3491 = vmatpush1.bf16.msra.mxu0 %v3409
    %3492 = vmatprep.subr.bf16.mxu0 0
    %3493 = vmatpush1.bf16.msra.mxu0 %v3412
    %3494 = vmatprep.subr.bf16.mxu0 0
    %3495 = vmatpush1.bf16.msra.mxu0 0
    %3496 = vmatprep.subr.bf16.mxu0 0
    %3497 = vmatpush1.bf16.msra.mxu0 0
    %3498 = vmatprep.subr.bf16.mxu0 0
    %3499 = vmatpush1.bf16.msra.mxu0 0
    %3500 = vmatprep.subr.bf16.mxu0 0
    %3501 = vmatpush1.bf16.msra.mxu0 0
    %3502 = vmatprep.subr.bf16.mxu0 0
    %3503 = vmatpush1.bf16.msra.mxu0 0
    %3504 = vmatprep.subr.bf16.mxu0 0
    %3505 = vmatpush1.bf16.msra.mxu0 0
    %3506 = vmatprep.subr.bf16.mxu0 0
    %3507 = vmatpush1.bf16.msra.mxu0 0
    %3508 = vmatprep.subr.bf16.mxu0 0
    %3509 = vmatpush1.bf16.msra.mxu0 0
    %3510 = vmatprep.mubr.bf16.mxu0 0
    %3511 = vmatmul.mubr.bf16.gmra.mrb[0].mxu0 %v3276
    %v3512 = vpop.f32.mrb[0].mxu0
    %v3513 = vadd.f32 0.0, %v3512
    %v3514 = vpop.f32.mrb[0].mxu0
    %v3515 = vpop.f32.mrb[0].mxu0
    %v3516 = vpop.f32.mrb[0].mxu0
    %3517 = vdwg.mxu0
    %s3518 = scalar_lea.vmem [#allocation3], 96
    %v3519 = vld [vmem:[%s3518] sm:$0xff]
    %v3520 = vld [vmem:[%s3518 + $0x8] sm:$0xff]
    %v3521 = vld [vmem:[%s3518 + $0x10] sm:$0xff]
    %v3522 = vadd.f32 %v3519, %v3472
    %v3523 = vxor.u32 %v3522, 2147483648
    %v3524 = vmul.f32 %v3523, 1.442695
    %v3525 = vpow.pop %v3524
    %v3526 = vadd.f32 %v3525, 1.0
    %v3527 = vrcp.pop %v3526
    %v3528 = vmul.f32 1.0, %v3527
    %v3529 = vadd.f32 %v3520, %v3474
    %v3530 = vxor.u32 %v3529, 2147483648
    %v3531 = vmul.f32 %v3530, 1.442695
    %v3532 = vpow.pop %v3531
    %v3533 = vadd.f32 %v3532, 1.0
    %v3534 = vrcp.pop %v3533
    %v3535 = vmul.f32 1.0, %v3534
    %v3536 = vld [vmem:[%s9] sm:$0x1]
    %v3538 = vlaneseq
    %v3539 = vshrl.u32 %v3538, 7
    %v3540 = vsub.s32 0, %v3539
    %v3541 = vrot.slane %v3536, %v3540
    %v3543 = vadd.f32 %v3513, %v3541
    %v3544 = vmul.f32 %v3528, %v3543
    %v3545 = vadd.f32 %v3521, %v3544
    %v3546 = vtanh.pop %v3545
    %v3547 = vsub.f32 1.0, %v3535
    %v3548 = vmul.f32 %v3547, %v3546
    %v3549 = vmul.f32 %v3535, %v3273
    %v3550 = vadd.f32 %v3548, %v3549
    %s3551 = scalar_lea.vmem %s17, 32
    %3552 = vst [vmem:[%s3551] sm:$0xff] %v3550
    %v3553 = vpack.c.bf16 %v3550, %v3550
    %v3554 = vld [vmem:[%s7] sm:$0xff]
    %v3555 = vld [vmem:[%s7 + $0x8] sm:$0xf]
    %v3556 = vld [vmem:[%s7 + $0xc] sm:$0xff]
    %v3557 = vld [vmem:[%s7 + $0x14] sm:$0xf]
    %v3558 = vld [vmem:[%s7 + $0x18] sm:$0xff]
    %v3559 = vld [vmem:[%s7 + $0x20] sm:$0xf]
    %v3560 = vld [vmem:[%s7 + $0x24] sm:$0xff]
    %v3561 = vld [vmem:[%s7 + $0x2c] sm:$0xf]
    %v3562 = vld [vmem:[%s7 + $0x30] sm:$0xff]
    %v3563 = vld [vmem:[%s7 + $0x38] sm:$0xf]
    %v3564 = vld [vmem:[%s7 + $0x3c] sm:$0xff]
    %v3565 = vld [vmem:[%s7 + $0x44] sm:$0xf]
    %v3566 = vld [vmem:[%s7 + $0x48] sm:$0xff]
    %v3567 = vld [vmem:[%s7 + $0x50] sm:$0xf]
    %v3568 = vld [vmem:[%s7 + $0x54] sm:$0xff]
    %v3569 = vld [vmem:[%s7 + $0x5c] sm:$0xf]
    %v3570 = vld [vmem:[%s7 + $0x60] sm:$0xff]
    %v3571 = vld [vmem:[%s7 + $0x68] sm:$0xf]
    %v3572 = vld [vmem:[%s7 + $0x6c] sm:$0xff]
    %v3573 = vld [vmem:[%s7 + $0x74] sm:$0xf]
    %v3574 = vld [vmem:[%s7 + $0x78] sm:$0xff]
    %v3575 = vld [vmem:[%s7 + $0x80] sm:$0xf]
    %v3576 = vld [vmem:[%s7 + $0x84] sm:$0xff]
    %v3577 = vld [vmem:[%s7 + $0x8c] sm:$0xf]
    %v3578 = vld [vmem:[%s7 + $0x90] sm:$0xff]
    %v3579 = vld [vmem:[%s7 + $0x98] sm:$0xf]
    %v3580 = vld [vmem:[%s7 + $0x9c] sm:$0xff]
    %v3581 = vld [vmem:[%s7 + $0xa4] sm:$0xf]
    %v3582 = vld [vmem:[%s7 + $0xa8] sm:$0xff]
    %v3583 = vld [vmem:[%s7 + $0xb0] sm:$0xf]
    %v3584 = vld [vmem:[%s7 + $0xb4] sm:$0xff]
    %v3585 = vld [vmem:[%s7 + $0xbc] sm:$0xf]
    %v3618 = vunpack.c.l.b16 %v3554
    %v3619 = vunpack.c.h.b16 %v3554
    %v3620 = vunpack.c.l.b16 %v3555
    %v3621 = vunpack.c.l.b16 %v3556
    %v3622 = vunpack.c.h.b16 %v3556
    %v3623 = vunpack.c.l.b16 %v3557
    %v3624 = vunpack.c.l.b16 %v3558
    %v3625 = vunpack.c.h.b16 %v3558
    %v3626 = vunpack.c.l.b16 %v3559
    %v3627 = vunpack.c.l.b16 %v3560
    %v3628 = vunpack.c.h.b16 %v3560
    %v3629 = vunpack.c.l.b16 %v3561
    %v3630 = vunpack.c.l.b16 %v3562
    %v3631 = vunpack.c.h.b16 %v3562
    %v3632 = vunpack.c.l.b16 %v3563
    %v3633 = vunpack.c.l.b16 %v3564
    %v3634 = vunpack.c.h.b16 %v3564
    %v3635 = vunpack.c.l.b16 %v3565
    %v3636 = vunpack.c.l.b16 %v3566
    %v3637 = vunpack.c.h.b16 %v3566
    %v3638 = vunpack.c.l.b16 %v3567
    %v3639 = vunpack.c.l.b16 %v3568
    %v3640 = vunpack.c.h.b16 %v3568
    %v3641 = vunpack.c.l.b16 %v3569
    %v3642 = vunpack.c.l.b16 %v3570
    %v3643 = vunpack.c.h.b16 %v3570
    %v3644 = vunpack.c.l.b16 %v3571
    %v3645 = vunpack.c.l.b16 %v3572
    %v3646 = vunpack.c.h.b16 %v3572
    %v3647 = vunpack.c.l.b16 %v3573
    %v3648 = vunpack.c.l.b16 %v3574
    %v3649 = vunpack.c.h.b16 %v3574
    %v3650 = vunpack.c.l.b16 %v3575
    %v3651 = vunpack.c.l.b16 %v3576
    %v3652 = vunpack.c.h.b16 %v3576
    %v3653 = vunpack.c.l.b16 %v3577
    %v3654 = vunpack.c.l.b16 %v3578
    %v3655 = vunpack.c.h.b16 %v3578
    %v3656 = vunpack.c.l.b16 %v3579
    %v3657 = vunpack.c.l.b16 %v3580
    %v3658 = vunpack.c.h.b16 %v3580
    %v3659 = vunpack.c.l.b16 %v3581
    %v3660 = vunpack.c.l.b16 %v3582
    %v3661 = vunpack.c.h.b16 %v3582
    %v3662 = vunpack.c.l.b16 %v3583
    %v3663 = vunpack.c.l.b16 %v3584
    %v3664 = vunpack.c.h.b16 %v3584
    %v3665 = vunpack.c.l.b16 %v3585
    %v3666 = vpack.c.b16 %v3621, %v3618
    %v3667 = vpack.c.b16 %v3622, %v3619
    %v3668 = vpack.c.b16 %v3623, %v3620
    %v3669 = vpack.c.b16 %v3627, %v3624
    %v3670 = vpack.c.b16 %v3628, %v3625
    %v3671 = vpack.c.b16 %v3629, %v3626
    %v3672 = vpack.c.b16 %v3633, %v3630
    %v3673 = vpack.c.b16 %v3634, %v3631
    %v3674 = vpack.c.b16 %v3635, %v3632
    %v3675 = vpack.c.b16 %v3639, %v3636
    %v3676 = vpack.c.b16 %v3640, %v3637
    %v3677 = vpack.c.b16 %v3641, %v3638
    %v3678 = vpack.c.b16 %v3645, %v3642
    %v3679 = vpack.c.b16 %v3646, %v3643
    %v3680 = vpack.c.b16 %v3647, %v3644
    %v3681 = vpack.c.b16 %v3651, %v3648
    %v3682 = vpack.c.b16 %v3652, %v3649
    %v3683 = vpack.c.b16 %v3653, %v3650
    %v3684 = vpack.c.b16 %v3657, %v3654
    %v3685 = vpack.c.b16 %v3658, %v3655
    %v3686 = vpack.c.b16 %v3659, %v3656
    %v3687 = vpack.c.b16 %v3663, %v3660
    %v3688 = vpack.c.b16 %v3664, %v3661
    %v3689 = vpack.c.b16 %v3665, %v3662
    %3714 = vmatprep.subr.bf16.mxu0 %v3667
    %3715 = vmatpush1.bf16.msra.mxu0 %v3666
    %3716 = vmatprep.subr.bf16.mxu0 %v3670
    %3717 = vmatpush1.bf16.msra.mxu0 %v3669
    %3718 = vmatprep.subr.bf16.mxu0 %v3673
    %3719 = vmatpush1.bf16.msra.mxu0 %v3672
    %3720 = vmatprep.subr.bf16.mxu0 %v3676
    %3721 = vmatpush1.bf16.msra.mxu0 %v3675
    %3722 = vmatprep.subr.bf16.mxu0 %v3679
    %3723 = vmatpush1.bf16.msra.mxu0 %v3678
    %3724 = vmatprep.subr.bf16.mxu0 %v3682
    %3725 = vmatpush1.bf16.msra.mxu0 %v3681
    %3726 = vmatprep.subr.bf16.mxu0 %v3685
    %3727 = vmatpush1.bf16.msra.mxu0 %v3684
    %3728 = vmatprep.subr.bf16.mxu0 %v3688
    %3729 = vmatpush1.bf16.msra.mxu0 %v3687
    %3730 = vmatprep.subr.bf16.mxu0 0
    %3731 = vmatpush1.bf16.msra.mxu0 0
    %3732 = vmatprep.subr.bf16.mxu0 0
    %3733 = vmatpush1.bf16.msra.mxu0 0
    %3734 = vmatprep.subr.bf16.mxu0 0
    %3735 = vmatpush1.bf16.msra.mxu0 0
    %3736 = vmatprep.subr.bf16.mxu0 0
    %3737 = vmatpush1.bf16.msra.mxu0 0
    %3738 = vmatprep.subr.bf16.mxu0 0
    %3739 = vmatpush1.bf16.msra.mxu0 0
    %3740 = vmatprep.subr.bf16.mxu0 0
    %3741 = vmatpush1.bf16.msra.mxu0 0
    %3742 = vmatprep.subr.bf16.mxu0 0
    %3743 = vmatpush1.bf16.msra.mxu0 0
    %3744 = vmatprep.subr.bf16.mxu0 0
    %3745 = vmatpush1.bf16.msra.mxu0 0
    %3746 = vmatprep.mubr.bf16.mxu0 0
    %3747 = vmatmul.mubr.bf16.gmra.mrb[0].mxu0 %v3553
    %v3748 = vpop.f32.mrb[0].mxu0
    %v3749 = vadd.f32 0.0, %v3748
    %v3750 = vpop.f32.mrb[0].mxu0
    %v3751 = vadd.f32 0.0, %v3750
    %v3752 = vpop.f32.mrb[0].mxu0
    %v3753 = vpop.f32.mrb[0].mxu0
    %3754 = vdwg.mxu0
    %3755 = vmatprep.subr.bf16.mxu0 0
    %3756 = vmatpush1.bf16.msra.mxu0 %v3668
    %3757 = vmatprep.subr.bf16.mxu0 0
    %3758 = vmatpush1.bf16.msra.mxu0 %v3671
    %3759 = vmatprep.subr.bf16.mxu0 0
    %3760 = vmatpush1.bf16.msra.mxu0 %v3674
    %3761 = vmatprep.subr.bf16.mxu0 0
    %3762 = vmatpush1.bf16.msra.mxu0 %v3677
    %3763 = vmatprep.subr.bf16.mxu0 0
    %3764 = vmatpush1.bf16.msra.mxu0 %v3680
    %3765 = vmatprep.subr.bf16.mxu0 0
    %3766 = vmatpush1.bf16.msra.mxu0 %v3683
    %3767 = vmatprep.subr.bf16.mxu0 0
    %3768 = vmatpush1.bf16.msra.mxu0 %v3686
    %3769 = vmatprep.subr.bf16.mxu0 0
    %3770 = vmatpush1.bf16.msra.mxu0 %v3689
    %3771 = vmatprep.subr.bf16.mxu0 0
    %3772 = vmatpush1.bf16.msra.mxu0 0
    %3773 = vmatprep.subr.bf16.mxu0 0
    %3774 = vmatpush1.bf16.msra.mxu0 0
    %3775 = vmatprep.subr.bf16.mxu0 0
    %3776 = vmatpush1.bf16.msra.mxu0 0
    %3777 = vmatprep.subr.bf16.mxu0 0
    %3778 = vmatpush1.bf16.msra.mxu0 0
    %3779 = vmatprep.subr.bf16.mxu0 0
    %3780 = vmatpush1.bf16.msra.mxu0 0
    %3781 = vmatprep.subr.bf16.mxu0 0
    %3782 = vmatpush1.bf16.msra.mxu0 0
    %3783 = vmatprep.subr.bf16.mxu0 0
    %3784 = vmatpush1.bf16.msra.mxu0 0
    %3785 = vmatprep.subr.bf16.mxu0 0
    %3786 = vmatpush1.bf16.msra.mxu0 0
    %3787 = vmatprep.mubr.bf16.mxu0 0
    %3788 = vmatmul.mubr.bf16.gmra.mrb[0].mxu0 %v3553
    %v3789 = vpop.f32.mrb[0].mxu0
    %v3790 = vadd.f32 0.0, %v3789
    %v3791 = vpop.f32.mrb[0].mxu0
    %v3792 = vpop.f32.mrb[0].mxu0
    %v3793 = vpop.f32.mrb[0].mxu0
    %3794 = vdwg.mxu0
    %s3795 = scalar_lea.vmem [#allocation3], 120
    %v3796 = vld [vmem:[%s3795] sm:$0xff]
    %v3797 = vld [vmem:[%s3795 + $0x8] sm:$0xff]
    %v3798 = vld [vmem:[%s3795 + $0x10] sm:$0xff]
    %v3799 = vadd.f32 %v3796, %v3749
    %v3800 = vxor.u32 %v3799, 2147483648
    %v3801 = vmul.f32 %v3800, 1.442695
    %v3802 = vpow.pop %v3801
    %v3803 = vadd.f32 %v3802, 1.0
    %v3804 = vrcp.pop %v3803
    %v3805 = vmul.f32 1.0, %v3804
    %v3806 = vadd.f32 %v3797, %v3751
    %v3807 = vxor.u32 %v3806, 2147483648
    %v3808 = vmul.f32 %v3807, 1.442695
    %v3809 = vpow.pop %v3808
    %v3810 = vadd.f32 %v3809, 1.0
    %v3811 = vrcp.pop %v3810
    %v3812 = vmul.f32 1.0, %v3811
    %v3813 = vld [vmem:[%s9] sm:$0x1]
    %v3815 = vlaneseq
    %v3816 = vshrl.u32 %v3815, 7
    %v3817 = vsub.s32 0, %v3816
    %v3818 = vrot.slane %v3813, %v3817
    %v3820 = vadd.f32 %v3790, %v3818
    %v3821 = vmul.f32 %v3805, %v3820
    %v3822 = vadd.f32 %v3798, %v3821
    %v3823 = vtanh.pop %v3822
    %v3824 = vsub.f32 1.0, %v3812
    %v3825 = vmul.f32 %v3824, %v3823
    %v3826 = vmul.f32 %v3812, %v3550
    %v3827 = vadd.f32 %v3825, %v3826
    %s3828 = scalar_lea.vmem %s17, 40
    %3829 = vst [vmem:[%s3828] sm:$0xff] %v3827
    %v3830 = vpack.c.bf16 %v3827, %v3827
    %v3831 = vld [vmem:[%s7] sm:$0xff]
    %v3832 = vld [vmem:[%s7 + $0x8] sm:$0xf]
    %v3833 = vld [vmem:[%s7 + $0xc] sm:$0xff]
    %v3834 = vld [vmem:[%s7 + $0x14] sm:$0xf]
    %v3835 = vld [vmem:[%s7 + $0x18] sm:$0xff]
    %v3836 = vld [vmem:[%s7 + $0x20] sm:$0xf]
    %v3837 = vld [vmem:[%s7 + $0x24] sm:$0xff]
    %v3838 = vld [vmem:[%s7 + $0x2c] sm:$0xf]
    %v3839 = vld [vmem:[%s7 + $0x30] sm:$0xff]
    %v3840 = vld [vmem:[%s7 + $0x38] sm:$0xf]
    %v3841 = vld [vmem:[%s7 + $0x3c] sm:$0xff]
    %v3842 = vld [vmem:[%s7 + $0x44] sm:$0xf]
    %v3843 = vld [vmem:[%s7 + $0x48] sm:$0xff]
    %v3844 = vld [vmem:[%s7 + $0x50] sm:$0xf]
    %v3845 = vld [vmem:[%s7 + $0x54] sm:$0xff]
    %v3846 = vld [vmem:[%s7 + $0x5c] sm:$0xf]
    %v3847 = vld [vmem:[%s7 + $0x60] sm:$0xff]
    %v3848 = vld [vmem:[%s7 + $0x68] sm:$0xf]
    %v3849 = vld [vmem:[%s7 + $0x6c] sm:$0xff]
    %v3850 = vld [vmem:[%s7 + $0x74] sm:$0xf]
    %v3851 = vld [vmem:[%s7 + $0x78] sm:$0xff]
    %v3852 = vld [vmem:[%s7 + $0x80] sm:$0xf]
    %v3853 = vld [vmem:[%s7 + $0x84] sm:$0xff]
    %v3854 = vld [vmem:[%s7 + $0x8c] sm:$0xf]
    %v3855 = vld [vmem:[%s7 + $0x90] sm:$0xff]
    %v3856 = vld [vmem:[%s7 + $0x98] sm:$0xf]
    %v3857 = vld [vmem:[%s7 + $0x9c] sm:$0xff]
    %v3858 = vld [vmem:[%s7 + $0xa4] sm:$0xf]
    %v3859 = vld [vmem:[%s7 + $0xa8] sm:$0xff]
    %v3860 = vld [vmem:[%s7 + $0xb0] sm:$0xf]
    %v3861 = vld [vmem:[%s7 + $0xb4] sm:$0xff]
    %v3862 = vld [vmem:[%s7 + $0xbc] sm:$0xf]
    %v3895 = vunpack.c.l.b16 %v3831
    %v3896 = vunpack.c.h.b16 %v3831
    %v3897 = vunpack.c.l.b16 %v3832
    %v3898 = vunpack.c.l.b16 %v3833
    %v3899 = vunpack.c.h.b16 %v3833
    %v3900 = vunpack.c.l.b16 %v3834
    %v3901 = vunpack.c.l.b16 %v3835
    %v3902 = vunpack.c.h.b16 %v3835
    %v3903 = vunpack.c.l.b16 %v3836
    %v3904 = vunpack.c.l.b16 %v3837
    %v3905 = vunpack.c.h.b16 %v3837
    %v3906 = vunpack.c.l.b16 %v3838
    %v3907 = vunpack.c.l.b16 %v3839
    %v3908 = vunpack.c.h.b16 %v3839
    %v3909 = vunpack.c.l.b16 %v3840
    %v3910 = vunpack.c.l.b16 %v3841
    %v3911 = vunpack.c.h.b16 %v3841
    %v3912 = vunpack.c.l.b16 %v3842
    %v3913 = vunpack.c.l.b16 %v3843
    %v3914 = vunpack.c.h.b16 %v3843
    %v3915 = vunpack.c.l.b16 %v3844
    %v3916 = vunpack.c.l.b16 %v3845
    %v3917 = vunpack.c.h.b16 %v3845
    %v3918 = vunpack.c.l.b16 %v3846
    %v3919 = vunpack.c.l.b16 %v3847
    %v3920 = vunpack.c.h.b16 %v3847
    %v3921 = vunpack.c.l.b16 %v3848
    %v3922 = vunpack.c.l.b16 %v3849
    %v3923 = vunpack.c.h.b16 %v3849
    %v3924 = vunpack.c.l.b16 %v3850
    %v3925 = vunpack.c.l.b16 %v3851
    %v3926 = vunpack.c.h.b16 %v3851
    %v3927 = vunpack.c.l.b16 %v3852
    %v3928 = vunpack.c.l.b16 %v3853
    %v3929 = vunpack.c.h.b16 %v3853
    %v3930 = vunpack.c.l.b16 %v3854
    %v3931 = vunpack.c.l.b16 %v3855
    %v3932 = vunpack.c.h.b16 %v3855
    %v3933 = vunpack.c.l.b16 %v3856
    %v3934 = vunpack.c.l.b16 %v3857
    %v3935 = vunpack.c.h.b16 %v3857
    %v3936 = vunpack.c.l.b16 %v3858
    %v3937 = vunpack.c.l.b16 %v3859
    %v3938 = vunpack.c.h.b16 %v3859
    %v3939 = vunpack.c.l.b16 %v3860
    %v3940 = vunpack.c.l.b16 %v3861
    %v3941 = vunpack.c.h.b16 %v3861
    %v3942 = vunpack.c.l.b16 %v3862
    %v3943 = vpack.c.b16 %v3898, %v3895
    %v3944 = vpack.c.b16 %v3899, %v3896
    %v3945 = vpack.c.b16 %v3900, %v3897
    %v3946 = vpack.c.b16 %v3904, %v3901
    %v3947 = vpack.c.b16 %v3905, %v3902
    %v3948 = vpack.c.b16 %v3906, %v3903
    %v3949 = vpack.c.b16 %v3910, %v3907
    %v3950 = vpack.c.b16 %v3911, %v3908
    %v3951 = vpack.c.b16 %v3912, %v3909
    %v3952 = vpack.c.b16 %v3916, %v3913
    %v3953 = vpack.c.b16 %v3917, %v3914
    %v3954 = vpack.c.b16 %v3918, %v3915
    %v3955 = vpack.c.b16 %v3922, %v3919
    %v3956 = vpack.c.b16 %v3923, %v3920
    %v3957 = vpack.c.b16 %v3924, %v3921
    %v3958 = vpack.c.b16 %v3928, %v3925
    %v3959 = vpack.c.b16 %v3929, %v3926
    %v3960 = vpack.c.b16 %v3930, %v3927
    %v3961 = vpack.c.b16 %v3934, %v3931
    %v3962 = vpack.c.b16 %v3935, %v3932
    %v3963 = vpack.c.b16 %v3936, %v3933
    %v3964 = vpack.c.b16 %v3940, %v3937
    %v3965 = vpack.c.b16 %v3941, %v3938
    %v3966 = vpack.c.b16 %v3942, %v3939
    %3991 = vmatprep.subr.bf16.mxu0 %v3944
    %3992 = vmatpush1.bf16.msra.mxu0 %v3943
    %3993 = vmatprep.subr.bf16.mxu0 %v3947
    %3994 = vmatpush1.bf16.msra.mxu0 %v3946
    %3995 = vmatprep.subr.bf16.mxu0 %v3950
    %3996 = vmatpush1.bf16.msra.mxu0 %v3949
    %3997 = vmatprep.subr.bf16.mxu0 %v3953
    %3998 = vmatpush1.bf16.msra.mxu0 %v3952
    %3999 = vmatprep.subr.bf16.mxu0 %v3956
    %4000 = vmatpush1.bf16.msra.mxu0 %v3955
    %4001 = vmatprep.subr.bf16.mxu0 %v3959
    %4002 = vmatpush1.bf16.msra.mxu0 %v3958
    %4003 = vmatprep.subr.bf16.mxu0 %v3962
    %4004 = vmatpush1.bf16.msra.mxu0 %v3961
    %4005 = vmatprep.subr.bf16.mxu0 %v3965
    %4006 = vmatpush1.bf16.msra.mxu0 %v3964
    %4007 = vmatprep.subr.bf16.mxu0 0
    %4008 = vmatpush1.bf16.msra.mxu0 0
    %4009 = vmatprep.subr.bf16.mxu0 0
    %4010 = vmatpush1.bf16.msra.mxu0 0
    %4011 = vmatprep.subr.bf16.mxu0 0
    %4012 = vmatpush1.bf16.msra.mxu0 0
    %4013 = vmatprep.subr.bf16.mxu0 0
    %4014 = vmatpush1.bf16.msra.mxu0 0
    %4015 = vmatprep.subr.bf16.mxu0 0
    %4016 = vmatpush1.bf16.msra.mxu0 0
    %4017 = vmatprep.subr.bf16.mxu0 0
    %4018 = vmatpush1.bf16.msra.mxu0 0
    %4019 = vmatprep.subr.bf16.mxu0 0
    %4020 = vmatpush1.bf16.msra.mxu0 0
    %4021 = vmatprep.subr.bf16.mxu0 0
    %4022 = vmatpush1.bf16.msra.mxu0 0
    %4023 = vmatprep.mubr.bf16.mxu0 0
    %4024 = vmatmul.mubr.bf16.gmra.mrb[0].mxu0 %v3830
    %v4025 = vpop.f32.mrb[0].mxu0
    %v4026 = vadd.f32 0.0, %v4025
    %v4027 = vpop.f32.mrb[0].mxu0
    %v4028 = vadd.f32 0.0, %v4027
    %v4029 = vpop.f32.mrb[0].mxu0
    %v4030 = vpop.f32.mrb[0].mxu0
    %4031 = vdwg.mxu0
    %4032 = vmatprep.subr.bf16.mxu0 0
    %4033 = vmatpush1.bf16.msra.mxu0 %v3945
    %4034 = vmatprep.subr.bf16.mxu0 0
    %4035 = vmatpush1.bf16.msra.mxu0 %v3948
    %4036 = vmatprep.subr.bf16.mxu0 0
    %4037 = vmatpush1.bf16.msra.mxu0 %v3951
    %4038 = vmatprep.subr.bf16.mxu0 0
    %4039 = vmatpush1.bf16.msra.mxu0 %v3954
    %4040 = vmatprep.subr.bf16.mxu0 0
    %4041 = vmatpush1.bf16.msra.mxu0 %v3957
    %4042 = vmatprep.subr.bf16.mxu0 0
    %4043 = vmatpush1.bf16.msra.mxu0 %v3960
    %4044 = vmatprep.subr.bf16.mxu0 0
    %4045 = vmatpush1.bf16.msra.mxu0 %v3963
    %4046 = vmatprep.subr.bf16.mxu0 0
    %4047 = vmatpush1.bf16.msra.mxu0 %v3966
    %4048 = vmatprep.subr.bf16.mxu0 0
    %4049 = vmatpush1.bf16.msra.mxu0 0
    %4050 = vmatprep.subr.bf16.mxu0 0
    %4051 = vmatpush1.bf16.msra.mxu0 0
    %4052 = vmatprep.subr.bf16.mxu0 0
    %4053 = vmatpush1.bf16.msra.mxu0 0
    %4054 = vmatprep.subr.bf16.mxu0 0
    %4055 = vmatpush1.bf16.msra.mxu0 0
    %4056 = vmatprep.subr.bf16.mxu0 0
    %4057 = vmatpush1.bf16.msra.mxu0 0
    %4058 = vmatprep.subr.bf16.mxu0 0
    %4059 = vmatpush1.bf16.msra.mxu0 0
    %4060 = vmatprep.subr.bf16.mxu0 0
    %4061 = vmatpush1.bf16.msra.mxu0 0
    %4062 = vmatprep.subr.bf16.mxu0 0
    %4063 = vmatpush1.bf16.msra.mxu0 0
    %4064 = vmatprep.mubr.bf16.mxu0 0
    %4065 = vmatmul.mubr.bf16.gmra.mrb[0].mxu0 %v3830
    %v4066 = vpop.f32.mrb[0].mxu0
    %v4067 = vadd.f32 0.0, %v4066
    %v4068 = vpop.f32.mrb[0].mxu0
    %v4069 = vpop.f32.mrb[0].mxu0
    %v4070 = vpop.f32.mrb[0].mxu0
    %4071 = vdwg.mxu0
    %s4072 = scalar_lea.vmem [#allocation3], 144
    %v4073 = vld [vmem:[%s4072] sm:$0xff]
    %v4074 = vld [vmem:[%s4072 + $0x8] sm:$0xff]
    %v4075 = vld [vmem:[%s4072 + $0x10] sm:$0xff]
    %v4076 = vadd.f32 %v4073, %v4026
    %v4077 = vxor.u32 %v4076, 2147483648
    %v4078 = vmul.f32 %v4077, 1.442695
    %v4079 = vpow.pop %v4078
    %v4080 = vadd.f32 %v4079, 1.0
    %v4081 = vrcp.pop %v4080
    %v4082 = vmul.f32 1.0, %v4081
    %v4083 = vadd.f32 %v4074, %v4028
    %v4084 = vxor.u32 %v4083, 2147483648
    %v4085 = vmul.f32 %v4084, 1.442695
    %v4086 = vpow.pop %v4085
    %v4087 = vadd.f32 %v4086, 1.0
    %v4088 = vrcp.pop %v4087
    %v4089 = vmul.f32 1.0, %v4088
    %v4090 = vld [vmem:[%s9] sm:$0x1]
    %v4092 = vlaneseq
    %v4093 = vshrl.u32 %v4092, 7
    %v4094 = vsub.s32 0, %v4093
    %v4095 = vrot.slane %v4090, %v4094
    %v4097 = vadd.f32 %v4067, %v4095
    %v4098 = vmul.f32 %v4082, %v4097
    %v4099 = vadd.f32 %v4075, %v4098
    %v4100 = vtanh.pop %v4099
    %v4101 = vsub.f32 1.0, %v4089
    %v4102 = vmul.f32 %v4101, %v4100
    %v4103 = vmul.f32 %v4089, %v3827
    %v4104 = vadd.f32 %v4102, %v4103
    %s4105 = scalar_lea.vmem %s17, 48
    %4106 = vst [vmem:[%s4105] sm:$0xff] %v4104
    %v4107 = vpack.c.bf16 %v4104, %v4104
    %v4108 = vld [vmem:[%s7] sm:$0xff]
    %v4109 = vld [vmem:[%s7 + $0x8] sm:$0xf]
    %v4110 = vld [vmem:[%s7 + $0xc] sm:$0xff]
    %v4111 = vld [vmem:[%s7 + $0x14] sm:$0xf]
    %v4112 = vld [vmem:[%s7 + $0x18] sm:$0xff]
    %v4113 = vld [vmem:[%s7 + $0x20] sm:$0xf]
    %v4114 = vld [vmem:[%s7 + $0x24] sm:$0xff]
    %v4115 = vld [vmem:[%s7 + $0x2c] sm:$0xf]
    %v4116 = vld [vmem:[%s7 + $0x30] sm:$0xff]
    %v4117 = vld [vmem:[%s7 + $0x38] sm:$0xf]
    %v4118 = vld [vmem:[%s7 + $0x3c] sm:$0xff]
    %v4119 = vld [vmem:[%s7 + $0x44] sm:$0xf]
    %v4120 = vld [vmem:[%s7 + $0x48] sm:$0xff]
    %v4121 = vld [vmem:[%s7 + $0x50] sm:$0xf]
    %v4122 = vld [vmem:[%s7 + $0x54] sm:$0xff]
    %v4123 = vld [vmem:[%s7 + $0x5c] sm:$0xf]
    %v4124 = vld [vmem:[%s7 + $0x60] sm:$0xff]
    %v4125 = vld [vmem:[%s7 + $0x68] sm:$0xf]
    %v4126 = vld [vmem:[%s7 + $0x6c] sm:$0xff]
    %v4127 = vld [vmem:[%s7 + $0x74] sm:$0xf]
    %v4128 = vld [vmem:[%s7 + $0x78] sm:$0xff]
    %v4129 = vld [vmem:[%s7 + $0x80] sm:$0xf]
    %v4130 = vld [vmem:[%s7 + $0x84] sm:$0xff]
    %v4131 = vld [vmem:[%s7 + $0x8c] sm:$0xf]
    %v4132 = vld [vmem:[%s7 + $0x90] sm:$0xff]
    %v4133 = vld [vmem:[%s7 + $0x98] sm:$0xf]
    %v4134 = vld [vmem:[%s7 + $0x9c] sm:$0xff]
    %v4135 = vld [vmem:[%s7 + $0xa4] sm:$0xf]
    %v4136 = vld [vmem:[%s7 + $0xa8] sm:$0xff]
    %v4137 = vld [vmem:[%s7 + $0xb0] sm:$0xf]
    %v4138 = vld [vmem:[%s7 + $0xb4] sm:$0xff]
    %v4139 = vld [vmem:[%s7 + $0xbc] sm:$0xf]
    %v4172 = vunpack.c.l.b16 %v4108
    %v4173 = vunpack.c.h.b16 %v4108
    %v4174 = vunpack.c.l.b16 %v4109
    %v4175 = vunpack.c.l.b16 %v4110
    %v4176 = vunpack.c.h.b16 %v4110
    %v4177 = vunpack.c.l.b16 %v4111
    %v4178 = vunpack.c.l.b16 %v4112
    %v4179 = vunpack.c.h.b16 %v4112
    %v4180 = vunpack.c.l.b16 %v4113
    %v4181 = vunpack.c.l.b16 %v4114
    %v4182 = vunpack.c.h.b16 %v4114
    %v4183 = vunpack.c.l.b16 %v4115
    %v4184 = vunpack.c.l.b16 %v4116
    %v4185 = vunpack.c.h.b16 %v4116
    %v4186 = vunpack.c.l.b16 %v4117
    %v4187 = vunpack.c.l.b16 %v4118
    %v4188 = vunpack.c.h.b16 %v4118
    %v4189 = vunpack.c.l.b16 %v4119
    %v4190 = vunpack.c.l.b16 %v4120
    %v4191 = vunpack.c.h.b16 %v4120
    %v4192 = vunpack.c.l.b16 %v4121
    %v4193 = vunpack.c.l.b16 %v4122
    %v4194 = vunpack.c.h.b16 %v4122
    %v4195 = vunpack.c.l.b16 %v4123
    %v4196 = vunpack.c.l.b16 %v4124
    %v4197 = vunpack.c.h.b16 %v4124
    %v4198 = vunpack.c.l.b16 %v4125
    %v4199 = vunpack.c.l.b16 %v4126
    %v4200 = vunpack.c.h.b16 %v4126
    %v4201 = vunpack.c.l.b16 %v4127
    %v4202 = vunpack.c.l.b16 %v4128
    %v4203 = vunpack.c.h.b16 %v4128
    %v4204 = vunpack.c.l.b16 %v4129
    %v4205 = vunpack.c.l.b16 %v4130
    %v4206 = vunpack.c.h.b16 %v4130
    %v4207 = vunpack.c.l.b16 %v4131
    %v4208 = vunpack.c.l.b16 %v4132
    %v4209 = vunpack.c.h.b16 %v4132
    %v4210 = vunpack.c.l.b16 %v4133
    %v4211 = vunpack.c.l.b16 %v4134
    %v4212 = vunpack.c.h.b16 %v4134
    %v4213 = vunpack.c.l.b16 %v4135
    %v4214 = vunpack.c.l.b16 %v4136
    %v4215 = vunpack.c.h.b16 %v4136
    %v4216 = vunpack.c.l.b16 %v4137
    %v4217 = vunpack.c.l.b16 %v4138
    %v4218 = vunpack.c.h.b16 %v4138
    %v4219 = vunpack.c.l.b16 %v4139
    %v4220 = vpack.c.b16 %v4175, %v4172
    %v4221 = vpack.c.b16 %v4176, %v4173
    %v4222 = vpack.c.b16 %v4177, %v4174
    %v4223 = vpack.c.b16 %v4181, %v4178
    %v4224 = vpack.c.b16 %v4182, %v4179
    %v4225 = vpack.c.b16 %v4183, %v4180
    %v4226 = vpack.c.b16 %v4187, %v4184
    %v4227 = vpack.c.b16 %v4188, %v4185
    %v4228 = vpack.c.b16 %v4189, %v4186
    %v4229 = vpack.c.b16 %v4193, %v4190
    %v4230 = vpack.c.b16 %v4194, %v4191
    %v4231 = vpack.c.b16 %v4195, %v4192
    %v4232 = vpack.c.b16 %v4199, %v4196
    %v4233 = vpack.c.b16 %v4200, %v4197
    %v4234 = vpack.c.b16 %v4201, %v4198
    %v4235 = vpack.c.b16 %v4205, %v4202
    %v4236 = vpack.c.b16 %v4206, %v4203
    %v4237 = vpack.c.b16 %v4207, %v4204
    %v4238 = vpack.c.b16 %v4211, %v4208
    %v4239 = vpack.c.b16 %v4212, %v4209
    %v4240 = vpack.c.b16 %v4213, %v4210
    %v4241 = vpack.c.b16 %v4217, %v4214
    %v4242 = vpack.c.b16 %v4218, %v4215
    %v4243 = vpack.c.b16 %v4219, %v4216
    %4268 = vmatprep.subr.bf16.mxu0 %v4221
    %4269 = vmatpush1.bf16.msra.mxu0 %v4220
    %4270 = vmatprep.subr.bf16.mxu0 %v4224
    %4271 = vmatpush1.bf16.msra.mxu0 %v4223
    %4272 = vmatprep.subr.bf16.mxu0 %v4227
    %4273 = vmatpush1.bf16.msra.mxu0 %v4226
    %4274 = vmatprep.subr.bf16.mxu0 %v4230
    %4275 = vmatpush1.bf16.msra.mxu0 %v4229
    %4276 = vmatprep.subr.bf16.mxu0 %v4233
    %4277 = vmatpush1.bf16.msra.mxu0 %v4232
    %4278 = vmatprep.subr.bf16.mxu0 %v4236
    %4279 = vmatpush1.bf16.msra.mxu0 %v4235
    %4280 = vmatprep.subr.bf16.mxu0 %v4239
    %4281 = vmatpush1.bf16.msra.mxu0 %v4238
    %4282 = vmatprep.subr.bf16.mxu0 %v4242
    %4283 = vmatpush1.bf16.msra.mxu0 %v4241
    %4284 = vmatprep.subr.bf16.mxu0 0
    %4285 = vmatpush1.bf16.msra.mxu0 0
    %4286 = vmatprep.subr.bf16.mxu0 0
    %4287 = vmatpush1.bf16.msra.mxu0 0
    %4288 = vmatprep.subr.bf16.mxu0 0
    %4289 = vmatpush1.bf16.msra.mxu0 0
    %4290 = vmatprep.subr.bf16.mxu0 0
    %4291 = vmatpush1.bf16.msra.mxu0 0
    %4292 = vmatprep.subr.bf16.mxu0 0
    %4293 = vmatpush1.bf16.msra.mxu0 0
    %4294 = vmatprep.subr.bf16.mxu0 0
    %4295 = vmatpush1.bf16.msra.mxu0 0
    %4296 = vmatprep.subr.bf16.mxu0 0
    %4297 = vmatpush1.bf16.msra.mxu0 0
    %4298 = vmatprep.subr.bf16.mxu0 0
    %4299 = vmatpush1.bf16.msra.mxu0 0
    %4300 = vmatprep.mubr.bf16.mxu0 0
    %4301 = vmatmul.mubr.bf16.gmra.mrb[0].mxu0 %v4107
    %v4302 = vpop.f32.mrb[0].mxu0
    %v4303 = vadd.f32 0.0, %v4302
    %v4304 = vpop.f32.mrb[0].mxu0
    %v4305 = vadd.f32 0.0, %v4304
    %v4306 = vpop.f32.mrb[0].mxu0
    %v4307 = vpop.f32.mrb[0].mxu0
    %4308 = vdwg.mxu0
    %4309 = vmatprep.subr.bf16.mxu0 0
    %4310 = vmatpush1.bf16.msra.mxu0 %v4222
    %4311 = vmatprep.subr.bf16.mxu0 0
    %4312 = vmatpush1.bf16.msra.mxu0 %v4225
    %4313 = vmatprep.subr.bf16.mxu0 0
    %4314 = vmatpush1.bf16.msra.mxu0 %v4228
    %4315 = vmatprep.subr.bf16.mxu0 0
    %4316 = vmatpush1.bf16.msra.mxu0 %v4231
    %4317 = vmatprep.subr.bf16.mxu0 0
    %4318 = vmatpush1.bf16.msra.mxu0 %v4234
    %4319 = vmatprep.subr.bf16.mxu0 0
    %4320 = vmatpush1.bf16.msra.mxu0 %v4237
    %4321 = vmatprep.subr.bf16.mxu0 0
    %4322 = vmatpush1.bf16.msra.mxu0 %v4240
    %4323 = vmatprep.subr.bf16.mxu0 0
    %4324 = vmatpush1.bf16.msra.mxu0 %v4243
    %4325 = vmatprep.subr.bf16.mxu0 0
    %4326 = vmatpush1.bf16.msra.mxu0 0
    %4327 = vmatprep.subr.bf16.mxu0 0
    %4328 = vmatpush1.bf16.msra.mxu0 0
    %4329 = vmatprep.subr.bf16.mxu0 0
    %4330 = vmatpush1.bf16.msra.mxu0 0
    %4331 = vmatprep.subr.bf16.mxu0 0
    %4332 = vmatpush1.bf16.msra.mxu0 0
    %4333 = vmatprep.subr.bf16.mxu0 0
    %4334 = vmatpush1.bf16.msra.mxu0 0
    %4335 = vmatprep.subr.bf16.mxu0 0
    %4336 = vmatpush1.bf16.msra.mxu0 0
    %4337 = vmatprep.subr.bf16.mxu0 0
    %4338 = vmatpush1.bf16.msra.mxu0 0
    %4339 = vmatprep.subr.bf16.mxu0 0
    %4340 = vmatpush1.bf16.msra.mxu0 0
    %4341 = vmatprep.mubr.bf16.mxu0 0
    %4342 = vmatmul.mubr.bf16.gmra.mrb[0].mxu0 %v4107
    %v4343 = vpop.f32.mrb[0].mxu0
    %v4344 = vadd.f32 0.0, %v4343
    %v4345 = vpop.f32.mrb[0].mxu0
    %v4346 = vpop.f32.mrb[0].mxu0
    %v4347 = vpop.f32.mrb[0].mxu0
    %4348 = vdwg.mxu0
    %s4349 = scalar_lea.vmem [#allocation3], 168
    %v4350 = vld [vmem:[%s4349] sm:$0xff]
    %v4351 = vld [vmem:[%s4349 + $0x8] sm:$0xff]
    %v4352 = vld [vmem:[%s4349 + $0x10] sm:$0xff]
    %v4353 = vadd.f32 %v4350, %v4303
    %v4354 = vxor.u32 %v4353, 2147483648
    %v4355 = vmul.f32 %v4354, 1.442695
    %v4356 = vpow.pop %v4355
    %v4357 = vadd.f32 %v4356, 1.0
    %v4358 = vrcp.pop %v4357
    %v4359 = vmul.f32 1.0, %v4358
    %v4360 = vadd.f32 %v4351, %v4305
    %v4361 = vxor.u32 %v4360, 2147483648
    %v4362 = vmul.f32 %v4361, 1.442695
    %v4363 = vpow.pop %v4362
    %v4364 = vadd.f32 %v4363, 1.0
    %v4365 = vrcp.pop %v4364
    %v4366 = vmul.f32 1.0, %v4365
    %v4367 = vld [vmem:[%s9] sm:$0x1]
    %v4369 = vlaneseq
    %v4370 = vshrl.u32 %v4369, 7
    %v4371 = vsub.s32 0, %v4370
    %v4372 = vrot.slane %v4367, %v4371
    %v4374 = vadd.f32 %v4344, %v4372
    %v4375 = vmul.f32 %v4359, %v4374
    %v4376 = vadd.f32 %v4352, %v4375
    %v4377 = vtanh.pop %v4376
    %v4378 = vsub.f32 1.0, %v4366
    %v4379 = vmul.f32 %v4378, %v4377
    %v4380 = vmul.f32 %v4366, %v4104
    %v4381 = vadd.f32 %v4379, %v4380
    %s4382 = scalar_lea.vmem %s17, 56
    %4383 = vst [vmem:[%s4382] sm:$0xff] %v4381
    %4384 = vst [vmem:[#allocation7] sm:$0xff] %v4381
    // Predicated region
    $region66: #{seq2seq_with_predictor_forward.2} parent=1 // pred_check
      _
    $region67: #{seq2seq_with_predictor_forward.2} parent=1 // pred_check_branch
      %4386 = sbr.rel (0) target = $region69
    $region68: #{seq2seq_with_predictor_forward.2} parent=1 // pred_region
      %s4388 = ssub.s32 128, 128
      %4389 = vsyncadd [#allocation6], %s4388
      %s4391 = sshll.u32 [#allocation5], 4
      %s4392 = int_to_ptr.vmem [resolvable:$true] %s4391
      %4394 = dma.vmem_to_hbm [thread:$0]  %s4392, 128, %s16, [#allocation6]
    $region69: #{seq2seq_with_predictor_forward.2} parent=1 // pred_fallthru
      _
    // Predicated region
    $region70: #{seq2seq_with_predictor_forward.2} parent=1 // pred_check
      _
    $region71: #{seq2seq_with_predictor_forward.2} parent=1 // pred_check_branch
      %4396 = sbr.rel (0) target = $region73
    $region72: #{seq2seq_with_predictor_forward.2} parent=1 // pred_region
      _
    $region73: #{seq2seq_with_predictor_forward.2} parent=1 // pred_fallthru
      _
    // Predicated region
    $region74: #{seq2seq_with_predictor_forward.2} parent=1 // pred_check
      _
    $region75: #{seq2seq_with_predictor_forward.2} parent=1 // pred_check_branch
      %4398 = sbr.rel (0) target = $region77
    $region76: #{seq2seq_with_predictor_forward.2} parent=1 // pred_region
      %s4400 = ssub.s32 128, 128
      %4401 = vsyncadd [#allocation8], %s4400
      %s4403 = sshll.u32 [#allocation7], 4
      %s4404 = int_to_ptr.vmem [resolvable:$true] %s4403
      %4406 = dma.vmem_to_hbm [thread:$0]  %s4404, 128, %s18, [#allocation8]
    $region77: #{seq2seq_with_predictor_forward.2} parent=1 // pred_fallthru
      _
    // Predicated region
    $region78: #{seq2seq_with_predictor_forward.2} parent=1 // pred_check
      _
    $region79: #{seq2seq_with_predictor_forward.2} parent=1 // pred_check_branch
      %4408 = sbr.rel (0) target = $region81
    $region80: #{seq2seq_with_predictor_forward.2} parent=1 // pred_region
      _
    $region81: #{seq2seq_with_predictor_forward.2} parent=1 // pred_fallthru
      _
    // Predicated region
    $region82: #{seq2seq_with_predictor_forward.2} parent=1 // pred_check
      _
    $region83: #{seq2seq_with_predictor_forward.2} parent=1 // pred_check_branch
      %4410 = sbr.rel (0) target = $region85
    $region84: #{seq2seq_with_predictor_forward.2} parent=1 // pred_region
      %4411 = dma.done [#allocation6], 128
    $region85: #{seq2seq_with_predictor_forward.2} parent=1 // pred_fallthru
      _
    // Predicated region
    $region86: #{seq2seq_with_predictor_forward.2} parent=1 // pred_check
      _
    $region87: #{seq2seq_with_predictor_forward.2} parent=1 // pred_check_branch
      %4413 = sbr.rel (0) target = $region89
    $region88: #{seq2seq_with_predictor_forward.2} parent=1 // pred_region
      _
    $region89: #{seq2seq_with_predictor_forward.2} parent=1 // pred_fallthru
      _
    // Predicated region
    $region90: #{seq2seq_with_predictor_forward.2} parent=1 // pred_check
      _
    $region91: #{seq2seq_with_predictor_forward.2} parent=1 // pred_check_branch
      %4415 = sbr.rel (0) target = $region93
    $region92: #{seq2seq_with_predictor_forward.2} parent=1 // pred_region
      %4416 = dma.done [#allocation8], 128
    $region93: #{seq2seq_with_predictor_forward.2} parent=1 // pred_fallthru
      _
    // Predicated region
    $region94: #{seq2seq_with_predictor_forward.2} parent=1 // pred_check
      _
    $region95: #{seq2seq_with_predictor_forward.2} parent=1 // pred_check_branch
      %4418 = sbr.rel (0) target = $region97
    $region96: #{seq2seq_with_predictor_forward.2} parent=1 // pred_region
      _
    $region97: #{seq2seq_with_predictor_forward.2} parent=1 // pred_fallthru
      _
    %4419 = vsyncpa [#allocation6], 1
    %4420 = vsyncpa [#allocation8], 1

</llo_original>
